<compile_context>
chip_gen: v7x
topology: tpu7x:2x2x1
jax: 0.10.0
libtpu: 0.0.40
codegen_flags: <defaults>
</compile_context>

<pallas_src>
import jax
import jax.numpy as jnp
from jax.experimental import pallas as pl
from jax.experimental.pallas import tpu as pltpu

LATENT_DIM = 100
LATENT_PAD = 128          # K padded to a full lane block
IMG_FLAT = 1 * 28 * 28    # 784
OUT_PAD = 896             # 7 * 128, lane-dense head width
BN_EPS = 1e-5
LEAK = 0.2


def _leaky_relu(x):
    return jnp.where(x > 0, x, LEAK * x)


def _generator_kernel(
    z_ref,
    w1_ref, b1_ref,
    w2_ref, b2_ref, g2_ref, be2_ref,
    w3_ref, b3_ref, g3_ref, be3_ref,
    w4_ref, b4_ref, g4_ref, be4_ref,
    w5_ref, b5_ref,
    out_ref,
):
    inv_b = 1.0 / z_ref.shape[0]  # static batch size

    # ---- block 1: Linear(128(pad)->128) + LeakyReLU (no norm) ----
    h = jnp.dot(
        z_ref[...].astype(jnp.bfloat16), w1_ref[...],
        preferred_element_type=jnp.float32,
    ) + b1_ref[...]
    h = _leaky_relu(h)

    # ---- blocks 2-4: Linear -> BatchNorm1d (batch stats) -> LeakyReLU ----
    def lin_bn_lrelu(x, w_ref, b_ref, gamma_ref, beta_ref):
        y = jnp.dot(
            x.astype(jnp.bfloat16), w_ref[...],
            preferred_element_type=jnp.float32,
        ) + b_ref[...]
        # One-pass batch statistics (biased variance, like PyTorch fwd).
        s1 = jnp.sum(y, axis=0, keepdims=True)          # (1, F)
        s2 = jnp.sum(y * y, axis=0, keepdims=True)      # (1, F)
        mean = s1 * inv_b
        var = jnp.maximum(s2 * inv_b - mean * mean, 0.0)
        yn = (y - mean) * jax.lax.rsqrt(var + BN_EPS)
        yn = yn * gamma_ref[...] + beta_ref[...]
        return _leaky_relu(yn)

    h = lin_bn_lrelu(h, w2_ref, b2_ref, g2_ref, be2_ref)
    h = lin_bn_lrelu(h, w3_ref, b3_ref, g3_ref, be3_ref)
    h = lin_bn_lrelu(h, w4_ref, b4_ref, g4_ref, be4_ref)

    # ---- head: Linear(1024->896(pad)) + Tanh, lane-dense store ----
    y = jnp.dot(
        h.astype(jnp.bfloat16), w5_ref[...],
        preferred_element_type=jnp.float32,
    ) + b5_ref[...]
    out_ref[...] = jnp.tanh(y)


@jax.jit
def generator_forward(z, params):
    """z: (B, LATENT_DIM) float32 -> img: (B, 1, 28, 28) float32."""
    B = z.shape[0]
    # Zero-pad the latent dim to 128 (matches zero-padded rows of w1).
    z_pad = jnp.pad(z, ((0, 0), (0, LATENT_PAD - LATENT_DIM)))

    flat_params = [
        params["w1"], params["b1"],
        params["w2"], params["b2"], params["g2"], params["be2"],
        params["w3"], params["b3"], params["g3"], params["be3"],
        params["w4"], params["b4"], params["g4"], params["be4"],
        params["w5"], params["b5"],
    ]
    vmem_spec = pl.BlockSpec(memory_space=pltpu.MemorySpace.VMEM)
    out_flat = pl.pallas_call(
        _generator_kernel,
        out_shape=jax.ShapeDtypeStruct((B, OUT_PAD), jnp.float32),
        in_specs=[vmem_spec] * (1 + len(flat_params)),
        out_specs=vmem_spec,
        compiler_params=pltpu.CompilerParams(
            vmem_limit_bytes=48 * 1024 * 1024,
        ),
    )(z_pad, *flat_params)
    # Drop the lane-padding tail and reshape to NCHW.
    return out_flat[:, :IMG_FLAT].reshape(B, 1, 28, 28)


def init_params(key):
    """PyTorch nn.Linear-style init (U[-1/sqrt(fan_in), +]); weights stored bf16,
    biases / BN affine params stored f32.  K of layer 1 and N of layer 5 are
    zero-padded to lane-dense sizes."""
    dims = [(LATENT_DIM, 128), (128, 256), (256, 512), (512, 1024), (1024, IMG_FLAT)]
    keys = jax.random.split(key, 2 * len(dims))
    params = {}
    for idx, (fan_in, fan_out) in enumerate(dims):
        bound = 1.0 / (fan_in ** 0.5)
        w = jax.random.uniform(
            keys[2 * idx], (fan_in, fan_out), jnp.float32, -bound, bound
        )
        b = jax.random.uniform(
            keys[2 * idx + 1], (1, fan_out), jnp.float32, -bound, bound
        )
        if idx == 0:
            # Pad contraction dim 100 -> 128 with zero rows (no effect on output).
            w = jnp.pad(w, ((0, LATENT_PAD - LATENT_DIM), (0, 0)))
        if idx == len(dims) - 1:
            # Pad head width 784 -> 896 with zero cols (sliced off in wrapper).
            w = jnp.pad(w, ((0, 0), (0, OUT_PAD - IMG_FLAT)))
            b = jnp.pad(b, ((0, 0), (0, OUT_PAD - IMG_FLAT)))
        params[f"w{idx + 1}"] = w.astype(jnp.bfloat16)
        params[f"b{idx + 1}"] = b  # f32
    # BatchNorm affine params (layers 2, 3, 4): gamma=1, beta=0 (f32)
    for idx, f in zip((2, 3, 4), (256, 512, 1024)):
        params[f"g{idx}"] = jnp.ones((1, f), jnp.float32)
        params[f"be{idx}"] = jnp.zeros((1, f), jnp.float32)
    return params


if __name__ == "__main__":
    key = jax.random.PRNGKey(0)
    pkey, zkey = jax.random.split(key)
    params = init_params(pkey)

    B = 8  # small batch; BatchNorm1d needs B >= 2
    z = jax.random.normal(zkey, (B, LATENT_DIM), jnp.float32)

    img = generator_forward(z, params)
    jax.block_until_ready(img)

    assert img.shape == (B, 1, 28, 28), img.shape
    assert img.dtype == jnp.float32
    # Tanh output must lie in [-1, 1]
    assert float(jnp.max(jnp.abs(img))) <= 1.0 + 1e-6
    assert bool(jnp.all(jnp.isfinite(img)))
    print("KERNEL_OK")
</pallas_src>

<mosaic_0001>
module attributes {stable_mosaic.version = 11 : i64} {
  func.func @_generator_kernel(%arg0: memref<8x128xf32, #tpu.memory_space<vmem>>, %arg1: memref<128x128xbf16, #tpu.memory_space<vmem>>, %arg2: memref<1x128xf32, #tpu.memory_space<vmem>>, %arg3: memref<128x256xbf16, #tpu.memory_space<vmem>>, %arg4: memref<1x256xf32, #tpu.memory_space<vmem>>, %arg5: memref<1x256xf32, #tpu.memory_space<vmem>>, %arg6: memref<1x256xf32, #tpu.memory_space<vmem>>, %arg7: memref<256x512xbf16, #tpu.memory_space<vmem>>, %arg8: memref<1x512xf32, #tpu.memory_space<vmem>>, %arg9: memref<1x512xf32, #tpu.memory_space<vmem>>, %arg10: memref<1x512xf32, #tpu.memory_space<vmem>>, %arg11: memref<512x1024xbf16, #tpu.memory_space<vmem>>, %arg12: memref<1x1024xf32, #tpu.memory_space<vmem>>, %arg13: memref<1x1024xf32, #tpu.memory_space<vmem>>, %arg14: memref<1x1024xf32, #tpu.memory_space<vmem>>, %arg15: memref<1024x896xbf16, #tpu.memory_space<vmem>>, %arg16: memref<1x896xf32, #tpu.memory_space<vmem>>, %arg17: memref<8x896xf32, #tpu.memory_space<vmem>>) attributes {dimension_semantics = [], scalar_prefetch = 0 : i64, scratch_operands = 0 : i64, tpu.core_type = #tpu.core_type<tc>} {
    %c0 = arith.constant 0 : index
    %c0_0 = arith.constant 0 : index
    %0 = vector.load %arg0[%c0, %c0_0] : memref<8x128xf32, #tpu.memory_space<vmem>>, vector<8x128xf32>
    %1 = arith.truncf %0 : vector<8x128xf32> to vector<8x128xbf16>
    %c0_1 = arith.constant 0 : index
    %c0_2 = arith.constant 0 : index
    %2 = vector.load %arg1[%c0_1, %c0_2] : memref<128x128xbf16, #tpu.memory_space<vmem>>, vector<128x128xbf16>
    %cst = arith.constant dense<0.000000e+00> : vector<8x128xf32>
    %3 = tpu.matmul %1, %2, %cst {dimension_numbers = #tpu.dot_dimension_numbers<[1], [0], [0], [1], [0, 0, 1, 1], [], []>} : vector<8x128xbf16>, vector<128x128xbf16>, vector<8x128xf32> -> vector<8x128xf32>
    %c0_3 = arith.constant 0 : index
    %c0_4 = arith.constant 0 : index
    %4 = vector.load %arg2[%c0_3, %c0_4] : memref<1x128xf32, #tpu.memory_space<vmem>>, vector<1x128xf32>
    %5 = vector.broadcast %4 : vector<1x128xf32> to vector<8x128xf32>
    %6 = arith.addf %3, %5 : vector<8x128xf32>
    %cst_5 = arith.constant 0.000000e+00 : f32
    %7 = vector.broadcast %cst_5 : f32 to vector<8x128xf32>
    %8 = arith.cmpf ogt, %6, %7 : vector<8x128xf32>
    %cst_6 = arith.constant 2.000000e-01 : f32
    %9 = vector.broadcast %cst_6 : f32 to vector<8x128xf32>
    %10 = arith.mulf %9, %6 : vector<8x128xf32>
    %11 = arith.select %8, %6, %10 : vector<8x128xi1>, vector<8x128xf32>
    %12 = arith.truncf %11 : vector<8x128xf32> to vector<8x128xbf16>
    %c0_7 = arith.constant 0 : index
    %c0_8 = arith.constant 0 : index
    %13 = vector.load %arg3[%c0_7, %c0_8] : memref<128x256xbf16, #tpu.memory_space<vmem>>, vector<128x256xbf16>
    %cst_9 = arith.constant dense<0.000000e+00> : vector<8x256xf32>
    %14 = tpu.matmul %12, %13, %cst_9 {dimension_numbers = #tpu.dot_dimension_numbers<[1], [0], [0], [1], [0, 0, 1, 1], [], []>} : vector<8x128xbf16>, vector<128x256xbf16>, vector<8x256xf32> -> vector<8x256xf32>
    %c0_10 = arith.constant 0 : index
    %c0_11 = arith.constant 0 : index
    %15 = vector.load %arg4[%c0_10, %c0_11] : memref<1x256xf32, #tpu.memory_space<vmem>>, vector<1x256xf32>
    %16 = vector.broadcast %15 : vector<1x256xf32> to vector<8x256xf32>
    %17 = arith.addf %14, %16 : vector<8x256xf32>
    %cst_12 = arith.constant dense<0.000000e+00> : vector<256xf32>
    %18 = vector.multi_reduction <add>, %17, %cst_12 [0] : vector<8x256xf32> to vector<256xf32>
    %19 = vector.shape_cast %18 : vector<256xf32> to vector<1x256xf32>
    %20 = arith.mulf %17, %17 : vector<8x256xf32>
    %cst_13 = arith.constant dense<0.000000e+00> : vector<256xf32>
    %21 = vector.multi_reduction <add>, %20, %cst_13 [0] : vector<8x256xf32> to vector<256xf32>
    %22 = vector.shape_cast %21 : vector<256xf32> to vector<1x256xf32>
    %cst_14 = arith.constant 1.250000e-01 : f32
    %23 = vector.broadcast %cst_14 : f32 to vector<1x256xf32>
    %24 = arith.mulf %19, %23 : vector<1x256xf32>
    %cst_15 = arith.constant 1.250000e-01 : f32
    %25 = vector.broadcast %cst_15 : f32 to vector<1x256xf32>
    %26 = arith.mulf %22, %25 : vector<1x256xf32>
    %27 = arith.mulf %24, %24 : vector<1x256xf32>
    %28 = arith.subf %26, %27 : vector<1x256xf32>
    %cst_16 = arith.constant 0.000000e+00 : f32
    %29 = vector.broadcast %cst_16 : f32 to vector<1x256xf32>
    %30 = arith.maximumf %28, %29 : vector<1x256xf32>
    %31 = vector.broadcast %24 : vector<1x256xf32> to vector<8x256xf32>
    %32 = arith.subf %17, %31 : vector<8x256xf32>
    %cst_17 = arith.constant 9.99999974E-6 : f32
    %33 = vector.broadcast %cst_17 : f32 to vector<1x256xf32>
    %34 = arith.addf %30, %33 : vector<1x256xf32>
    %35 = math.rsqrt %34 : vector<1x256xf32>
    %36 = vector.broadcast %35 : vector<1x256xf32> to vector<8x256xf32>
    %37 = arith.mulf %32, %36 : vector<8x256xf32>
    %c0_18 = arith.constant 0 : index
    %c0_19 = arith.constant 0 : index
    %38 = vector.load %arg5[%c0_18, %c0_19] : memref<1x256xf32, #tpu.memory_space<vmem>>, vector<1x256xf32>
    %39 = vector.broadcast %38 : vector<1x256xf32> to vector<8x256xf32>
    %40 = arith.mulf %37, %39 : vector<8x256xf32>
    %c0_20 = arith.constant 0 : index
    %c0_21 = arith.constant 0 : index
    %41 = vector.load %arg6[%c0_20, %c0_21] : memref<1x256xf32, #tpu.memory_space<vmem>>, vector<1x256xf32>
    %42 = vector.broadcast %41 : vector<1x256xf32> to vector<8x256xf32>
    %43 = arith.addf %40, %42 : vector<8x256xf32>
    %cst_22 = arith.constant 0.000000e+00 : f32
    %44 = vector.broadcast %cst_22 : f32 to vector<8x256xf32>
    %45 = arith.cmpf ogt, %43, %44 : vector<8x256xf32>
    %cst_23 = arith.constant 2.000000e-01 : f32
    %46 = vector.broadcast %cst_23 : f32 to vector<8x256xf32>
    %47 = arith.mulf %46, %43 : vector<8x256xf32>
    %48 = arith.select %45, %43, %47 : vector<8x256xi1>, vector<8x256xf32>
    %49 = arith.truncf %48 : vector<8x256xf32> to vector<8x256xbf16>
    %c0_24 = arith.constant 0 : index
    %c0_25 = arith.constant 0 : index
    %50 = vector.load %arg7[%c0_24, %c0_25] : memref<256x512xbf16, #tpu.memory_space<vmem>>, vector<256x512xbf16>
    %cst_26 = arith.constant dense<0.000000e+00> : vector<8x512xf32>
    %51 = tpu.matmul %49, %50, %cst_26 {dimension_numbers = #tpu.dot_dimension_numbers<[1], [0], [0], [1], [0, 0, 1, 1], [], []>} : vector<8x256xbf16>, vector<256x512xbf16>, vector<8x512xf32> -> vector<8x512xf32>
    %c0_27 = arith.constant 0 : index
    %c0_28 = arith.constant 0 : index
    %52 = vector.load %arg8[%c0_27, %c0_28] : memref<1x512xf32, #tpu.memory_space<vmem>>, vector<1x512xf32>
    %53 = vector.broadcast %52 : vector<1x512xf32> to vector<8x512xf32>
    %54 = arith.addf %51, %53 : vector<8x512xf32>
    %cst_29 = arith.constant dense<0.000000e+00> : vector<512xf32>
    %55 = vector.multi_reduction <add>, %54, %cst_29 [0] : vector<8x512xf32> to vector<512xf32>
    %56 = vector.shape_cast %55 : vector<512xf32> to vector<1x512xf32>
    %57 = arith.mulf %54, %54 : vector<8x512xf32>
    %cst_30 = arith.constant dense<0.000000e+00> : vector<512xf32>
    %58 = vector.multi_reduction <add>, %57, %cst_30 [0] : vector<8x512xf32> to vector<512xf32>
    %59 = vector.shape_cast %58 : vector<512xf32> to vector<1x512xf32>
    %cst_31 = arith.constant 1.250000e-01 : f32
    %60 = vector.broadcast %cst_31 : f32 to vector<1x512xf32>
    %61 = arith.mulf %56, %60 : vector<1x512xf32>
    %cst_32 = arith.constant 1.250000e-01 : f32
    %62 = vector.broadcast %cst_32 : f32 to vector<1x512xf32>
    %63 = arith.mulf %59, %62 : vector<1x512xf32>
    %64 = arith.mulf %61, %61 : vector<1x512xf32>
    %65 = arith.subf %63, %64 : vector<1x512xf32>
    %cst_33 = arith.constant 0.000000e+00 : f32
    %66 = vector.broadcast %cst_33 : f32 to vector<1x512xf32>
    %67 = arith.maximumf %65, %66 : vector<1x512xf32>
    %68 = vector.broadcast %61 : vector<1x512xf32> to vector<8x512xf32>
    %69 = arith.subf %54, %68 : vector<8x512xf32>
    %cst_34 = arith.constant 9.99999974E-6 : f32
    %70 = vector.broadcast %cst_34 : f32 to vector<1x512xf32>
    %71 = arith.addf %67, %70 : vector<1x512xf32>
    %72 = math.rsqrt %71 : vector<1x512xf32>
    %73 = vector.broadcast %72 : vector<1x512xf32> to vector<8x512xf32>
    %74 = arith.mulf %69, %73 : vector<8x512xf32>
    %c0_35 = arith.constant 0 : index
    %c0_36 = arith.constant 0 : index
    %75 = vector.load %arg9[%c0_35, %c0_36] : memref<1x512xf32, #tpu.memory_space<vmem>>, vector<1x512xf32>
    %76 = vector.broadcast %75 : vector<1x512xf32> to vector<8x512xf32>
    %77 = arith.mulf %74, %76 : vector<8x512xf32>
    %c0_37 = arith.constant 0 : index
    %c0_38 = arith.constant 0 : index
    %78 = vector.load %arg10[%c0_37, %c0_38] : memref<1x512xf32, #tpu.memory_space<vmem>>, vector<1x512xf32>
    %79 = vector.broadcast %78 : vector<1x512xf32> to vector<8x512xf32>
    %80 = arith.addf %77, %79 : vector<8x512xf32>
    %cst_39 = arith.constant 0.000000e+00 : f32
    %81 = vector.broadcast %cst_39 : f32 to vector<8x512xf32>
    %82 = arith.cmpf ogt, %80, %81 : vector<8x512xf32>
    %cst_40 = arith.constant 2.000000e-01 : f32
    %83 = vector.broadcast %cst_40 : f32 to vector<8x512xf32>
    %84 = arith.mulf %83, %80 : vector<8x512xf32>
    %85 = arith.select %82, %80, %84 : vector<8x512xi1>, vector<8x512xf32>
    %86 = arith.truncf %85 : vector<8x512xf32> to vector<8x512xbf16>
    %c0_41 = arith.constant 0 : index
    %c0_42 = arith.constant 0 : index
    %87 = vector.load %arg11[%c0_41, %c0_42] : memref<512x1024xbf16, #tpu.memory_space<vmem>>, vector<512x1024xbf16>
    %cst_43 = arith.constant dense<0.000000e+00> : vector<8x1024xf32>
    %88 = tpu.matmul %86, %87, %cst_43 {dimension_numbers = #tpu.dot_dimension_numbers<[1], [0], [0], [1], [0, 0, 1, 1], [], []>} : vector<8x512xbf16>, vector<512x1024xbf16>, vector<8x1024xf32> -> vector<8x1024xf32>
    %c0_44 = arith.constant 0 : index
    %c0_45 = arith.constant 0 : index
    %89 = vector.load %arg12[%c0_44, %c0_45] : memref<1x1024xf32, #tpu.memory_space<vmem>>, vector<1x1024xf32>
    %90 = vector.broadcast %89 : vector<1x1024xf32> to vector<8x1024xf32>
    %91 = arith.addf %88, %90 : vector<8x1024xf32>
    %cst_46 = arith.constant dense<0.000000e+00> : vector<1024xf32>
    %92 = vector.multi_reduction <add>, %91, %cst_46 [0] : vector<8x1024xf32> to vector<1024xf32>
    %93 = vector.shape_cast %92 : vector<1024xf32> to vector<1x1024xf32>
    %94 = arith.mulf %91, %91 : vector<8x1024xf32>
    %cst_47 = arith.constant dense<0.000000e+00> : vector<1024xf32>
    %95 = vector.multi_reduction <add>, %94, %cst_47 [0] : vector<8x1024xf32> to vector<1024xf32>
    %96 = vector.shape_cast %95 : vector<1024xf32> to vector<1x1024xf32>
    %cst_48 = arith.constant 1.250000e-01 : f32
    %97 = vector.broadcast %cst_48 : f32 to vector<1x1024xf32>
    %98 = arith.mulf %93, %97 : vector<1x1024xf32>
    %cst_49 = arith.constant 1.250000e-01 : f32
    %99 = vector.broadcast %cst_49 : f32 to vector<1x1024xf32>
    %100 = arith.mulf %96, %99 : vector<1x1024xf32>
    %101 = arith.mulf %98, %98 : vector<1x1024xf32>
    %102 = arith.subf %100, %101 : vector<1x1024xf32>
    %cst_50 = arith.constant 0.000000e+00 : f32
    %103 = vector.broadcast %cst_50 : f32 to vector<1x1024xf32>
    %104 = arith.maximumf %102, %103 : vector<1x1024xf32>
    %105 = vector.broadcast %98 : vector<1x1024xf32> to vector<8x1024xf32>
    %106 = arith.subf %91, %105 : vector<8x1024xf32>
    %cst_51 = arith.constant 9.99999974E-6 : f32
    %107 = vector.broadcast %cst_51 : f32 to vector<1x1024xf32>
    %108 = arith.addf %104, %107 : vector<1x1024xf32>
    %109 = math.rsqrt %108 : vector<1x1024xf32>
    %110 = vector.broadcast %109 : vector<1x1024xf32> to vector<8x1024xf32>
    %111 = arith.mulf %106, %110 : vector<8x1024xf32>
    %c0_52 = arith.constant 0 : index
    %c0_53 = arith.constant 0 : index
    %112 = vector.load %arg13[%c0_52, %c0_53] : memref<1x1024xf32, #tpu.memory_space<vmem>>, vector<1x1024xf32>
    %113 = vector.broadcast %112 : vector<1x1024xf32> to vector<8x1024xf32>
    %114 = arith.mulf %111, %113 : vector<8x1024xf32>
    %c0_54 = arith.constant 0 : index
    %c0_55 = arith.constant 0 : index
    %115 = vector.load %arg14[%c0_54, %c0_55] : memref<1x1024xf32, #tpu.memory_space<vmem>>, vector<1x1024xf32>
    %116 = vector.broadcast %115 : vector<1x1024xf32> to vector<8x1024xf32>
    %117 = arith.addf %114, %116 : vector<8x1024xf32>
    %cst_56 = arith.constant 0.000000e+00 : f32
    %118 = vector.broadcast %cst_56 : f32 to vector<8x1024xf32>
    %119 = arith.cmpf ogt, %117, %118 : vector<8x1024xf32>
    %cst_57 = arith.constant 2.000000e-01 : f32
    %120 = vector.broadcast %cst_57 : f32 to vector<8x1024xf32>
    %121 = arith.mulf %120, %117 : vector<8x1024xf32>
    %122 = arith.select %119, %117, %121 : vector<8x1024xi1>, vector<8x1024xf32>
    %123 = arith.truncf %122 : vector<8x1024xf32> to vector<8x1024xbf16>
    %c0_58 = arith.constant 0 : index
    %c0_59 = arith.constant 0 : index
    %124 = vector.load %arg15[%c0_58, %c0_59] : memref<1024x896xbf16, #tpu.memory_space<vmem>>, vector<1024x896xbf16>
    %cst_60 = arith.constant dense<0.000000e+00> : vector<8x896xf32>
    %125 = tpu.matmul %123, %124, %cst_60 {dimension_numbers = #tpu.dot_dimension_numbers<[1], [0], [0], [1], [0, 0, 1, 1], [], []>} : vector<8x1024xbf16>, vector<1024x896xbf16>, vector<8x896xf32> -> vector<8x896xf32>
    %c0_61 = arith.constant 0 : index
    %c0_62 = arith.constant 0 : index
    %126 = vector.load %arg16[%c0_61, %c0_62] : memref<1x896xf32, #tpu.memory_space<vmem>>, vector<1x896xf32>
    %127 = vector.broadcast %126 : vector<1x896xf32> to vector<8x896xf32>
    %128 = arith.addf %125, %127 : vector<8x896xf32>
    %129 = math.tanh %128 : vector<8x896xf32>
    %c0_63 = arith.constant 0 : index
    %c0_64 = arith.constant 0 : index
    %130 = vector.load %arg17[%c0_63, %c0_64] : memref<8x896xf32, #tpu.memory_space<vmem>>, vector<8x896xf32>
    tpu.vector_store %arg17[%c0_63, %c0_64], %129 {strides = array<i32>} : memref<8x896xf32, #tpu.memory_space<vmem>>, vector<8x896xf32>,
    return
  }
}

</mosaic_0001>

<llo_original>
// kernel: generator_forward.1
$region0: #{generator_forward.1}
  #allocation0 [shape = 'u32[]', space=smem, size = 0x4, offset = 0x4, fixed_abs, tag = 'smem constant byte address 0x4 - core index']
  #allocation1 [shape = 'u32[144,128]{1,0:T(1,128)}', space=vmem, size = 0x12000, scoped, tag = 'internal scratch']
  %s0 = inlined_call_operand.vmem [shape: f32[8,128], index: 0, kind: input, shape index: {}]
  %s1 = inlined_call_operand.hbm [shape: bf16[128,128], index: 1, kind: input, shape index: {}]
  %s2 = inlined_call_operand.hbm [shape: f32[1,128], index: 2, kind: input, shape index: {}]
  %s3 = inlined_call_operand.hbm [shape: bf16[128,256], index: 3, kind: input, shape index: {}]
  %s4 = inlined_call_operand.hbm [shape: f32[1,256], index: 4, kind: input, shape index: {}]
  %s5 = inlined_call_operand.hbm [shape: f32[1,256], index: 5, kind: input, shape index: {}]
  %s6 = inlined_call_operand.hbm [shape: f32[1,256], index: 6, kind: input, shape index: {}]
  %s7 = inlined_call_operand.hbm [shape: bf16[256,512], index: 7, kind: input, shape index: {}]
  %s8 = inlined_call_operand.hbm [shape: f32[1,512], index: 8, kind: input, shape index: {}]
  %s9 = inlined_call_operand.hbm [shape: f32[1,512], index: 9, kind: input, shape index: {}]
  %s10 = inlined_call_operand.hbm [shape: f32[1,512], index: 10, kind: input, shape index: {}]
  %s11 = inlined_call_operand.hbm [shape: bf16[512,1024], index: 11, kind: input, shape index: {}]
  %s12 = inlined_call_operand.hbm [shape: f32[1,1024], index: 12, kind: input, shape index: {}]
  %s13 = inlined_call_operand.hbm [shape: f32[1,1024], index: 13, kind: input, shape index: {}]
  %s14 = inlined_call_operand.hbm [shape: f32[1,1024], index: 14, kind: input, shape index: {}]
  %s15 = inlined_call_operand.hbm [shape: bf16[1024,896], index: 15, kind: input, shape index: {}]
  %s16 = inlined_call_operand.hbm [shape: f32[1,896], index: 16, kind: input, shape index: {}]
  %s17 = inlined_call_operand.vmem [shape: f32[8,896], index: 17, kind: output, shape index: {}]
  %s18 = sld [smem:[#allocation0]]
  $region142: #{generator_forward.1} parent=0
    _
  %s20 = ssub.s32 1, %s18
  %s21 = scalar_select 0, %s20, %s18
  $region1: #{generator_forward.1} parent=0
    #allocation2 [shape = 'u8[32768]{0}', space=vmem, size = 0x8000, scoped, tag = 'input window, operand 1, single buffered']
    #allocation3 [shape = 's32[1]{0}', space=sflag, size = 0x4, scoped, tag = 'scoped memory for generator_forward.1']
    #allocation4 [shape = 'u8[512]{0}', space=vmem, size = 0x400, scoped, tag = 'input window, operand 2, single buffered']
    #allocation5 [shape = 's32[1]{0}', space=sflag, size = 0x4, scoped, tag = 'scoped memory for generator_forward.1']
    #allocation6 [shape = 'u8[65536]{0}', space=vmem, size = 0x10000, scoped, tag = 'input window, operand 3, single buffered']
    #allocation7 [shape = 'u8[1024]{0}', space=vmem, size = 0x400, scoped, tag = 'input window, operand 4, single buffered']
    #allocation8 [shape = 's32[1]{0}', space=sflag, size = 0x4, scoped, tag = 'scoped memory for generator_forward.1']
    #allocation9 [shape = 'u8[1024]{0}', space=vmem, size = 0x400, scoped, tag = 'input window, operand 5, single buffered']
    #allocation10 [shape = 'u8[1024]{0}', space=vmem, size = 0x400, scoped, tag = 'input window, operand 6, single buffered']
    #allocation11 [shape = 's32[1]{0}', space=sflag, size = 0x4, scoped, tag = 'scoped memory for generator_forward.1']
    #allocation12 [shape = 'u8[262144]{0}', space=vmem, size = 0x40000, scoped, tag = 'input window, operand 7, single buffered']
    #allocation13 [shape = 'u8[2048]{0}', space=vmem, size = 0x800, scoped, tag = 'input window, operand 8, single buffered']
    #allocation14 [shape = 's32[1]{0}', space=sflag, size = 0x4, scoped, tag = 'scoped memory for generator_forward.1']
    #allocation15 [shape = 'u8[2048]{0}', space=vmem, size = 0x800, scoped, tag = 'input window, operand 9, single buffered']
    #allocation16 [shape = 'u8[2048]{0}', space=vmem, size = 0x800, scoped, tag = 'input window, operand 10, single buffered']
    #allocation17 [shape = 's32[1]{0}', space=sflag, size = 0x4, scoped, tag = 'scoped memory for generator_forward.1']
    #allocation18 [shape = 'u8[1048576]{0}', space=vmem, size = 0x100000, scoped, tag = 'input window, operand 11, single buffered']
    #allocation19 [shape = 'u8[4096]{0}', space=vmem, size = 0x1000, scoped, tag = 'input window, operand 12, single buffered']
    #allocation20 [shape = 's32[1]{0}', space=sflag, size = 0x4, scoped, tag = 'scoped memory for generator_forward.1']
    #allocation21 [shape = 'u8[4096]{0}', space=vmem, size = 0x1000, scoped, tag = 'input window, operand 13, single buffered']
    #allocation22 [shape = 'u8[4096]{0}', space=vmem, size = 0x1000, scoped, tag = 'input window, operand 14, single buffered']
    #allocation23 [shape = 's32[1]{0}', space=sflag, size = 0x4, scoped, tag = 'scoped memory for generator_forward.1']
    #allocation24 [shape = 'u8[1835008]{0}', space=vmem, size = 0x1c0000, scoped, tag = 'input window, operand 15, single buffered']
    #allocation25 [shape = 'u8[3584]{0}', space=vmem, size = 0x1000, scoped, tag = 'input window, operand 16, single buffered']
    #allocation26 [shape = 's32[1]{0}', space=sflag, size = 0x4, scoped, tag = 'scoped memory for generator_forward.1']
    %22 = vsyncpa [#allocation3], 0
    %23 = vsyncpa [#allocation5], 0
    %24 = vsyncpa [#allocation8], 0
    %25 = vsyncpa [#allocation11], 0
    %26 = vsyncpa [#allocation14], 0
    %27 = vsyncpa [#allocation17], 0
    %28 = vsyncpa [#allocation20], 0
    %29 = vsyncpa [#allocation23], 0
    %30 = vsyncpa [#allocation26], 0
    // Predicated region
    $region2: #{generator_forward.1} parent=1 // pred_check
      _
    $region3: #{generator_forward.1} parent=1 // pred_check_branch
      %32 = sbr.rel (0) target = $region5
    $region4: #{generator_forward.1} parent=1 // pred_region
      _
    $region5: #{generator_forward.1} parent=1 // pred_fallthru
      _
    // Predicated region
    $region6: #{generator_forward.1} parent=1 // pred_check
      _
    $region7: #{generator_forward.1} parent=1 // pred_check_branch
      %34 = sbr.rel (0) target = $region9
    $region8: #{generator_forward.1} parent=1 // pred_region
      %s36 = ssub.s32 1024, 1024
      %37 = vsyncadd [#allocation3], %s36
      %s38 = sshll.u32 [#allocation2], 4
      %s39 = int_to_ptr.vmem [resolvable:$true] %s38
      %44 = dma.hbm_to_vmem [thread:$0]  %s1, 1024, %s39, [#allocation3], 64, 64, 4
    $region9: #{generator_forward.1} parent=1 // pred_fallthru
      _
    // Predicated region
    $region10: #{generator_forward.1} parent=1 // pred_check
      _
    $region11: #{generator_forward.1} parent=1 // pred_check_branch
      %46 = sbr.rel (0) target = $region13
    $region12: #{generator_forward.1} parent=1 // pred_region
      %s48 = ssub.s32 16, 16
      %49 = vsyncadd [#allocation5], %s48
      %s51 = sshll.u32 [#allocation4], 4
      %s52 = int_to_ptr.vmem [resolvable:$true] %s51
      %54 = dma.hbm_to_vmem [thread:$0]  %s2, 16, %s52, [#allocation5]
    $region13: #{generator_forward.1} parent=1 // pred_fallthru
      _
    // Predicated region
    $region14: #{generator_forward.1} parent=1 // pred_check
      _
    $region15: #{generator_forward.1} parent=1 // pred_check_branch
      %56 = sbr.rel (0) target = $region17
    $region16: #{generator_forward.1} parent=1 // pred_region
      %s58 = ssub.s32 2048, 2048
      %59 = vsyncadd [#allocation5], %s58
      %s60 = sshll.u32 [#allocation6], 4
      %s61 = int_to_ptr.vmem [resolvable:$true] %s60
      %66 = dma.hbm_to_vmem [thread:$0]  %s3, 2048, %s61, [#allocation5], 128, 128, 8
    $region17: #{generator_forward.1} parent=1 // pred_fallthru
      _
    // Predicated region
    $region18: #{generator_forward.1} parent=1 // pred_check
      _
    $region19: #{generator_forward.1} parent=1 // pred_check_branch
      %68 = sbr.rel (0) target = $region21
    $region20: #{generator_forward.1} parent=1 // pred_region
      %s70 = ssub.s32 32, 32
      %71 = vsyncadd [#allocation8], %s70
      %s73 = sshll.u32 [#allocation7], 4
      %s74 = int_to_ptr.vmem [resolvable:$true] %s73
      %76 = dma.hbm_to_vmem [thread:$0]  %s4, 32, %s74, [#allocation8]
    $region21: #{generator_forward.1} parent=1 // pred_fallthru
      _
    // Predicated region
    $region22: #{generator_forward.1} parent=1 // pred_check
      _
    $region23: #{generator_forward.1} parent=1 // pred_check_branch
      %78 = sbr.rel (0) target = $region25
    $region24: #{generator_forward.1} parent=1 // pred_region
      %s80 = ssub.s32 32, 32
      %81 = vsyncadd [#allocation8], %s80
      %s83 = sshll.u32 [#allocation9], 4
      %s84 = int_to_ptr.vmem [resolvable:$true] %s83
      %86 = dma.hbm_to_vmem [thread:$0]  %s5, 32, %s84, [#allocation8]
    $region25: #{generator_forward.1} parent=1 // pred_fallthru
      _
    // Predicated region
    $region26: #{generator_forward.1} parent=1 // pred_check
      _
    $region27: #{generator_forward.1} parent=1 // pred_check_branch
      %88 = sbr.rel (0) target = $region29
    $region28: #{generator_forward.1} parent=1 // pred_region
      %s90 = ssub.s32 32, 32
      %91 = vsyncadd [#allocation11], %s90
      %s93 = sshll.u32 [#allocation10], 4
      %s94 = int_to_ptr.vmem [resolvable:$true] %s93
      %96 = dma.hbm_to_vmem [thread:$0]  %s6, 32, %s94, [#allocation11]
    $region29: #{generator_forward.1} parent=1 // pred_fallthru
      _
    // Predicated region
    $region30: #{generator_forward.1} parent=1 // pred_check
      _
    $region31: #{generator_forward.1} parent=1 // pred_check_branch
      %98 = sbr.rel (0) target = $region33
    $region32: #{generator_forward.1} parent=1 // pred_region
      %s100 = ssub.s32 8192, 8192
      %101 = vsyncadd [#allocation11], %s100
      %s102 = sshll.u32 [#allocation12], 4
      %s103 = int_to_ptr.vmem [resolvable:$true] %s102
      %108 = dma.hbm_to_vmem [thread:$0]  %s7, 8192, %s103, [#allocation11], 256, 256, 16
    $region33: #{generator_forward.1} parent=1 // pred_fallthru
      _
    // Predicated region
    $region34: #{generator_forward.1} parent=1 // pred_check
      _
    $region35: #{generator_forward.1} parent=1 // pred_check_branch
      %110 = sbr.rel (0) target = $region37
    $region36: #{generator_forward.1} parent=1 // pred_region
      %s112 = ssub.s32 64, 64
      %113 = vsyncadd [#allocation14], %s112
      %s115 = sshll.u32 [#allocation13], 4
      %s116 = int_to_ptr.vmem [resolvable:$true] %s115
      %118 = dma.hbm_to_vmem [thread:$0]  %s8, 64, %s116, [#allocation14]
    $region37: #{generator_forward.1} parent=1 // pred_fallthru
      _
    // Predicated region
    $region38: #{generator_forward.1} parent=1 // pred_check
      _
    $region39: #{generator_forward.1} parent=1 // pred_check_branch
      %120 = sbr.rel (0) target = $region41
    $region40: #{generator_forward.1} parent=1 // pred_region
      %s122 = ssub.s32 64, 64
      %123 = vsyncadd [#allocation14], %s122
      %s125 = sshll.u32 [#allocation15], 4
      %s126 = int_to_ptr.vmem [resolvable:$true] %s125
      %128 = dma.hbm_to_vmem [thread:$0]  %s9, 64, %s126, [#allocation14]
    $region41: #{generator_forward.1} parent=1 // pred_fallthru
      _
    // Predicated region
    $region42: #{generator_forward.1} parent=1 // pred_check
      _
    $region43: #{generator_forward.1} parent=1 // pred_check_branch
      %130 = sbr.rel (0) target = $region45
    $region44: #{generator_forward.1} parent=1 // pred_region
      %s132 = ssub.s32 64, 64
      %133 = vsyncadd [#allocation17], %s132
      %s135 = sshll.u32 [#allocation16], 4
      %s136 = int_to_ptr.vmem [resolvable:$true] %s135
      %138 = dma.hbm_to_vmem [thread:$0]  %s10, 64, %s136, [#allocation17]
    $region45: #{generator_forward.1} parent=1 // pred_fallthru
      _
    // Predicated region
    $region46: #{generator_forward.1} parent=1 // pred_check
      _
    $region47: #{generator_forward.1} parent=1 // pred_check_branch
      %140 = sbr.rel (0) target = $region49
    $region48: #{generator_forward.1} parent=1 // pred_region
      %s142 = ssub.s32 32768, 32768
      %143 = vsyncadd [#allocation17], %s142
      %s144 = sshll.u32 [#allocation18], 4
      %s145 = int_to_ptr.vmem [resolvable:$true] %s144
      %150 = dma.hbm_to_vmem [thread:$0]  %s11, 32768, %s145, [#allocation17], 512, 512, 32
    $region49: #{generator_forward.1} parent=1 // pred_fallthru
      _
    // Predicated region
    $region50: #{generator_forward.1} parent=1 // pred_check
      _
    $region51: #{generator_forward.1} parent=1 // pred_check_branch
      %152 = sbr.rel (0) target = $region53
    $region52: #{generator_forward.1} parent=1 // pred_region
      %s154 = ssub.s32 128, 128
      %155 = vsyncadd [#allocation20], %s154
      %s157 = sshll.u32 [#allocation19], 4
      %s158 = int_to_ptr.vmem [resolvable:$true] %s157
      %160 = dma.hbm_to_vmem [thread:$0]  %s12, 128, %s158, [#allocation20]
    $region53: #{generator_forward.1} parent=1 // pred_fallthru
      _
    // Predicated region
    $region54: #{generator_forward.1} parent=1 // pred_check
      _
    $region55: #{generator_forward.1} parent=1 // pred_check_branch
      %162 = sbr.rel (0) target = $region57
    $region56: #{generator_forward.1} parent=1 // pred_region
      %s164 = ssub.s32 128, 128
      %165 = vsyncadd [#allocation20], %s164
      %s167 = sshll.u32 [#allocation21], 4
      %s168 = int_to_ptr.vmem [resolvable:$true] %s167
      %170 = dma.hbm_to_vmem [thread:$0]  %s13, 128, %s168, [#allocation20]
    $region57: #{generator_forward.1} parent=1 // pred_fallthru
      _
    // Predicated region
    $region58: #{generator_forward.1} parent=1 // pred_check
      _
    $region59: #{generator_forward.1} parent=1 // pred_check_branch
      %172 = sbr.rel (0) target = $region61
    $region60: #{generator_forward.1} parent=1 // pred_region
      %s174 = ssub.s32 128, 128
      %175 = vsyncadd [#allocation23], %s174
      %s177 = sshll.u32 [#allocation22], 4
      %s178 = int_to_ptr.vmem [resolvable:$true] %s177
      %180 = dma.hbm_to_vmem [thread:$0]  %s14, 128, %s178, [#allocation23]
    $region61: #{generator_forward.1} parent=1 // pred_fallthru
      _
    // Predicated region
    $region62: #{generator_forward.1} parent=1 // pred_check
      _
    $region63: #{generator_forward.1} parent=1 // pred_check_branch
      %182 = sbr.rel (0) target = $region65
    $region64: #{generator_forward.1} parent=1 // pred_region
      %s184 = ssub.s32 57344, 57344
      %185 = vsyncadd [#allocation23], %s184
      %s186 = sshll.u32 [#allocation24], 4
      %s187 = int_to_ptr.vmem [resolvable:$true] %s186
      %192 = dma.hbm_to_vmem [thread:$0]  %s15, 57344, %s187, [#allocation23], 448, 448, 28
    $region65: #{generator_forward.1} parent=1 // pred_fallthru
      _
    // Predicated region
    $region66: #{generator_forward.1} parent=1 // pred_check
      _
    $region67: #{generator_forward.1} parent=1 // pred_check_branch
      %194 = sbr.rel (0) target = $region69
    $region68: #{generator_forward.1} parent=1 // pred_region
      %s196 = ssub.s32 112, 112
      %197 = vsyncadd [#allocation26], %s196
      %s199 = sshll.u32 [#allocation25], 4
      %s200 = int_to_ptr.vmem [resolvable:$true] %s199
      %202 = dma.hbm_to_vmem [thread:$0]  %s16, 112, %s200, [#allocation26]
    $region69: #{generator_forward.1} parent=1 // pred_fallthru
      _
    // Predicated region
    $region70: #{generator_forward.1} parent=1 // pred_check
      _
    $region71: #{generator_forward.1} parent=1 // pred_check_branch
      %204 = sbr.rel (0) target = $region73
    $region72: #{generator_forward.1} parent=1 // pred_region
      %205 = dma.done [#allocation3], 1024
    $region73: #{generator_forward.1} parent=1 // pred_fallthru
      _
    // Predicated region
    $region74: #{generator_forward.1} parent=1 // pred_check
      _
    $region75: #{generator_forward.1} parent=1 // pred_check_branch
      %207 = sbr.rel (0) target = $region77
    $region76: #{generator_forward.1} parent=1 // pred_region
      %208 = dma.done [#allocation5], 16
    $region77: #{generator_forward.1} parent=1 // pred_fallthru
      _
    // Predicated region
    $region78: #{generator_forward.1} parent=1 // pred_check
      _
    $region79: #{generator_forward.1} parent=1 // pred_check_branch
      %210 = sbr.rel (0) target = $region81
    $region80: #{generator_forward.1} parent=1 // pred_region
      %211 = dma.done [#allocation5], 2048
    $region81: #{generator_forward.1} parent=1 // pred_fallthru
      _
    // Predicated region
    $region82: #{generator_forward.1} parent=1 // pred_check
      _
    $region83: #{generator_forward.1} parent=1 // pred_check_branch
      %213 = sbr.rel (0) target = $region85
    $region84: #{generator_forward.1} parent=1 // pred_region
      %214 = dma.done [#allocation8], 32
    $region85: #{generator_forward.1} parent=1 // pred_fallthru
      _
    // Predicated region
    $region86: #{generator_forward.1} parent=1 // pred_check
      _
    $region87: #{generator_forward.1} parent=1 // pred_check_branch
      %216 = sbr.rel (0) target = $region89
    $region88: #{generator_forward.1} parent=1 // pred_region
      %217 = dma.done [#allocation8], 32
    $region89: #{generator_forward.1} parent=1 // pred_fallthru
      _
    // Predicated region
    $region90: #{generator_forward.1} parent=1 // pred_check
      _
    $region91: #{generator_forward.1} parent=1 // pred_check_branch
      %219 = sbr.rel (0) target = $region93
    $region92: #{generator_forward.1} parent=1 // pred_region
      %220 = dma.done [#allocation11], 32
    $region93: #{generator_forward.1} parent=1 // pred_fallthru
      _
    // Predicated region
    $region94: #{generator_forward.1} parent=1 // pred_check
      _
    $region95: #{generator_forward.1} parent=1 // pred_check_branch
      %222 = sbr.rel (0) target = $region97
    $region96: #{generator_forward.1} parent=1 // pred_region
      %223 = dma.done [#allocation11], 8192
    $region97: #{generator_forward.1} parent=1 // pred_fallthru
      _
    // Predicated region
    $region98: #{generator_forward.1} parent=1 // pred_check
      _
    $region99: #{generator_forward.1} parent=1 // pred_check_branch
      %225 = sbr.rel (0) target = $region101
    $region100: #{generator_forward.1} parent=1 // pred_region
      %226 = dma.done [#allocation14], 64
    $region101: #{generator_forward.1} parent=1 // pred_fallthru
      _
    // Predicated region
    $region102: #{generator_forward.1} parent=1 // pred_check
      _
    $region103: #{generator_forward.1} parent=1 // pred_check_branch
      %228 = sbr.rel (0) target = $region105
    $region104: #{generator_forward.1} parent=1 // pred_region
      %229 = dma.done [#allocation14], 64
    $region105: #{generator_forward.1} parent=1 // pred_fallthru
      _
    // Predicated region
    $region106: #{generator_forward.1} parent=1 // pred_check
      _
    $region107: #{generator_forward.1} parent=1 // pred_check_branch
      %231 = sbr.rel (0) target = $region109
    $region108: #{generator_forward.1} parent=1 // pred_region
      %232 = dma.done [#allocation17], 64
    $region109: #{generator_forward.1} parent=1 // pred_fallthru
      _
    // Predicated region
    $region110: #{generator_forward.1} parent=1 // pred_check
      _
    $region111: #{generator_forward.1} parent=1 // pred_check_branch
      %234 = sbr.rel (0) target = $region113
    $region112: #{generator_forward.1} parent=1 // pred_region
      %235 = dma.done [#allocation17], 32768
    $region113: #{generator_forward.1} parent=1 // pred_fallthru
      _
    // Predicated region
    $region114: #{generator_forward.1} parent=1 // pred_check
      _
    $region115: #{generator_forward.1} parent=1 // pred_check_branch
      %237 = sbr.rel (0) target = $region117
    $region116: #{generator_forward.1} parent=1 // pred_region
      %238 = dma.done [#allocation20], 128
    $region117: #{generator_forward.1} parent=1 // pred_fallthru
      _
    // Predicated region
    $region118: #{generator_forward.1} parent=1 // pred_check
      _
    $region119: #{generator_forward.1} parent=1 // pred_check_branch
      %240 = sbr.rel (0) target = $region121
    $region120: #{generator_forward.1} parent=1 // pred_region
      %241 = dma.done [#allocation20], 128
    $region121: #{generator_forward.1} parent=1 // pred_fallthru
      _
    // Predicated region
    $region122: #{generator_forward.1} parent=1 // pred_check
      _
    $region123: #{generator_forward.1} parent=1 // pred_check_branch
      %243 = sbr.rel (0) target = $region125
    $region124: #{generator_forward.1} parent=1 // pred_region
      %244 = dma.done [#allocation23], 128
    $region125: #{generator_forward.1} parent=1 // pred_fallthru
      _
    // Predicated region
    $region126: #{generator_forward.1} parent=1 // pred_check
      _
    $region127: #{generator_forward.1} parent=1 // pred_check_branch
      %246 = sbr.rel (0) target = $region129
    $region128: #{generator_forward.1} parent=1 // pred_region
      %247 = dma.done [#allocation23], 57344
    $region129: #{generator_forward.1} parent=1 // pred_fallthru
      _
    // Predicated region
    $region130: #{generator_forward.1} parent=1 // pred_check
      _
    $region131: #{generator_forward.1} parent=1 // pred_check_branch
      %249 = sbr.rel (0) target = $region133
    $region132: #{generator_forward.1} parent=1 // pred_region
      %250 = dma.done [#allocation26], 112
    $region133: #{generator_forward.1} parent=1 // pred_fallthru
      _
    %v252 = vld [vmem:[%s0] sm:$0xff]
    %v253 = vpack.c.bf16 %v252, %v252
    %v254 = vld [vmem:[#allocation2] sm:$0xf]
    %v255 = vld [vmem:[#allocation2 + $0x4] sm:$0xf]
    %v256 = vld [vmem:[#allocation2 + $0x8] sm:$0xf]
    %v257 = vld [vmem:[#allocation2 + $0xc] sm:$0xf]
    %v258 = vld [vmem:[#allocation2 + $0x10] sm:$0xf]
    %v259 = vld [vmem:[#allocation2 + $0x14] sm:$0xf]
    %v260 = vld [vmem:[#allocation2 + $0x18] sm:$0xf]
    %v261 = vld [vmem:[#allocation2 + $0x1c] sm:$0xf]
    %v262 = vld [vmem:[#allocation2 + $0x20] sm:$0xf]
    %v263 = vld [vmem:[#allocation2 + $0x24] sm:$0xf]
    %v264 = vld [vmem:[#allocation2 + $0x28] sm:$0xf]
    %v265 = vld [vmem:[#allocation2 + $0x2c] sm:$0xf]
    %v266 = vld [vmem:[#allocation2 + $0x30] sm:$0xf]
    %v267 = vld [vmem:[#allocation2 + $0x34] sm:$0xf]
    %v268 = vld [vmem:[#allocation2 + $0x38] sm:$0xf]
    %v269 = vld [vmem:[#allocation2 + $0x3c] sm:$0xf]
    %v270 = vld [vmem:[#allocation4] sm:$0x1]
    %v272 = vlaneseq
    %v273 = vshrl.u32 %v272, 7
    %v274 = vsub.s32 0, %v273
    %v275 = vrot.slane %v270, %v274
    %v293 = vunpack.c.l.b16 %v254
    %v294 = vunpack.c.l.b16 %v255
    %v295 = vunpack.c.l.b16 %v256
    %v296 = vunpack.c.l.b16 %v257
    %v297 = vunpack.c.l.b16 %v258
    %v298 = vunpack.c.l.b16 %v259
    %v299 = vunpack.c.l.b16 %v260
    %v300 = vunpack.c.l.b16 %v261
    %v301 = vunpack.c.l.b16 %v262
    %v302 = vunpack.c.l.b16 %v263
    %v303 = vunpack.c.l.b16 %v264
    %v304 = vunpack.c.l.b16 %v265
    %v305 = vunpack.c.l.b16 %v266
    %v306 = vunpack.c.l.b16 %v267
    %v307 = vunpack.c.l.b16 %v268
    %v308 = vunpack.c.l.b16 %v269
    %v309 = vpack.c.b16 %v294, %v293
    %v310 = vpack.c.b16 %v296, %v295
    %v311 = vpack.c.b16 %v298, %v297
    %v312 = vpack.c.b16 %v300, %v299
    %v313 = vpack.c.b16 %v302, %v301
    %v314 = vpack.c.b16 %v304, %v303
    %v315 = vpack.c.b16 %v306, %v305
    %v316 = vpack.c.b16 %v308, %v307
    %325 = vmatprep.subr.bf16.mxu0 0
    %326 = vmatpush1.bf16.msra.mxu0 %v309
    %327 = vmatprep.subr.bf16.mxu0 0
    %328 = vmatpush1.bf16.msra.mxu0 %v310
    %329 = vmatprep.subr.bf16.mxu0 0
    %330 = vmatpush1.bf16.msra.mxu0 %v311
    %331 = vmatprep.subr.bf16.mxu0 0
    %332 = vmatpush1.bf16.msra.mxu0 %v312
    %333 = vmatprep.subr.bf16.mxu0 0
    %334 = vmatpush1.bf16.msra.mxu0 %v313
    %335 = vmatprep.subr.bf16.mxu0 0
    %336 = vmatpush1.bf16.msra.mxu0 %v314
    %337 = vmatprep.subr.bf16.mxu0 0
    %338 = vmatpush1.bf16.msra.mxu0 %v315
    %339 = vmatprep.subr.bf16.mxu0 0
    %340 = vmatpush1.bf16.msra.mxu0 %v316
    %341 = vmatprep.subr.bf16.mxu0 0
    %342 = vmatpush1.bf16.msra.mxu0 0
    %343 = vmatprep.subr.bf16.mxu0 0
    %344 = vmatpush1.bf16.msra.mxu0 0
    %345 = vmatprep.subr.bf16.mxu0 0
    %346 = vmatpush1.bf16.msra.mxu0 0
    %347 = vmatprep.subr.bf16.mxu0 0
    %348 = vmatpush1.bf16.msra.mxu0 0
    %349 = vmatprep.subr.bf16.mxu0 0
    %350 = vmatpush1.bf16.msra.mxu0 0
    %351 = vmatprep.subr.bf16.mxu0 0
    %352 = vmatpush1.bf16.msra.mxu0 0
    %353 = vmatprep.subr.bf16.mxu0 0
    %354 = vmatpush1.bf16.msra.mxu0 0
    %355 = vmatprep.subr.bf16.mxu0 0
    %356 = vmatpush1.bf16.msra.mxu0 0
    %357 = vmatprep.mubr.bf16.mxu0 0
    %358 = vmatmul.mubr.bf16.gmra.mrb[0].mxu0 %v253
    %v359 = vpop.f32.mrb[0].mxu0
    %v360 = vadd.f32 %v275, %v359
    %v361 = vpop.f32.mrb[0].mxu0
    %v362 = vpop.f32.mrb[0].mxu0
    %v363 = vpop.f32.mrb[0].mxu0
    %364 = vdwg.mxu0
    %vm365 = vcmp.gt.f32.partialorder %v360, 0.0
    %v366 = vmul.f32 %v360, 0.2
    %v367 = vsel %vm365, %v360, %v366
    %v368 = vpack.c.bf16 %v367, %v367
    %v369 = vld [vmem:[#allocation6] sm:$0xff]
    %v370 = vld [vmem:[#allocation6 + $0x8] sm:$0xff]
    %v371 = vld [vmem:[#allocation6 + $0x10] sm:$0xff]
    %v372 = vld [vmem:[#allocation6 + $0x18] sm:$0xff]
    %v373 = vld [vmem:[#allocation6 + $0x20] sm:$0xff]
    %v374 = vld [vmem:[#allocation6 + $0x28] sm:$0xff]
    %v375 = vld [vmem:[#allocation6 + $0x30] sm:$0xff]
    %v376 = vld [vmem:[#allocation6 + $0x38] sm:$0xff]
    %v377 = vld [vmem:[#allocation6 + $0x40] sm:$0xff]
    %v378 = vld [vmem:[#allocation6 + $0x48] sm:$0xff]
    %v379 = vld [vmem:[#allocation6 + $0x50] sm:$0xff]
    %v380 = vld [vmem:[#allocation6 + $0x58] sm:$0xff]
    %v381 = vld [vmem:[#allocation6 + $0x60] sm:$0xff]
    %v382 = vld [vmem:[#allocation6 + $0x68] sm:$0xff]
    %v383 = vld [vmem:[#allocation6 + $0x70] sm:$0xff]
    %v384 = vld [vmem:[#allocation6 + $0x78] sm:$0xff]
    %v385 = vld [vmem:[#allocation7] sm:$0x3]
    %v387 = vlaneseq
    %v388 = vshrl.u32 %v387, 7
    %v389 = vsub.s32 0, %v388
    %v390 = vrot.slane %v385, %v389
    %v391 = vlaneseq
    %v392 = vshrl.u32 %v391, 7
    %v393 = vsub.s32 1, %v392
    %v394 = vrot.slane %v385, %v393
    %v413 = vunpack.c.l.b16 %v369
    %v414 = vunpack.c.h.b16 %v369
    %v415 = vunpack.c.l.b16 %v370
    %v416 = vunpack.c.h.b16 %v370
    %v417 = vunpack.c.l.b16 %v371
    %v418 = vunpack.c.h.b16 %v371
    %v419 = vunpack.c.l.b16 %v372
    %v420 = vunpack.c.h.b16 %v372
    %v421 = vunpack.c.l.b16 %v373
    %v422 = vunpack.c.h.b16 %v373
    %v423 = vunpack.c.l.b16 %v374
    %v424 = vunpack.c.h.b16 %v374
    %v425 = vunpack.c.l.b16 %v375
    %v426 = vunpack.c.h.b16 %v375
    %v427 = vunpack.c.l.b16 %v376
    %v428 = vunpack.c.h.b16 %v376
    %v429 = vunpack.c.l.b16 %v377
    %v430 = vunpack.c.h.b16 %v377
    %v431 = vunpack.c.l.b16 %v378
    %v432 = vunpack.c.h.b16 %v378
    %v433 = vunpack.c.l.b16 %v379
    %v434 = vunpack.c.h.b16 %v379
    %v435 = vunpack.c.l.b16 %v380
    %v436 = vunpack.c.h.b16 %v380
    %v437 = vunpack.c.l.b16 %v381
    %v438 = vunpack.c.h.b16 %v381
    %v439 = vunpack.c.l.b16 %v382
    %v440 = vunpack.c.h.b16 %v382
    %v441 = vunpack.c.l.b16 %v383
    %v442 = vunpack.c.h.b16 %v383
    %v443 = vunpack.c.l.b16 %v384
    %v444 = vunpack.c.h.b16 %v384
    %v445 = vpack.c.b16 %v415, %v413
    %v446 = vpack.c.b16 %v416, %v414
    %v447 = vpack.c.b16 %v419, %v417
    %v448 = vpack.c.b16 %v420, %v418
    %v449 = vpack.c.b16 %v423, %v421
    %v450 = vpack.c.b16 %v424, %v422
    %v451 = vpack.c.b16 %v427, %v425
    %v452 = vpack.c.b16 %v428, %v426
    %v453 = vpack.c.b16 %v431, %v429
    %v454 = vpack.c.b16 %v432, %v430
    %v455 = vpack.c.b16 %v435, %v433
    %v456 = vpack.c.b16 %v436, %v434
    %v457 = vpack.c.b16 %v439, %v437
    %v458 = vpack.c.b16 %v440, %v438
    %v459 = vpack.c.b16 %v443, %v441
    %v460 = vpack.c.b16 %v444, %v442
    %477 = vmatprep.subr.bf16.mxu0 %v446
    %478 = vmatpush1.bf16.msra.mxu0 %v445
    %479 = vmatprep.subr.bf16.mxu0 %v448
    %480 = vmatpush1.bf16.msra.mxu0 %v447
    %481 = vmatprep.subr.bf16.mxu0 %v450
    %482 = vmatpush1.bf16.msra.mxu0 %v449
    %483 = vmatprep.subr.bf16.mxu0 %v452
    %484 = vmatpush1.bf16.msra.mxu0 %v451
    %485 = vmatprep.subr.bf16.mxu0 %v454
    %486 = vmatpush1.bf16.msra.mxu0 %v453
    %487 = vmatprep.subr.bf16.mxu0 %v456
    %488 = vmatpush1.bf16.msra.mxu0 %v455
    %489 = vmatprep.subr.bf16.mxu0 %v458
    %490 = vmatpush1.bf16.msra.mxu0 %v457
    %491 = vmatprep.subr.bf16.mxu0 %v460
    %492 = vmatpush1.bf16.msra.mxu0 %v459
    %493 = vmatprep.subr.bf16.mxu0 0
    %494 = vmatpush1.bf16.msra.mxu0 0
    %495 = vmatprep.subr.bf16.mxu0 0
    %496 = vmatpush1.bf16.msra.mxu0 0
    %497 = vmatprep.subr.bf16.mxu0 0
    %498 = vmatpush1.bf16.msra.mxu0 0
    %499 = vmatprep.subr.bf16.mxu0 0
    %500 = vmatpush1.bf16.msra.mxu0 0
    %501 = vmatprep.subr.bf16.mxu0 0
    %502 = vmatpush1.bf16.msra.mxu0 0
    %503 = vmatprep.subr.bf16.mxu0 0
    %504 = vmatpush1.bf16.msra.mxu0 0
    %505 = vmatprep.subr.bf16.mxu0 0
    %506 = vmatpush1.bf16.msra.mxu0 0
    %507 = vmatprep.subr.bf16.mxu0 0
    %508 = vmatpush1.bf16.msra.mxu0 0
    %509 = vmatprep.mubr.bf16.mxu0 0
    %510 = vmatmul.mubr.bf16.gmra.mrb[0].mxu0 %v368
    %v511 = vpop.f32.mrb[0].mxu0
    %v512 = vadd.f32 %v390, %v511
    %v513 = vpop.f32.mrb[0].mxu0
    %v514 = vadd.f32 %v394, %v513
    %v515 = vpop.f32.mrb[0].mxu0
    %v516 = vpop.f32.mrb[0].mxu0
    %517 = vdwg.mxu0
    %v518 = vrot.slane %v512, 4
    %v519 = vadd.f32 %v512, %v518
    %v520 = vrot.slane %v519, 2
    %v521 = vadd.f32 %v519, %v520
    %v522 = vrot.slane %v521, 1
    %v523 = vadd.f32 %v521, %v522
    %v524 = vrot.slane %v514, 4
    %v525 = vadd.f32 %v514, %v524
    %v526 = vrot.slane %v525, 2
    %v527 = vadd.f32 %v525, %v526
    %v528 = vrot.slane %v527, 1
    %v529 = vadd.f32 %v527, %v528
    %v530 = vmul.f32 %v512, %v512
    %v531 = vmul.f32 %v514, %v514
    %v532 = vrot.slane %v530, 4
    %v533 = vadd.f32 %v530, %v532
    %v534 = vrot.slane %v533, 2
    %v535 = vadd.f32 %v533, %v534
    %v536 = vrot.slane %v535, 1
    %v537 = vadd.f32 %v535, %v536
    %v538 = vrot.slane %v531, 4
    %v539 = vadd.f32 %v531, %v538
    %v540 = vrot.slane %v539, 2
    %v541 = vadd.f32 %v539, %v540
    %v542 = vrot.slane %v541, 1
    %v543 = vadd.f32 %v541, %v542
    %v544 = vmul.f32 %v523, 0.125
    %v545 = vmul.f32 %v529, 0.125
    %v546 = vmul.f32 %v537, 0.125
    %v547 = vmul.f32 %v543, 0.125
    %v548 = vmul.f32 %v544, %v544
    %v549 = vmul.f32 %v545, %v545
    %v550 = vsub.f32 %v546, %v548
    %v551 = vsub.f32 %v547, %v549
    %v552 = vmax.f32 %v550, 0.0
    %v553 = vmax.f32 %v551, 0.0
    %v554 = vsub.f32 %v512, %v544
    %v555 = vsub.f32 %v514, %v545
    %v556 = vadd.f32 %v552, 1e-05
    %v557 = vadd.f32 %v553, 1e-05
    %v558 = vrsqrt.pop %v556
    %v559 = vrsqrt.pop %v557
    %v560 = vmul.f32 %v554, %v558
    %v561 = vmul.f32 %v555, %v559
    %v562 = vld [vmem:[#allocation9] sm:$0x3]
    %v564 = vlaneseq
    %v565 = vshrl.u32 %v564, 7
    %v566 = vsub.s32 0, %v565
    %v567 = vrot.slane %v562, %v566
    %v568 = vlaneseq
    %v569 = vshrl.u32 %v568, 7
    %v570 = vsub.s32 1, %v569
    %v571 = vrot.slane %v562, %v570
    %v574 = vmul.f32 %v560, %v567
    %v575 = vmul.f32 %v561, %v571
    %v576 = vld [vmem:[#allocation10] sm:$0x3]
    %v578 = vlaneseq
    %v579 = vshrl.u32 %v578, 7
    %v580 = vsub.s32 0, %v579
    %v581 = vrot.slane %v576, %v580
    %v582 = vlaneseq
    %v583 = vshrl.u32 %v582, 7
    %v584 = vsub.s32 1, %v583
    %v585 = vrot.slane %v576, %v584
    %v588 = vadd.f32 %v574, %v581
    %v589 = vadd.f32 %v575, %v585
    %vm590 = vcmp.gt.f32.partialorder %v588, 0.0
    %vm591 = vcmp.gt.f32.partialorder %v589, 0.0
    %v592 = vmul.f32 %v588, 0.2
    %v593 = vmul.f32 %v589, 0.2
    %v594 = vsel %vm590, %v588, %v592
    %v595 = vsel %vm591, %v589, %v593
    %v596 = vpack.c.bf16 %v594, %v594
    %v597 = vpack.c.bf16 %v595, %v595
    %v598 = vld [vmem:[#allocation12] sm:$0xff]
    %v599 = vld [vmem:[#allocation12 + $0x8] sm:$0xff]
    %v600 = vld [vmem:[#allocation12 + $0x10] sm:$0xff]
    %v601 = vld [vmem:[#allocation12 + $0x18] sm:$0xff]
    %v602 = vld [vmem:[#allocation12 + $0x20] sm:$0xff]
    %v603 = vld [vmem:[#allocation12 + $0x28] sm:$0xff]
    %v604 = vld [vmem:[#allocation12 + $0x30] sm:$0xff]
    %v605 = vld [vmem:[#allocation12 + $0x38] sm:$0xff]
    %v606 = vld [vmem:[#allocation12 + $0x40] sm:$0xff]
    %v607 = vld [vmem:[#allocation12 + $0x48] sm:$0xff]
    %v608 = vld [vmem:[#allocation12 + $0x50] sm:$0xff]
    %v609 = vld [vmem:[#allocation12 + $0x58] sm:$0xff]
    %v610 = vld [vmem:[#allocation12 + $0x60] sm:$0xff]
    %v611 = vld [vmem:[#allocation12 + $0x68] sm:$0xff]
    %v612 = vld [vmem:[#allocation12 + $0x70] sm:$0xff]
    %v613 = vld [vmem:[#allocation12 + $0x78] sm:$0xff]
    %v614 = vld [vmem:[#allocation12 + $0x80] sm:$0xff]
    %v615 = vld [vmem:[#allocation12 + $0x88] sm:$0xff]
    %v616 = vld [vmem:[#allocation12 + $0x90] sm:$0xff]
    %v617 = vld [vmem:[#allocation12 + $0x98] sm:$0xff]
    %v618 = vld [vmem:[#allocation12 + $0xa0] sm:$0xff]
    %v619 = vld [vmem:[#allocation12 + $0xa8] sm:$0xff]
    %v620 = vld [vmem:[#allocation12 + $0xb0] sm:$0xff]
    %v621 = vld [vmem:[#allocation12 + $0xb8] sm:$0xff]
    %v622 = vld [vmem:[#allocation12 + $0xc0] sm:$0xff]
    %v623 = vld [vmem:[#allocation12 + $0xc8] sm:$0xff]
    %v624 = vld [vmem:[#allocation12 + $0xd0] sm:$0xff]
    %v625 = vld [vmem:[#allocation12 + $0xd8] sm:$0xff]
    %v626 = vld [vmem:[#allocation12 + $0xe0] sm:$0xff]
    %v627 = vld [vmem:[#allocation12 + $0xe8] sm:$0xff]
    %v628 = vld [vmem:[#allocation12 + $0xf0] sm:$0xff]
    %v629 = vld [vmem:[#allocation12 + $0xf8] sm:$0xff]
    %v630 = vld [vmem:[#allocation12 + $0x100] sm:$0xff]
    %v631 = vld [vmem:[#allocation12 + $0x108] sm:$0xff]
    %v632 = vld [vmem:[#allocation12 + $0x110] sm:$0xff]
    %v633 = vld [vmem:[#allocation12 + $0x118] sm:$0xff]
    %v634 = vld [vmem:[#allocation12 + $0x120] sm:$0xff]
    %v635 = vld [vmem:[#allocation12 + $0x128] sm:$0xff]
    %v636 = vld [vmem:[#allocation12 + $0x130] sm:$0xff]
    %v637 = vld [vmem:[#allocation12 + $0x138] sm:$0xff]
    %v638 = vld [vmem:[#allocation12 + $0x140] sm:$0xff]
    %v639 = vld [vmem:[#allocation12 + $0x148] sm:$0xff]
    %v640 = vld [vmem:[#allocation12 + $0x150] sm:$0xff]
    %v641 = vld [vmem:[#allocation12 + $0x158] sm:$0xff]
    %v642 = vld [vmem:[#allocation12 + $0x160] sm:$0xff]
    %v643 = vld [vmem:[#allocation12 + $0x168] sm:$0xff]
    %v644 = vld [vmem:[#allocation12 + $0x170] sm:$0xff]
    %v645 = vld [vmem:[#allocation12 + $0x178] sm:$0xff]
    %v646 = vld [vmem:[#allocation12 + $0x180] sm:$0xff]
    %v647 = vld [vmem:[#allocation12 + $0x188] sm:$0xff]
    %v648 = vld [vmem:[#allocation12 + $0x190] sm:$0xff]
    %v649 = vld [vmem:[#allocation12 + $0x198] sm:$0xff]
    %v650 = vld [vmem:[#allocation12 + $0x1a0] sm:$0xff]
    %v651 = vld [vmem:[#allocation12 + $0x1a8] sm:$0xff]
    %v652 = vld [vmem:[#allocation12 + $0x1b0] sm:$0xff]
    %v653 = vld [vmem:[#allocation12 + $0x1b8] sm:$0xff]
    %v654 = vld [vmem:[#allocation12 + $0x1c0] sm:$0xff]
    %v655 = vld [vmem:[#allocation12 + $0x1c8] sm:$0xff]
    %v656 = vld [vmem:[#allocation12 + $0x1d0] sm:$0xff]
    %v657 = vld [vmem:[#allocation12 + $0x1d8] sm:$0xff]
    %v658 = vld [vmem:[#allocation12 + $0x1e0] sm:$0xff]
    %v659 = vld [vmem:[#allocation12 + $0x1e8] sm:$0xff]
    %v660 = vld [vmem:[#allocation12 + $0x1f0] sm:$0xff]
    %v661 = vld [vmem:[#allocation12 + $0x1f8] sm:$0xff]
    %v662 = vld [vmem:[#allocation13] sm:$0xf]
    %v664 = vlaneseq
    %v665 = vshrl.u32 %v664, 7
    %v666 = vsub.s32 0, %v665
    %v667 = vrot.slane %v662, %v666
    %v668 = vlaneseq
    %v669 = vshrl.u32 %v668, 7
    %v670 = vsub.s32 1, %v669
    %v671 = vrot.slane %v662, %v670
    %v672 = vlaneseq
    %v673 = vshrl.u32 %v672, 7
    %v674 = vsub.s32 2, %v673
    %v675 = vrot.slane %v662, %v674
    %v676 = vlaneseq
    %v677 = vshrl.u32 %v676, 7
    %v678 = vsub.s32 3, %v677
    %v679 = vrot.slane %v662, %v678
    %v748 = vunpack.c.l.b16 %v598
    %v749 = vunpack.c.h.b16 %v598
    %v750 = vunpack.c.l.b16 %v599
    %v751 = vunpack.c.h.b16 %v599
    %v752 = vunpack.c.l.b16 %v600
    %v753 = vunpack.c.h.b16 %v600
    %v754 = vunpack.c.l.b16 %v601
    %v755 = vunpack.c.h.b16 %v601
    %v756 = vunpack.c.l.b16 %v602
    %v757 = vunpack.c.h.b16 %v602
    %v758 = vunpack.c.l.b16 %v603
    %v759 = vunpack.c.h.b16 %v603
    %v760 = vunpack.c.l.b16 %v604
    %v761 = vunpack.c.h.b16 %v604
    %v762 = vunpack.c.l.b16 %v605
    %v763 = vunpack.c.h.b16 %v605
    %v764 = vunpack.c.l.b16 %v606
    %v765 = vunpack.c.h.b16 %v606
    %v766 = vunpack.c.l.b16 %v607
    %v767 = vunpack.c.h.b16 %v607
    %v768 = vunpack.c.l.b16 %v608
    %v769 = vunpack.c.h.b16 %v608
    %v770 = vunpack.c.l.b16 %v609
    %v771 = vunpack.c.h.b16 %v609
    %v772 = vunpack.c.l.b16 %v610
    %v773 = vunpack.c.h.b16 %v610
    %v774 = vunpack.c.l.b16 %v611
    %v775 = vunpack.c.h.b16 %v611
    %v776 = vunpack.c.l.b16 %v612
    %v777 = vunpack.c.h.b16 %v612
    %v778 = vunpack.c.l.b16 %v613
    %v779 = vunpack.c.h.b16 %v613
    %v780 = vunpack.c.l.b16 %v614
    %v781 = vunpack.c.h.b16 %v614
    %v782 = vunpack.c.l.b16 %v615
    %v783 = vunpack.c.h.b16 %v615
    %v784 = vunpack.c.l.b16 %v616
    %v785 = vunpack.c.h.b16 %v616
    %v786 = vunpack.c.l.b16 %v617
    %v787 = vunpack.c.h.b16 %v617
    %v788 = vunpack.c.l.b16 %v618
    %v789 = vunpack.c.h.b16 %v618
    %v790 = vunpack.c.l.b16 %v619
    %v791 = vunpack.c.h.b16 %v619
    %v792 = vunpack.c.l.b16 %v620
    %v793 = vunpack.c.h.b16 %v620
    %v794 = vunpack.c.l.b16 %v621
    %v795 = vunpack.c.h.b16 %v621
    %v796 = vunpack.c.l.b16 %v622
    %v797 = vunpack.c.h.b16 %v622
    %v798 = vunpack.c.l.b16 %v623
    %v799 = vunpack.c.h.b16 %v623
    %v800 = vunpack.c.l.b16 %v624
    %v801 = vunpack.c.h.b16 %v624
    %v802 = vunpack.c.l.b16 %v625
    %v803 = vunpack.c.h.b16 %v625
    %v804 = vunpack.c.l.b16 %v626
    %v805 = vunpack.c.h.b16 %v626
    %v806 = vunpack.c.l.b16 %v627
    %v807 = vunpack.c.h.b16 %v627
    %v808 = vunpack.c.l.b16 %v628
    %v809 = vunpack.c.h.b16 %v628
    %v810 = vunpack.c.l.b16 %v629
    %v811 = vunpack.c.h.b16 %v629
    %v812 = vunpack.c.l.b16 %v630
    %v813 = vunpack.c.h.b16 %v630
    %v814 = vunpack.c.l.b16 %v631
    %v815 = vunpack.c.h.b16 %v631
    %v816 = vunpack.c.l.b16 %v632
    %v817 = vunpack.c.h.b16 %v632
    %v818 = vunpack.c.l.b16 %v633
    %v819 = vunpack.c.h.b16 %v633
    %v820 = vunpack.c.l.b16 %v634
    %v821 = vunpack.c.h.b16 %v634
    %v822 = vunpack.c.l.b16 %v635
    %v823 = vunpack.c.h.b16 %v635
    %v824 = vunpack.c.l.b16 %v636
    %v825 = vunpack.c.h.b16 %v636
    %v826 = vunpack.c.l.b16 %v637
    %v827 = vunpack.c.h.b16 %v637
    %v828 = vunpack.c.l.b16 %v638
    %v829 = vunpack.c.h.b16 %v638
    %v830 = vunpack.c.l.b16 %v639
    %v831 = vunpack.c.h.b16 %v639
    %v832 = vunpack.c.l.b16 %v640
    %v833 = vunpack.c.h.b16 %v640
    %v834 = vunpack.c.l.b16 %v641
    %v835 = vunpack.c.h.b16 %v641
    %v836 = vunpack.c.l.b16 %v642
    %v837 = vunpack.c.h.b16 %v642
    %v838 = vunpack.c.l.b16 %v643
    %v839 = vunpack.c.h.b16 %v643
    %v840 = vunpack.c.l.b16 %v644
    %v841 = vunpack.c.h.b16 %v644
    %v842 = vunpack.c.l.b16 %v645
    %v843 = vunpack.c.h.b16 %v645
    %v844 = vunpack.c.l.b16 %v646
    %v845 = vunpack.c.h.b16 %v646
    %v846 = vunpack.c.l.b16 %v647
    %v847 = vunpack.c.h.b16 %v647
    %v848 = vunpack.c.l.b16 %v648
    %v849 = vunpack.c.h.b16 %v648
    %v850 = vunpack.c.l.b16 %v649
    %v851 = vunpack.c.h.b16 %v649
    %v852 = vunpack.c.l.b16 %v650
    %v853 = vunpack.c.h.b16 %v650
    %v854 = vunpack.c.l.b16 %v651
    %v855 = vunpack.c.h.b16 %v651
    %v856 = vunpack.c.l.b16 %v652
    %v857 = vunpack.c.h.b16 %v652
    %v858 = vunpack.c.l.b16 %v653
    %v859 = vunpack.c.h.b16 %v653
    %v860 = vunpack.c.l.b16 %v654
    %v861 = vunpack.c.h.b16 %v654
    %v862 = vunpack.c.l.b16 %v655
    %v863 = vunpack.c.h.b16 %v655
    %v864 = vunpack.c.l.b16 %v656
    %v865 = vunpack.c.h.b16 %v656
    %v866 = vunpack.c.l.b16 %v657
    %v867 = vunpack.c.h.b16 %v657
    %v868 = vunpack.c.l.b16 %v658
    %v869 = vunpack.c.h.b16 %v658
    %v870 = vunpack.c.l.b16 %v659
    %v871 = vunpack.c.h.b16 %v659
    %v872 = vunpack.c.l.b16 %v660
    %v873 = vunpack.c.h.b16 %v660
    %v874 = vunpack.c.l.b16 %v661
    %v875 = vunpack.c.h.b16 %v661
    %v876 = vpack.c.b16 %v752, %v748
    %v877 = vpack.c.b16 %v753, %v749
    %v878 = vpack.c.b16 %v754, %v750
    %v879 = vpack.c.b16 %v755, %v751
    %v880 = vpack.c.b16 %v760, %v756
    %v881 = vpack.c.b16 %v761, %v757
    %v882 = vpack.c.b16 %v762, %v758
    %v883 = vpack.c.b16 %v763, %v759
    %v884 = vpack.c.b16 %v768, %v764
    %v885 = vpack.c.b16 %v769, %v765
    %v886 = vpack.c.b16 %v770, %v766
    %v887 = vpack.c.b16 %v771, %v767
    %v888 = vpack.c.b16 %v776, %v772
    %v889 = vpack.c.b16 %v777, %v773
    %v890 = vpack.c.b16 %v778, %v774
    %v891 = vpack.c.b16 %v779, %v775
    %v892 = vpack.c.b16 %v784, %v780
    %v893 = vpack.c.b16 %v785, %v781
    %v894 = vpack.c.b16 %v786, %v782
    %v895 = vpack.c.b16 %v787, %v783
    %v896 = vpack.c.b16 %v792, %v788
    %v897 = vpack.c.b16 %v793, %v789
    %v898 = vpack.c.b16 %v794, %v790
    %v899 = vpack.c.b16 %v795, %v791
    %v900 = vpack.c.b16 %v800, %v796
    %v901 = vpack.c.b16 %v801, %v797
    %v902 = vpack.c.b16 %v802, %v798
    %v903 = vpack.c.b16 %v803, %v799
    %v904 = vpack.c.b16 %v808, %v804
    %v905 = vpack.c.b16 %v809, %v805
    %v906 = vpack.c.b16 %v810, %v806
    %v907 = vpack.c.b16 %v811, %v807
    %v908 = vpack.c.b16 %v816, %v812
    %v909 = vpack.c.b16 %v817, %v813
    %v910 = vpack.c.b16 %v818, %v814
    %v911 = vpack.c.b16 %v819, %v815
    %v912 = vpack.c.b16 %v824, %v820
    %v913 = vpack.c.b16 %v825, %v821
    %v914 = vpack.c.b16 %v826, %v822
    %v915 = vpack.c.b16 %v827, %v823
    %v916 = vpack.c.b16 %v832, %v828
    %v917 = vpack.c.b16 %v833, %v829
    %v918 = vpack.c.b16 %v834, %v830
    %v919 = vpack.c.b16 %v835, %v831
    %v920 = vpack.c.b16 %v840, %v836
    %v921 = vpack.c.b16 %v841, %v837
    %v922 = vpack.c.b16 %v842, %v838
    %v923 = vpack.c.b16 %v843, %v839
    %v924 = vpack.c.b16 %v848, %v844
    %v925 = vpack.c.b16 %v849, %v845
    %v926 = vpack.c.b16 %v850, %v846
    %v927 = vpack.c.b16 %v851, %v847
    %v928 = vpack.c.b16 %v856, %v852
    %v929 = vpack.c.b16 %v857, %v853
    %v930 = vpack.c.b16 %v858, %v854
    %v931 = vpack.c.b16 %v859, %v855
    %v932 = vpack.c.b16 %v864, %v860
    %v933 = vpack.c.b16 %v865, %v861
    %v934 = vpack.c.b16 %v866, %v862
    %v935 = vpack.c.b16 %v867, %v863
    %v936 = vpack.c.b16 %v872, %v868
    %v937 = vpack.c.b16 %v873, %v869
    %v938 = vpack.c.b16 %v874, %v870
    %v939 = vpack.c.b16 %v875, %v871
    %1004 = vmatprep.subr.bf16.mxu0 %v877
    %1005 = vmatpush1.bf16.msra.mxu0 %v876
    %1006 = vmatprep.subr.bf16.mxu0 %v881
    %1007 = vmatpush1.bf16.msra.mxu0 %v880
    %1008 = vmatprep.subr.bf16.mxu0 %v885
    %1009 = vmatpush1.bf16.msra.mxu0 %v884
    %1010 = vmatprep.subr.bf16.mxu0 %v889
    %1011 = vmatpush1.bf16.msra.mxu0 %v888
    %1012 = vmatprep.subr.bf16.mxu0 %v893
    %1013 = vmatpush1.bf16.msra.mxu0 %v892
    %1014 = vmatprep.subr.bf16.mxu0 %v897
    %1015 = vmatpush1.bf16.msra.mxu0 %v896
    %1016 = vmatprep.subr.bf16.mxu0 %v901
    %1017 = vmatpush1.bf16.msra.mxu0 %v900
    %1018 = vmatprep.subr.bf16.mxu0 %v905
    %1019 = vmatpush1.bf16.msra.mxu0 %v904
    %1020 = vmatprep.subr.bf16.mxu0 %v909
    %1021 = vmatpush1.bf16.msra.mxu0 %v908
    %1022 = vmatprep.subr.bf16.mxu0 %v913
    %1023 = vmatpush1.bf16.msra.mxu0 %v912
    %1024 = vmatprep.subr.bf16.mxu0 %v917
    %1025 = vmatpush1.bf16.msra.mxu0 %v916
    %1026 = vmatprep.subr.bf16.mxu0 %v921
    %1027 = vmatpush1.bf16.msra.mxu0 %v920
    %1028 = vmatprep.subr.bf16.mxu0 %v925
    %1029 = vmatpush1.bf16.msra.mxu0 %v924
    %1030 = vmatprep.subr.bf16.mxu0 %v929
    %1031 = vmatpush1.bf16.msra.mxu0 %v928
    %1032 = vmatprep.subr.bf16.mxu0 %v933
    %1033 = vmatpush1.bf16.msra.mxu0 %v932
    %1034 = vmatprep.subr.bf16.mxu0 %v937
    %1035 = vmatpush1.bf16.msra.mxu0 %v936
    %1036 = vmatprep.mubr.bf16.mxu0 %v597
    %1037 = vmatmul.mubr.bf16.gmra.mrb[0].mxu0 %v596
    %v1038 = vpop.f32.mrb[0].mxu0
    %v1039 = vadd.f32 %v667, %v1038
    %v1040 = vpop.f32.mrb[0].mxu0
    %v1041 = vadd.f32 %v671, %v1040
    %v1042 = vpop.f32.mrb[0].mxu0
    %v1043 = vpop.f32.mrb[0].mxu0
    %1044 = vdwg.mxu0
    %1045 = vmatprep.subr.bf16.mxu0 %v879
    %1046 = vmatpush1.bf16.msra.mxu0 %v878
    %1047 = vmatprep.subr.bf16.mxu0 %v883
    %1048 = vmatpush1.bf16.msra.mxu0 %v882
    %1049 = vmatprep.subr.bf16.mxu0 %v887
    %1050 = vmatpush1.bf16.msra.mxu0 %v886
    %1051 = vmatprep.subr.bf16.mxu0 %v891
    %1052 = vmatpush1.bf16.msra.mxu0 %v890
    %1053 = vmatprep.subr.bf16.mxu0 %v895
    %1054 = vmatpush1.bf16.msra.mxu0 %v894
    %1055 = vmatprep.subr.bf16.mxu0 %v899
    %1056 = vmatpush1.bf16.msra.mxu0 %v898
    %1057 = vmatprep.subr.bf16.mxu0 %v903
    %1058 = vmatpush1.bf16.msra.mxu0 %v902
    %1059 = vmatprep.subr.bf16.mxu0 %v907
    %1060 = vmatpush1.bf16.msra.mxu0 %v906
    %1061 = vmatprep.subr.bf16.mxu0 %v911
    %1062 = vmatpush1.bf16.msra.mxu0 %v910
    %1063 = vmatprep.subr.bf16.mxu0 %v915
    %1064 = vmatpush1.bf16.msra.mxu0 %v914
    %1065 = vmatprep.subr.bf16.mxu0 %v919
    %1066 = vmatpush1.bf16.msra.mxu0 %v918
    %1067 = vmatprep.subr.bf16.mxu0 %v923
    %1068 = vmatpush1.bf16.msra.mxu0 %v922
    %1069 = vmatprep.subr.bf16.mxu0 %v927
    %1070 = vmatpush1.bf16.msra.mxu0 %v926
    %1071 = vmatprep.subr.bf16.mxu0 %v931
    %1072 = vmatpush1.bf16.msra.mxu0 %v930
    %1073 = vmatprep.subr.bf16.mxu0 %v935
    %1074 = vmatpush1.bf16.msra.mxu0 %v934
    %1075 = vmatprep.subr.bf16.mxu0 %v939
    %1076 = vmatpush1.bf16.msra.mxu0 %v938
    %1077 = vmatprep.mubr.bf16.mxu0 %v597
    %1078 = vmatmul.mubr.bf16.gmra.mrb[0].mxu0 %v596
    %v1079 = vpop.f32.mrb[0].mxu0
    %v1080 = vadd.f32 %v675, %v1079
    %v1081 = vpop.f32.mrb[0].mxu0
    %v1082 = vadd.f32 %v679, %v1081
    %v1083 = vpop.f32.mrb[0].mxu0
    %v1084 = vpop.f32.mrb[0].mxu0
    %1085 = vdwg.mxu0
    %v1086 = vrot.slane %v1039, 4
    %v1087 = vadd.f32 %v1039, %v1086
    %v1088 = vrot.slane %v1087, 2
    %v1089 = vadd.f32 %v1087, %v1088
    %v1090 = vrot.slane %v1089, 1
    %v1091 = vadd.f32 %v1089, %v1090
    %v1092 = vrot.slane %v1041, 4
    %v1093 = vadd.f32 %v1041, %v1092
    %v1094 = vrot.slane %v1093, 2
    %v1095 = vadd.f32 %v1093, %v1094
    %v1096 = vrot.slane %v1095, 1
    %v1097 = vadd.f32 %v1095, %v1096
    %v1098 = vrot.slane %v1080, 4
    %v1099 = vadd.f32 %v1080, %v1098
    %v1100 = vrot.slane %v1099, 2
    %v1101 = vadd.f32 %v1099, %v1100
    %v1102 = vrot.slane %v1101, 1
    %v1103 = vadd.f32 %v1101, %v1102
    %v1104 = vrot.slane %v1082, 4
    %v1105 = vadd.f32 %v1082, %v1104
    %v1106 = vrot.slane %v1105, 2
    %v1107 = vadd.f32 %v1105, %v1106
    %v1108 = vrot.slane %v1107, 1
    %v1109 = vadd.f32 %v1107, %v1108
    %v1110 = vmul.f32 %v1039, %v1039
    %v1111 = vmul.f32 %v1041, %v1041
    %v1112 = vmul.f32 %v1080, %v1080
    %v1113 = vmul.f32 %v1082, %v1082
    %v1114 = vrot.slane %v1110, 4
    %v1115 = vadd.f32 %v1110, %v1114
    %v1116 = vrot.slane %v1115, 2
    %v1117 = vadd.f32 %v1115, %v1116
    %v1118 = vrot.slane %v1117, 1
    %v1119 = vadd.f32 %v1117, %v1118
    %v1120 = vrot.slane %v1111, 4
    %v1121 = vadd.f32 %v1111, %v1120
    %v1122 = vrot.slane %v1121, 2
    %v1123 = vadd.f32 %v1121, %v1122
    %v1124 = vrot.slane %v1123, 1
    %v1125 = vadd.f32 %v1123, %v1124
    %v1126 = vrot.slane %v1112, 4
    %v1127 = vadd.f32 %v1112, %v1126
    %v1128 = vrot.slane %v1127, 2
    %v1129 = vadd.f32 %v1127, %v1128
    %v1130 = vrot.slane %v1129, 1
    %v1131 = vadd.f32 %v1129, %v1130
    %v1132 = vrot.slane %v1113, 4
    %v1133 = vadd.f32 %v1113, %v1132
    %v1134 = vrot.slane %v1133, 2
    %v1135 = vadd.f32 %v1133, %v1134
    %v1136 = vrot.slane %v1135, 1
    %v1137 = vadd.f32 %v1135, %v1136
    %v1138 = vmul.f32 %v1091, 0.125
    %v1139 = vmul.f32 %v1097, 0.125
    %v1140 = vmul.f32 %v1103, 0.125
    %v1141 = vmul.f32 %v1109, 0.125
    %v1142 = vmul.f32 %v1119, 0.125
    %v1143 = vmul.f32 %v1125, 0.125
    %v1144 = vmul.f32 %v1131, 0.125
    %v1145 = vmul.f32 %v1137, 0.125
    %v1146 = vmul.f32 %v1138, %v1138
    %v1147 = vmul.f32 %v1139, %v1139
    %v1148 = vmul.f32 %v1140, %v1140
    %v1149 = vmul.f32 %v1141, %v1141
    %v1150 = vsub.f32 %v1142, %v1146
    %v1151 = vsub.f32 %v1143, %v1147
    %v1152 = vsub.f32 %v1144, %v1148
    %v1153 = vsub.f32 %v1145, %v1149
    %v1154 = vmax.f32 %v1150, 0.0
    %v1155 = vmax.f32 %v1151, 0.0
    %v1156 = vmax.f32 %v1152, 0.0
    %v1157 = vmax.f32 %v1153, 0.0
    %v1158 = vsub.f32 %v1039, %v1138
    %v1159 = vsub.f32 %v1041, %v1139
    %v1160 = vsub.f32 %v1080, %v1140
    %v1161 = vsub.f32 %v1082, %v1141
    %v1162 = vadd.f32 %v1154, 1e-05
    %v1163 = vadd.f32 %v1155, 1e-05
    %v1164 = vadd.f32 %v1156, 1e-05
    %v1165 = vadd.f32 %v1157, 1e-05
    %v1166 = vrsqrt.pop %v1162
    %v1167 = vrsqrt.pop %v1163
    %v1168 = vrsqrt.pop %v1164
    %v1169 = vrsqrt.pop %v1165
    %v1170 = vmul.f32 %v1158, %v1166
    %v1171 = vmul.f32 %v1159, %v1167
    %v1172 = vmul.f32 %v1160, %v1168
    %v1173 = vmul.f32 %v1161, %v1169
    %v1174 = vld [vmem:[#allocation15] sm:$0xf]
    %v1176 = vlaneseq
    %v1177 = vshrl.u32 %v1176, 7
    %v1178 = vsub.s32 0, %v1177
    %v1179 = vrot.slane %v1174, %v1178
    %v1180 = vlaneseq
    %v1181 = vshrl.u32 %v1180, 7
    %v1182 = vsub.s32 1, %v1181
    %v1183 = vrot.slane %v1174, %v1182
    %v1184 = vlaneseq
    %v1185 = vshrl.u32 %v1184, 7
    %v1186 = vsub.s32 2, %v1185
    %v1187 = vrot.slane %v1174, %v1186
    %v1188 = vlaneseq
    %v1189 = vshrl.u32 %v1188, 7
    %v1190 = vsub.s32 3, %v1189
    %v1191 = vrot.slane %v1174, %v1190
    %v1196 = vmul.f32 %v1170, %v1179
    %v1197 = vmul.f32 %v1171, %v1183
    %v1198 = vmul.f32 %v1172, %v1187
    %v1199 = vmul.f32 %v1173, %v1191
    %v1200 = vld [vmem:[#allocation16] sm:$0xf]
    %v1202 = vlaneseq
    %v1203 = vshrl.u32 %v1202, 7
    %v1204 = vsub.s32 0, %v1203
    %v1205 = vrot.slane %v1200, %v1204
    %v1206 = vlaneseq
    %v1207 = vshrl.u32 %v1206, 7
    %v1208 = vsub.s32 1, %v1207
    %v1209 = vrot.slane %v1200, %v1208
    %v1210 = vlaneseq
    %v1211 = vshrl.u32 %v1210, 7
    %v1212 = vsub.s32 2, %v1211
    %v1213 = vrot.slane %v1200, %v1212
    %v1214 = vlaneseq
    %v1215 = vshrl.u32 %v1214, 7
    %v1216 = vsub.s32 3, %v1215
    %v1217 = vrot.slane %v1200, %v1216
    %v1222 = vadd.f32 %v1196, %v1205
    %v1223 = vadd.f32 %v1197, %v1209
    %v1224 = vadd.f32 %v1198, %v1213
    %v1225 = vadd.f32 %v1199, %v1217
    %vm1226 = vcmp.gt.f32.partialorder %v1222, 0.0
    %vm1227 = vcmp.gt.f32.partialorder %v1223, 0.0
    %vm1228 = vcmp.gt.f32.partialorder %v1224, 0.0
    %vm1229 = vcmp.gt.f32.partialorder %v1225, 0.0
    %v1230 = vmul.f32 %v1222, 0.2
    %v1231 = vmul.f32 %v1223, 0.2
    %v1232 = vmul.f32 %v1224, 0.2
    %v1233 = vmul.f32 %v1225, 0.2
    %v1234 = vsel %vm1226, %v1222, %v1230
    %v1235 = vsel %vm1227, %v1223, %v1231
    %v1236 = vsel %vm1228, %v1224, %v1232
    %v1237 = vsel %vm1229, %v1225, %v1233
    %v1238 = vpack.c.bf16 %v1234, %v1234
    %v1239 = vpack.c.bf16 %v1235, %v1235
    %v1240 = vpack.c.bf16 %v1236, %v1236
    %v1241 = vpack.c.bf16 %v1237, %v1237
    %v1242 = vld [vmem:[#allocation18] sm:$0xff]
    %v1243 = vld [vmem:[#allocation18 + $0x8] sm:$0xff]
    %v1244 = vld [vmem:[#allocation18 + $0x10] sm:$0xff]
    %v1245 = vld [vmem:[#allocation18 + $0x18] sm:$0xff]
    %v1246 = vld [vmem:[#allocation18 + $0x20] sm:$0xff]
    %v1247 = vld [vmem:[#allocation18 + $0x28] sm:$0xff]
    %v1248 = vld [vmem:[#allocation18 + $0x30] sm:$0xff]
    %v1249 = vld [vmem:[#allocation18 + $0x38] sm:$0xff]
    %v1250 = vld [vmem:[#allocation18 + $0x40] sm:$0xff]
    %v1251 = vld [vmem:[#allocation18 + $0x48] sm:$0xff]
    %v1252 = vld [vmem:[#allocation18 + $0x50] sm:$0xff]
    %v1253 = vld [vmem:[#allocation18 + $0x58] sm:$0xff]
    %v1254 = vld [vmem:[#allocation18 + $0x60] sm:$0xff]
    %v1255 = vld [vmem:[#allocation18 + $0x68] sm:$0xff]
    %v1256 = vld [vmem:[#allocation18 + $0x70] sm:$0xff]
    %v1257 = vld [vmem:[#allocation18 + $0x78] sm:$0xff]
    %v1258 = vld [vmem:[#allocation18 + $0x80] sm:$0xff]
    %v1259 = vld [vmem:[#allocation18 + $0x88] sm:$0xff]
    %v1260 = vld [vmem:[#allocation18 + $0x90] sm:$0xff]
    %v1261 = vld [vmem:[#allocation18 + $0x98] sm:$0xff]
    %v1262 = vld [vmem:[#allocation18 + $0xa0] sm:$0xff]
    %v1263 = vld [vmem:[#allocation18 + $0xa8] sm:$0xff]
    %v1264 = vld [vmem:[#allocation18 + $0xb0] sm:$0xff]
    %v1265 = vld [vmem:[#allocation18 + $0xb8] sm:$0xff]
    %v1266 = vld [vmem:[#allocation18 + $0xc0] sm:$0xff]
    %v1267 = vld [vmem:[#allocation18 + $0xc8] sm:$0xff]
    %v1268 = vld [vmem:[#allocation18 + $0xd0] sm:$0xff]
    %v1269 = vld [vmem:[#allocation18 + $0xd8] sm:$0xff]
    %v1270 = vld [vmem:[#allocation18 + $0xe0] sm:$0xff]
    %v1271 = vld [vmem:[#allocation18 + $0xe8] sm:$0xff]
    %v1272 = vld [vmem:[#allocation18 + $0xf0] sm:$0xff]
    %v1273 = vld [vmem:[#allocation18 + $0xf8] sm:$0xff]
    %v1274 = vld [vmem:[#allocation18 + $0x100] sm:$0xff]
    %v1275 = vld [vmem:[#allocation18 + $0x108] sm:$0xff]
    %v1276 = vld [vmem:[#allocation18 + $0x110] sm:$0xff]
    %v1277 = vld [vmem:[#allocation18 + $0x118] sm:$0xff]
    %v1278 = vld [vmem:[#allocation18 + $0x120] sm:$0xff]
    %v1279 = vld [vmem:[#allocation18 + $0x128] sm:$0xff]
    %v1280 = vld [vmem:[#allocation18 + $0x130] sm:$0xff]
    %v1281 = vld [vmem:[#allocation18 + $0x138] sm:$0xff]
    %v1282 = vld [vmem:[#allocation18 + $0x140] sm:$0xff]
    %v1283 = vld [vmem:[#allocation18 + $0x148] sm:$0xff]
    %v1284 = vld [vmem:[#allocation18 + $0x150] sm:$0xff]
    %v1285 = vld [vmem:[#allocation18 + $0x158] sm:$0xff]
    %v1286 = vld [vmem:[#allocation18 + $0x160] sm:$0xff]
    %v1287 = vld [vmem:[#allocation18 + $0x168] sm:$0xff]
    %v1288 = vld [vmem:[#allocation18 + $0x170] sm:$0xff]
    %v1289 = vld [vmem:[#allocation18 + $0x178] sm:$0xff]
    %v1290 = vld [vmem:[#allocation18 + $0x180] sm:$0xff]
    %v1291 = vld [vmem:[#allocation18 + $0x188] sm:$0xff]
    %v1292 = vld [vmem:[#allocation18 + $0x190] sm:$0xff]
    %v1293 = vld [vmem:[#allocation18 + $0x198] sm:$0xff]
    %v1294 = vld [vmem:[#allocation18 + $0x1a0] sm:$0xff]
    %v1295 = vld [vmem:[#allocation18 + $0x1a8] sm:$0xff]
    %v1296 = vld [vmem:[#allocation18 + $0x1b0] sm:$0xff]
    %v1297 = vld [vmem:[#allocation18 + $0x1b8] sm:$0xff]
    %v1298 = vld [vmem:[#allocation18 + $0x1c0] sm:$0xff]
    %v1299 = vld [vmem:[#allocation18 + $0x1c8] sm:$0xff]
    %v1300 = vld [vmem:[#allocation18 + $0x1d0] sm:$0xff]
    %v1301 = vld [vmem:[#allocation18 + $0x1d8] sm:$0xff]
    %v1302 = vld [vmem:[#allocation18 + $0x1e0] sm:$0xff]
    %v1303 = vld [vmem:[#allocation18 + $0x1e8] sm:$0xff]
    %v1304 = vld [vmem:[#allocation18 + $0x1f0] sm:$0xff]
    %v1305 = vld [vmem:[#allocation18 + $0x1f8] sm:$0xff]
    %v1306 = vld [vmem:[#allocation18 + $0x200] sm:$0xff]
    %v1307 = vld [vmem:[#allocation18 + $0x208] sm:$0xff]
    %v1308 = vld [vmem:[#allocation18 + $0x210] sm:$0xff]
    %v1309 = vld [vmem:[#allocation18 + $0x218] sm:$0xff]
    %v1310 = vld [vmem:[#allocation18 + $0x220] sm:$0xff]
    %v1311 = vld [vmem:[#allocation18 + $0x228] sm:$0xff]
    %v1312 = vld [vmem:[#allocation18 + $0x230] sm:$0xff]
    %v1313 = vld [vmem:[#allocation18 + $0x238] sm:$0xff]
    %v1314 = vld [vmem:[#allocation18 + $0x240] sm:$0xff]
    %v1315 = vld [vmem:[#allocation18 + $0x248] sm:$0xff]
    %v1316 = vld [vmem:[#allocation18 + $0x250] sm:$0xff]
    %v1317 = vld [vmem:[#allocation18 + $0x258] sm:$0xff]
    %v1318 = vld [vmem:[#allocation18 + $0x260] sm:$0xff]
    %v1319 = vld [vmem:[#allocation18 + $0x268] sm:$0xff]
    %v1320 = vld [vmem:[#allocation18 + $0x270] sm:$0xff]
    %v1321 = vld [vmem:[#allocation18 + $0x278] sm:$0xff]
    %v1322 = vld [vmem:[#allocation18 + $0x280] sm:$0xff]
    %v1323 = vld [vmem:[#allocation18 + $0x288] sm:$0xff]
    %v1324 = vld [vmem:[#allocation18 + $0x290] sm:$0xff]
    %v1325 = vld [vmem:[#allocation18 + $0x298] sm:$0xff]
    %v1326 = vld [vmem:[#allocation18 + $0x2a0] sm:$0xff]
    %v1327 = vld [vmem:[#allocation18 + $0x2a8] sm:$0xff]
    %v1328 = vld [vmem:[#allocation18 + $0x2b0] sm:$0xff]
    %v1329 = vld [vmem:[#allocation18 + $0x2b8] sm:$0xff]
    %v1330 = vld [vmem:[#allocation18 + $0x2c0] sm:$0xff]
    %v1331 = vld [vmem:[#allocation18 + $0x2c8] sm:$0xff]
    %v1332 = vld [vmem:[#allocation18 + $0x2d0] sm:$0xff]
    %v1333 = vld [vmem:[#allocation18 + $0x2d8] sm:$0xff]
    %v1334 = vld [vmem:[#allocation18 + $0x2e0] sm:$0xff]
    %v1335 = vld [vmem:[#allocation18 + $0x2e8] sm:$0xff]
    %v1336 = vld [vmem:[#allocation18 + $0x2f0] sm:$0xff]
    %v1337 = vld [vmem:[#allocation18 + $0x2f8] sm:$0xff]
    %v1338 = vld [vmem:[#allocation18 + $0x300] sm:$0xff]
    %v1339 = vld [vmem:[#allocation18 + $0x308] sm:$0xff]
    %v1340 = vld [vmem:[#allocation18 + $0x310] sm:$0xff]
    %v1341 = vld [vmem:[#allocation18 + $0x318] sm:$0xff]
    %v1342 = vld [vmem:[#allocation18 + $0x320] sm:$0xff]
    %v1343 = vld [vmem:[#allocation18 + $0x328] sm:$0xff]
    %v1344 = vld [vmem:[#allocation18 + $0x330] sm:$0xff]
    %v1345 = vld [vmem:[#allocation18 + $0x338] sm:$0xff]
    %v1346 = vld [vmem:[#allocation18 + $0x340] sm:$0xff]
    %v1347 = vld [vmem:[#allocation18 + $0x348] sm:$0xff]
    %v1348 = vld [vmem:[#allocation18 + $0x350] sm:$0xff]
    %v1349 = vld [vmem:[#allocation18 + $0x358] sm:$0xff]
    %v1350 = vld [vmem:[#allocation18 + $0x360] sm:$0xff]
    %v1351 = vld [vmem:[#allocation18 + $0x368] sm:$0xff]
    %v1352 = vld [vmem:[#allocation18 + $0x370] sm:$0xff]
    %v1353 = vld [vmem:[#allocation18 + $0x378] sm:$0xff]
    %v1354 = vld [vmem:[#allocation18 + $0x380] sm:$0xff]
    %v1355 = vld [vmem:[#allocation18 + $0x388] sm:$0xff]
    %v1356 = vld [vmem:[#allocation18 + $0x390] sm:$0xff]
    %v1357 = vld [vmem:[#allocation18 + $0x398] sm:$0xff]
    %v1358 = vld [vmem:[#allocation18 + $0x3a0] sm:$0xff]
    %v1359 = vld [vmem:[#allocation18 + $0x3a8] sm:$0xff]
    %v1360 = vld [vmem:[#allocation18 + $0x3b0] sm:$0xff]
    %v1361 = vld [vmem:[#allocation18 + $0x3b8] sm:$0xff]
    %v1362 = vld [vmem:[#allocation18 + $0x3c0] sm:$0xff]
    %v1363 = vld [vmem:[#allocation18 + $0x3c8] sm:$0xff]
    %v1364 = vld [vmem:[#allocation18 + $0x3d0] sm:$0xff]
    %v1365 = vld [vmem:[#allocation18 + $0x3d8] sm:$0xff]
    %v1366 = vld [vmem:[#allocation18 + $0x3e0] sm:$0xff]
    %v1367 = vld [vmem:[#allocation18 + $0x3e8] sm:$0xff]
    %v1368 = vld [vmem:[#allocation18 + $0x3f0] sm:$0xff]
    %v1369 = vld [vmem:[#allocation18 + $0x3f8] sm:$0xff]
    %v1370 = vld [vmem:[#allocation18 + $0x400] sm:$0xff]
    %v1371 = vld [vmem:[#allocation18 + $0x408] sm:$0xff]
    %v1372 = vld [vmem:[#allocation18 + $0x410] sm:$0xff]
    %v1373 = vld [vmem:[#allocation18 + $0x418] sm:$0xff]
    %v1374 = vld [vmem:[#allocation18 + $0x420] sm:$0xff]
    %v1375 = vld [vmem:[#allocation18 + $0x428] sm:$0xff]
    %v1376 = vld [vmem:[#allocation18 + $0x430] sm:$0xff]
    %v1377 = vld [vmem:[#allocation18 + $0x438] sm:$0xff]
    %v1378 = vld [vmem:[#allocation18 + $0x440] sm:$0xff]
    %v1379 = vld [vmem:[#allocation18 + $0x448] sm:$0xff]
    %v1380 = vld [vmem:[#allocation18 + $0x450] sm:$0xff]
    %v1381 = vld [vmem:[#allocation18 + $0x458] sm:$0xff]
    %v1382 = vld [vmem:[#allocation18 + $0x460] sm:$0xff]
    %v1383 = vld [vmem:[#allocation18 + $0x468] sm:$0xff]
    %v1384 = vld [vmem:[#allocation18 + $0x470] sm:$0xff]
    %v1385 = vld [vmem:[#allocation18 + $0x478] sm:$0xff]
    %v1386 = vld [vmem:[#allocation18 + $0x480] sm:$0xff]
    %v1387 = vld [vmem:[#allocation18 + $0x488] sm:$0xff]
    %v1388 = vld [vmem:[#allocation18 + $0x490] sm:$0xff]
    %v1389 = vld [vmem:[#allocation18 + $0x498] sm:$0xff]
    %v1390 = vld [vmem:[#allocation18 + $0x4a0] sm:$0xff]
    %v1391 = vld [vmem:[#allocation18 + $0x4a8] sm:$0xff]
    %v1392 = vld [vmem:[#allocation18 + $0x4b0] sm:$0xff]
    %v1393 = vld [vmem:[#allocation18 + $0x4b8] sm:$0xff]
    %v1394 = vld [vmem:[#allocation18 + $0x4c0] sm:$0xff]
    %v1395 = vld [vmem:[#allocation18 + $0x4c8] sm:$0xff]
    %v1396 = vld [vmem:[#allocation18 + $0x4d0] sm:$0xff]
    %v1397 = vld [vmem:[#allocation18 + $0x4d8] sm:$0xff]
    %v1398 = vld [vmem:[#allocation18 + $0x4e0] sm:$0xff]
    %v1399 = vld [vmem:[#allocation18 + $0x4e8] sm:$0xff]
    %v1400 = vld [vmem:[#allocation18 + $0x4f0] sm:$0xff]
    %v1401 = vld [vmem:[#allocation18 + $0x4f8] sm:$0xff]
    %v1402 = vld [vmem:[#allocation18 + $0x500] sm:$0xff]
    %v1403 = vld [vmem:[#allocation18 + $0x508] sm:$0xff]
    %v1404 = vld [vmem:[#allocation18 + $0x510] sm:$0xff]
    %v1405 = vld [vmem:[#allocation18 + $0x518] sm:$0xff]
    %v1406 = vld [vmem:[#allocation18 + $0x520] sm:$0xff]
    %v1407 = vld [vmem:[#allocation18 + $0x528] sm:$0xff]
    %v1408 = vld [vmem:[#allocation18 + $0x530] sm:$0xff]
    %v1409 = vld [vmem:[#allocation18 + $0x538] sm:$0xff]
    %v1410 = vld [vmem:[#allocation18 + $0x540] sm:$0xff]
    %v1411 = vld [vmem:[#allocation18 + $0x548] sm:$0xff]
    %v1412 = vld [vmem:[#allocation18 + $0x550] sm:$0xff]
    %v1413 = vld [vmem:[#allocation18 + $0x558] sm:$0xff]
    %v1414 = vld [vmem:[#allocation18 + $0x560] sm:$0xff]
    %v1415 = vld [vmem:[#allocation18 + $0x568] sm:$0xff]
    %v1416 = vld [vmem:[#allocation18 + $0x570] sm:$0xff]
    %v1417 = vld [vmem:[#allocation18 + $0x578] sm:$0xff]
    %v1418 = vld [vmem:[#allocation18 + $0x580] sm:$0xff]
    %v1419 = vld [vmem:[#allocation18 + $0x588] sm:$0xff]
    %v1420 = vld [vmem:[#allocation18 + $0x590] sm:$0xff]
    %v1421 = vld [vmem:[#allocation18 + $0x598] sm:$0xff]
    %v1422 = vld [vmem:[#allocation18 + $0x5a0] sm:$0xff]
    %v1423 = vld [vmem:[#allocation18 + $0x5a8] sm:$0xff]
    %v1424 = vld [vmem:[#allocation18 + $0x5b0] sm:$0xff]
    %v1425 = vld [vmem:[#allocation18 + $0x5b8] sm:$0xff]
    %v1426 = vld [vmem:[#allocation18 + $0x5c0] sm:$0xff]
    %v1427 = vld [vmem:[#allocation18 + $0x5c8] sm:$0xff]
    %v1428 = vld [vmem:[#allocation18 + $0x5d0] sm:$0xff]
    %v1429 = vld [vmem:[#allocation18 + $0x5d8] sm:$0xff]
    %v1430 = vld [vmem:[#allocation18 + $0x5e0] sm:$0xff]
    %v1431 = vld [vmem:[#allocation18 + $0x5e8] sm:$0xff]
    %v1432 = vld [vmem:[#allocation18 + $0x5f0] sm:$0xff]
    %v1433 = vld [vmem:[#allocation18 + $0x5f8] sm:$0xff]
    %v1434 = vld [vmem:[#allocation18 + $0x600] sm:$0xff]
    %v1435 = vld [vmem:[#allocation18 + $0x608] sm:$0xff]
    %v1436 = vld [vmem:[#allocation18 + $0x610] sm:$0xff]
    %v1437 = vld [vmem:[#allocation18 + $0x618] sm:$0xff]
    %v1438 = vld [vmem:[#allocation18 + $0x620] sm:$0xff]
    %v1439 = vld [vmem:[#allocation18 + $0x628] sm:$0xff]
    %v1440 = vld [vmem:[#allocation18 + $0x630] sm:$0xff]
    %v1441 = vld [vmem:[#allocation18 + $0x638] sm:$0xff]
    %v1442 = vld [vmem:[#allocation18 + $0x640] sm:$0xff]
    %v1443 = vld [vmem:[#allocation18 + $0x648] sm:$0xff]
    %v1444 = vld [vmem:[#allocation18 + $0x650] sm:$0xff]
    %v1445 = vld [vmem:[#allocation18 + $0x658] sm:$0xff]
    %v1446 = vld [vmem:[#allocation18 + $0x660] sm:$0xff]
    %v1447 = vld [vmem:[#allocation18 + $0x668] sm:$0xff]
    %v1448 = vld [vmem:[#allocation18 + $0x670] sm:$0xff]
    %v1449 = vld [vmem:[#allocation18 + $0x678] sm:$0xff]
    %v1450 = vld [vmem:[#allocation18 + $0x680] sm:$0xff]
    %v1451 = vld [vmem:[#allocation18 + $0x688] sm:$0xff]
    %v1452 = vld [vmem:[#allocation18 + $0x690] sm:$0xff]
    %v1453 = vld [vmem:[#allocation18 + $0x698] sm:$0xff]
    %v1454 = vld [vmem:[#allocation18 + $0x6a0] sm:$0xff]
    %v1455 = vld [vmem:[#allocation18 + $0x6a8] sm:$0xff]
    %v1456 = vld [vmem:[#allocation18 + $0x6b0] sm:$0xff]
    %v1457 = vld [vmem:[#allocation18 + $0x6b8] sm:$0xff]
    %v1458 = vld [vmem:[#allocation18 + $0x6c0] sm:$0xff]
    %v1459 = vld [vmem:[#allocation18 + $0x6c8] sm:$0xff]
    %v1460 = vld [vmem:[#allocation18 + $0x6d0] sm:$0xff]
    %v1461 = vld [vmem:[#allocation18 + $0x6d8] sm:$0xff]
    %v1462 = vld [vmem:[#allocation18 + $0x6e0] sm:$0xff]
    %v1463 = vld [vmem:[#allocation18 + $0x6e8] sm:$0xff]
    %v1464 = vld [vmem:[#allocation18 + $0x6f0] sm:$0xff]
    %v1465 = vld [vmem:[#allocation18 + $0x6f8] sm:$0xff]
    %v1466 = vld [vmem:[#allocation18 + $0x700] sm:$0xff]
    %v1467 = vld [vmem:[#allocation18 + $0x708] sm:$0xff]
    %v1468 = vld [vmem:[#allocation18 + $0x710] sm:$0xff]
    %v1469 = vld [vmem:[#allocation18 + $0x718] sm:$0xff]
    %v1470 = vld [vmem:[#allocation18 + $0x720] sm:$0xff]
    %v1471 = vld [vmem:[#allocation18 + $0x728] sm:$0xff]
    %v1472 = vld [vmem:[#allocation18 + $0x730] sm:$0xff]
    %v1473 = vld [vmem:[#allocation18 + $0x738] sm:$0xff]
    %v1474 = vld [vmem:[#allocation18 + $0x740] sm:$0xff]
    %v1475 = vld [vmem:[#allocation18 + $0x748] sm:$0xff]
    %v1476 = vld [vmem:[#allocation18 + $0x750] sm:$0xff]
    %v1477 = vld [vmem:[#allocation18 + $0x758] sm:$0xff]
    %v1478 = vld [vmem:[#allocation18 + $0x760] sm:$0xff]
    %v1479 = vld [vmem:[#allocation18 + $0x768] sm:$0xff]
    %v1480 = vld [vmem:[#allocation18 + $0x770] sm:$0xff]
    %v1481 = vld [vmem:[#allocation18 + $0x778] sm:$0xff]
    %v1482 = vld [vmem:[#allocation18 + $0x780] sm:$0xff]
    %v1483 = vld [vmem:[#allocation18 + $0x788] sm:$0xff]
    %v1484 = vld [vmem:[#allocation18 + $0x790] sm:$0xff]
    %v1485 = vld [vmem:[#allocation18 + $0x798] sm:$0xff]
    %v1486 = vld [vmem:[#allocation18 + $0x7a0] sm:$0xff]
    %v1487 = vld [vmem:[#allocation18 + $0x7a8] sm:$0xff]
    %v1488 = vld [vmem:[#allocation18 + $0x7b0] sm:$0xff]
    %v1489 = vld [vmem:[#allocation18 + $0x7b8] sm:$0xff]
    %v1490 = vld [vmem:[#allocation18 + $0x7c0] sm:$0xff]
    %v1491 = vld [vmem:[#allocation18 + $0x7c8] sm:$0xff]
    %v1492 = vld [vmem:[#allocation18 + $0x7d0] sm:$0xff]
    %v1493 = vld [vmem:[#allocation18 + $0x7d8] sm:$0xff]
    %v1494 = vld [vmem:[#allocation18 + $0x7e0] sm:$0xff]
    %v1495 = vld [vmem:[#allocation18 + $0x7e8] sm:$0xff]
    %v1496 = vld [vmem:[#allocation18 + $0x7f0] sm:$0xff]
    %v1497 = vld [vmem:[#allocation18 + $0x7f8] sm:$0xff]
    %v1498 = vld [vmem:[#allocation19] sm:$0xff]
    %v1500 = vlaneseq
    %v1501 = vshrl.u32 %v1500, 7
    %v1502 = vsub.s32 0, %v1501
    %v1503 = vrot.slane %v1498, %v1502
    %v1504 = vlaneseq
    %v1505 = vshrl.u32 %v1504, 7
    %v1506 = vsub.s32 1, %v1505
    %v1507 = vrot.slane %v1498, %v1506
    %v1508 = vlaneseq
    %v1509 = vshrl.u32 %v1508, 7
    %v1510 = vsub.s32 2, %v1509
    %v1511 = vrot.slane %v1498, %v1510
    %v1512 = vlaneseq
    %v1513 = vshrl.u32 %v1512, 7
    %v1514 = vsub.s32 3, %v1513
    %v1515 = vrot.slane %v1498, %v1514
    %v1516 = vlaneseq
    %v1517 = vshrl.u32 %v1516, 7
    %v1518 = vsub.s32 4, %v1517
    %v1519 = vrot.slane %v1498, %v1518
    %v1520 = vlaneseq
    %v1521 = vshrl.u32 %v1520, 7
    %v1522 = vsub.s32 5, %v1521
    %v1523 = vrot.slane %v1498, %v1522
    %v1524 = vlaneseq
    %v1525 = vshrl.u32 %v1524, 7
    %v1526 = vsub.s32 6, %v1525
    %v1527 = vrot.slane %v1498, %v1526
    %v1528 = vlaneseq
    %v1529 = vshrl.u32 %v1528, 7
    %v1530 = vsub.s32 7, %v1529
    %v1531 = vrot.slane %v1498, %v1530
    %v1796 = vunpack.c.l.b16 %v1242
    %v1797 = vunpack.c.h.b16 %v1242
    %v1798 = vunpack.c.l.b16 %v1243
    %v1799 = vunpack.c.h.b16 %v1243
    %v1800 = vunpack.c.l.b16 %v1244
    %v1801 = vunpack.c.h.b16 %v1244
    %v1802 = vunpack.c.l.b16 %v1245
    %v1803 = vunpack.c.h.b16 %v1245
    %v1804 = vunpack.c.l.b16 %v1246
    %v1805 = vunpack.c.h.b16 %v1246
    %v1806 = vunpack.c.l.b16 %v1247
    %v1807 = vunpack.c.h.b16 %v1247
    %v1808 = vunpack.c.l.b16 %v1248
    %v1809 = vunpack.c.h.b16 %v1248
    %v1810 = vunpack.c.l.b16 %v1249
    %v1811 = vunpack.c.h.b16 %v1249
    %v1812 = vunpack.c.l.b16 %v1250
    %v1813 = vunpack.c.h.b16 %v1250
    %v1814 = vunpack.c.l.b16 %v1251
    %v1815 = vunpack.c.h.b16 %v1251
    %v1816 = vunpack.c.l.b16 %v1252
    %v1817 = vunpack.c.h.b16 %v1252
    %v1818 = vunpack.c.l.b16 %v1253
    %v1819 = vunpack.c.h.b16 %v1253
    %v1820 = vunpack.c.l.b16 %v1254
    %v1821 = vunpack.c.h.b16 %v1254
    %v1822 = vunpack.c.l.b16 %v1255
    %v1823 = vunpack.c.h.b16 %v1255
    %v1824 = vunpack.c.l.b16 %v1256
    %v1825 = vunpack.c.h.b16 %v1256
    %v1826 = vunpack.c.l.b16 %v1257
    %v1827 = vunpack.c.h.b16 %v1257
    %v1828 = vunpack.c.l.b16 %v1258
    %v1829 = vunpack.c.h.b16 %v1258
    %v1830 = vunpack.c.l.b16 %v1259
    %v1831 = vunpack.c.h.b16 %v1259
    %v1832 = vunpack.c.l.b16 %v1260
    %v1833 = vunpack.c.h.b16 %v1260
    %v1834 = vunpack.c.l.b16 %v1261
    %v1835 = vunpack.c.h.b16 %v1261
    %v1836 = vunpack.c.l.b16 %v1262
    %v1837 = vunpack.c.h.b16 %v1262
    %v1838 = vunpack.c.l.b16 %v1263
    %v1839 = vunpack.c.h.b16 %v1263
    %v1840 = vunpack.c.l.b16 %v1264
    %v1841 = vunpack.c.h.b16 %v1264
    %v1842 = vunpack.c.l.b16 %v1265
    %v1843 = vunpack.c.h.b16 %v1265
    %v1844 = vunpack.c.l.b16 %v1266
    %v1845 = vunpack.c.h.b16 %v1266
    %v1846 = vunpack.c.l.b16 %v1267
    %v1847 = vunpack.c.h.b16 %v1267
    %v1848 = vunpack.c.l.b16 %v1268
    %v1849 = vunpack.c.h.b16 %v1268
    %v1850 = vunpack.c.l.b16 %v1269
    %v1851 = vunpack.c.h.b16 %v1269
    %v1852 = vunpack.c.l.b16 %v1270
    %v1853 = vunpack.c.h.b16 %v1270
    %v1854 = vunpack.c.l.b16 %v1271
    %v1855 = vunpack.c.h.b16 %v1271
    %v1856 = vunpack.c.l.b16 %v1272
    %v1857 = vunpack.c.h.b16 %v1272
    %v1858 = vunpack.c.l.b16 %v1273
    %v1859 = vunpack.c.h.b16 %v1273
    %v1860 = vunpack.c.l.b16 %v1274
    %v1861 = vunpack.c.h.b16 %v1274
    %v1862 = vunpack.c.l.b16 %v1275
    %v1863 = vunpack.c.h.b16 %v1275
    %v1864 = vunpack.c.l.b16 %v1276
    %v1865 = vunpack.c.h.b16 %v1276
    %v1866 = vunpack.c.l.b16 %v1277
    %v1867 = vunpack.c.h.b16 %v1277
    %v1868 = vunpack.c.l.b16 %v1278
    %v1869 = vunpack.c.h.b16 %v1278
    %v1870 = vunpack.c.l.b16 %v1279
    %v1871 = vunpack.c.h.b16 %v1279
    %v1872 = vunpack.c.l.b16 %v1280
    %v1873 = vunpack.c.h.b16 %v1280
    %v1874 = vunpack.c.l.b16 %v1281
    %v1875 = vunpack.c.h.b16 %v1281
    %v1876 = vunpack.c.l.b16 %v1282
    %v1877 = vunpack.c.h.b16 %v1282
    %v1878 = vunpack.c.l.b16 %v1283
    %v1879 = vunpack.c.h.b16 %v1283
    %v1880 = vunpack.c.l.b16 %v1284
    %v1881 = vunpack.c.h.b16 %v1284
    %v1882 = vunpack.c.l.b16 %v1285
    %v1883 = vunpack.c.h.b16 %v1285
    %v1884 = vunpack.c.l.b16 %v1286
    %v1885 = vunpack.c.h.b16 %v1286
    %v1886 = vunpack.c.l.b16 %v1287
    %v1887 = vunpack.c.h.b16 %v1287
    %v1888 = vunpack.c.l.b16 %v1288
    %v1889 = vunpack.c.h.b16 %v1288
    %v1890 = vunpack.c.l.b16 %v1289
    %v1891 = vunpack.c.h.b16 %v1289
    %v1892 = vunpack.c.l.b16 %v1290
    %v1893 = vunpack.c.h.b16 %v1290
    %v1894 = vunpack.c.l.b16 %v1291
    %v1895 = vunpack.c.h.b16 %v1291
    %v1896 = vunpack.c.l.b16 %v1292
    %v1897 = vunpack.c.h.b16 %v1292
    %v1898 = vunpack.c.l.b16 %v1293
    %v1899 = vunpack.c.h.b16 %v1293
    %v1900 = vunpack.c.l.b16 %v1294
    %v1901 = vunpack.c.h.b16 %v1294
    %v1902 = vunpack.c.l.b16 %v1295
    %v1903 = vunpack.c.h.b16 %v1295
    %v1904 = vunpack.c.l.b16 %v1296
    %v1905 = vunpack.c.h.b16 %v1296
    %v1906 = vunpack.c.l.b16 %v1297
    %v1907 = vunpack.c.h.b16 %v1297
    %v1908 = vunpack.c.l.b16 %v1298
    %v1909 = vunpack.c.h.b16 %v1298
    %v1910 = vunpack.c.l.b16 %v1299
    %v1911 = vunpack.c.h.b16 %v1299
    %v1912 = vunpack.c.l.b16 %v1300
    %v1913 = vunpack.c.h.b16 %v1300
    %v1914 = vunpack.c.l.b16 %v1301
    %v1915 = vunpack.c.h.b16 %v1301
    %v1916 = vunpack.c.l.b16 %v1302
    %v1917 = vunpack.c.h.b16 %v1302
    %v1918 = vunpack.c.l.b16 %v1303
    %v1919 = vunpack.c.h.b16 %v1303
    %v1920 = vunpack.c.l.b16 %v1304
    %v1921 = vunpack.c.h.b16 %v1304
    %v1922 = vunpack.c.l.b16 %v1305
    %v1923 = vunpack.c.h.b16 %v1305
    %v1924 = vunpack.c.l.b16 %v1306
    %v1925 = vunpack.c.h.b16 %v1306
    %v1926 = vunpack.c.l.b16 %v1307
    %v1927 = vunpack.c.h.b16 %v1307
    %v1928 = vunpack.c.l.b16 %v1308
    %v1929 = vunpack.c.h.b16 %v1308
    %v1930 = vunpack.c.l.b16 %v1309
    %v1931 = vunpack.c.h.b16 %v1309
    %v1932 = vunpack.c.l.b16 %v1310
    %v1933 = vunpack.c.h.b16 %v1310
    %v1934 = vunpack.c.l.b16 %v1311
    %v1935 = vunpack.c.h.b16 %v1311
    %v1936 = vunpack.c.l.b16 %v1312
    %v1937 = vunpack.c.h.b16 %v1312
    %v1938 = vunpack.c.l.b16 %v1313
    %v1939 = vunpack.c.h.b16 %v1313
    %v1940 = vunpack.c.l.b16 %v1314
    %v1941 = vunpack.c.h.b16 %v1314
    %v1942 = vunpack.c.l.b16 %v1315
    %v1943 = vunpack.c.h.b16 %v1315
    %v1944 = vunpack.c.l.b16 %v1316
    %v1945 = vunpack.c.h.b16 %v1316
    %v1946 = vunpack.c.l.b16 %v1317
    %v1947 = vunpack.c.h.b16 %v1317
    %v1948 = vunpack.c.l.b16 %v1318
    %v1949 = vunpack.c.h.b16 %v1318
    %v1950 = vunpack.c.l.b16 %v1319
    %v1951 = vunpack.c.h.b16 %v1319
    %v1952 = vunpack.c.l.b16 %v1320
    %v1953 = vunpack.c.h.b16 %v1320
    %v1954 = vunpack.c.l.b16 %v1321
    %v1955 = vunpack.c.h.b16 %v1321
    %v1956 = vunpack.c.l.b16 %v1322
    %v1957 = vunpack.c.h.b16 %v1322
    %v1958 = vunpack.c.l.b16 %v1323
    %v1959 = vunpack.c.h.b16 %v1323
    %v1960 = vunpack.c.l.b16 %v1324
    %v1961 = vunpack.c.h.b16 %v1324
    %v1962 = vunpack.c.l.b16 %v1325
    %v1963 = vunpack.c.h.b16 %v1325
    %v1964 = vunpack.c.l.b16 %v1326
    %v1965 = vunpack.c.h.b16 %v1326
    %v1966 = vunpack.c.l.b16 %v1327
    %v1967 = vunpack.c.h.b16 %v1327
    %v1968 = vunpack.c.l.b16 %v1328
    %v1969 = vunpack.c.h.b16 %v1328
    %v1970 = vunpack.c.l.b16 %v1329
    %v1971 = vunpack.c.h.b16 %v1329
    %v1972 = vunpack.c.l.b16 %v1330
    %v1973 = vunpack.c.h.b16 %v1330
    %v1974 = vunpack.c.l.b16 %v1331
    %v1975 = vunpack.c.h.b16 %v1331
    %v1976 = vunpack.c.l.b16 %v1332
    %v1977 = vunpack.c.h.b16 %v1332
    %v1978 = vunpack.c.l.b16 %v1333
    %v1979 = vunpack.c.h.b16 %v1333
    %v1980 = vunpack.c.l.b16 %v1334
    %v1981 = vunpack.c.h.b16 %v1334
    %v1982 = vunpack.c.l.b16 %v1335
    %v1983 = vunpack.c.h.b16 %v1335
    %v1984 = vunpack.c.l.b16 %v1336
    %v1985 = vunpack.c.h.b16 %v1336
    %v1986 = vunpack.c.l.b16 %v1337
    %v1987 = vunpack.c.h.b16 %v1337
    %v1988 = vunpack.c.l.b16 %v1338
    %v1989 = vunpack.c.h.b16 %v1338
    %v1990 = vunpack.c.l.b16 %v1339
    %v1991 = vunpack.c.h.b16 %v1339
    %v1992 = vunpack.c.l.b16 %v1340
    %v1993 = vunpack.c.h.b16 %v1340
    %v1994 = vunpack.c.l.b16 %v1341
    %v1995 = vunpack.c.h.b16 %v1341
    %v1996 = vunpack.c.l.b16 %v1342
    %v1997 = vunpack.c.h.b16 %v1342
    %v1998 = vunpack.c.l.b16 %v1343
    %v1999 = vunpack.c.h.b16 %v1343
    %v2000 = vunpack.c.l.b16 %v1344
    %v2001 = vunpack.c.h.b16 %v1344
    %v2002 = vunpack.c.l.b16 %v1345
    %v2003 = vunpack.c.h.b16 %v1345
    %v2004 = vunpack.c.l.b16 %v1346
    %v2005 = vunpack.c.h.b16 %v1346
    %v2006 = vunpack.c.l.b16 %v1347
    %v2007 = vunpack.c.h.b16 %v1347
    %v2008 = vunpack.c.l.b16 %v1348
    %v2009 = vunpack.c.h.b16 %v1348
    %v2010 = vunpack.c.l.b16 %v1349
    %v2011 = vunpack.c.h.b16 %v1349
    %v2012 = vunpack.c.l.b16 %v1350
    %v2013 = vunpack.c.h.b16 %v1350
    %v2014 = vunpack.c.l.b16 %v1351
    %v2015 = vunpack.c.h.b16 %v1351
    %v2016 = vunpack.c.l.b16 %v1352
    %v2017 = vunpack.c.h.b16 %v1352
    %v2018 = vunpack.c.l.b16 %v1353
    %v2019 = vunpack.c.h.b16 %v1353
    %v2020 = vunpack.c.l.b16 %v1354
    %v2021 = vunpack.c.h.b16 %v1354
    %v2022 = vunpack.c.l.b16 %v1355
    %v2023 = vunpack.c.h.b16 %v1355
    %v2024 = vunpack.c.l.b16 %v1356
    %v2025 = vunpack.c.h.b16 %v1356
    %v2026 = vunpack.c.l.b16 %v1357
    %v2027 = vunpack.c.h.b16 %v1357
    %v2028 = vunpack.c.l.b16 %v1358
    %v2029 = vunpack.c.h.b16 %v1358
    %v2030 = vunpack.c.l.b16 %v1359
    %v2031 = vunpack.c.h.b16 %v1359
    %v2032 = vunpack.c.l.b16 %v1360
    %v2033 = vunpack.c.h.b16 %v1360
    %v2034 = vunpack.c.l.b16 %v1361
    %v2035 = vunpack.c.h.b16 %v1361
    %v2036 = vunpack.c.l.b16 %v1362
    %v2037 = vunpack.c.h.b16 %v1362
    %v2038 = vunpack.c.l.b16 %v1363
    %v2039 = vunpack.c.h.b16 %v1363
    %v2040 = vunpack.c.l.b16 %v1364
    %v2041 = vunpack.c.h.b16 %v1364
    %v2042 = vunpack.c.l.b16 %v1365
    %v2043 = vunpack.c.h.b16 %v1365
    %v2044 = vunpack.c.l.b16 %v1366
    %v2045 = vunpack.c.h.b16 %v1366
    %v2046 = vunpack.c.l.b16 %v1367
    %v2047 = vunpack.c.h.b16 %v1367
    %v2048 = vunpack.c.l.b16 %v1368
    %v2049 = vunpack.c.h.b16 %v1368
    %v2050 = vunpack.c.l.b16 %v1369
    %v2051 = vunpack.c.h.b16 %v1369
    %v2052 = vunpack.c.l.b16 %v1370
    %v2053 = vunpack.c.h.b16 %v1370
    %v2054 = vunpack.c.l.b16 %v1371
    %v2055 = vunpack.c.h.b16 %v1371
    %v2056 = vunpack.c.l.b16 %v1372
    %v2057 = vunpack.c.h.b16 %v1372
    %v2058 = vunpack.c.l.b16 %v1373
    %v2059 = vunpack.c.h.b16 %v1373
    %v2060 = vunpack.c.l.b16 %v1374
    %v2061 = vunpack.c.h.b16 %v1374
    %v2062 = vunpack.c.l.b16 %v1375
    %v2063 = vunpack.c.h.b16 %v1375
    %v2064 = vunpack.c.l.b16 %v1376
    %v2065 = vunpack.c.h.b16 %v1376
    %v2066 = vunpack.c.l.b16 %v1377
    %v2067 = vunpack.c.h.b16 %v1377
    %v2068 = vunpack.c.l.b16 %v1378
    %v2069 = vunpack.c.h.b16 %v1378
    %v2070 = vunpack.c.l.b16 %v1379
    %v2071 = vunpack.c.h.b16 %v1379
    %v2072 = vunpack.c.l.b16 %v1380
    %v2073 = vunpack.c.h.b16 %v1380
    %v2074 = vunpack.c.l.b16 %v1381
    %v2075 = vunpack.c.h.b16 %v1381
    %v2076 = vunpack.c.l.b16 %v1382
    %v2077 = vunpack.c.h.b16 %v1382
    %v2078 = vunpack.c.l.b16 %v1383
    %v2079 = vunpack.c.h.b16 %v1383
    %v2080 = vunpack.c.l.b16 %v1384
    %v2081 = vunpack.c.h.b16 %v1384
    %v2082 = vunpack.c.l.b16 %v1385
    %v2083 = vunpack.c.h.b16 %v1385
    %v2084 = vunpack.c.l.b16 %v1386
    %v2085 = vunpack.c.h.b16 %v1386
    %v2086 = vunpack.c.l.b16 %v1387
    %v2087 = vunpack.c.h.b16 %v1387
    %v2088 = vunpack.c.l.b16 %v1388
    %v2089 = vunpack.c.h.b16 %v1388
    %v2090 = vunpack.c.l.b16 %v1389
    %v2091 = vunpack.c.h.b16 %v1389
    %v2092 = vunpack.c.l.b16 %v1390
    %v2093 = vunpack.c.h.b16 %v1390
    %v2094 = vunpack.c.l.b16 %v1391
    %v2095 = vunpack.c.h.b16 %v1391
    %v2096 = vunpack.c.l.b16 %v1392
    %v2097 = vunpack.c.h.b16 %v1392
    %v2098 = vunpack.c.l.b16 %v1393
    %v2099 = vunpack.c.h.b16 %v1393
    %v2100 = vunpack.c.l.b16 %v1394
    %v2101 = vunpack.c.h.b16 %v1394
    %v2102 = vunpack.c.l.b16 %v1395
    %v2103 = vunpack.c.h.b16 %v1395
    %v2104 = vunpack.c.l.b16 %v1396
    %v2105 = vunpack.c.h.b16 %v1396
    %v2106 = vunpack.c.l.b16 %v1397
    %v2107 = vunpack.c.h.b16 %v1397
    %v2108 = vunpack.c.l.b16 %v1398
    %v2109 = vunpack.c.h.b16 %v1398
    %v2110 = vunpack.c.l.b16 %v1399
    %v2111 = vunpack.c.h.b16 %v1399
    %v2112 = vunpack.c.l.b16 %v1400
    %v2113 = vunpack.c.h.b16 %v1400
    %v2114 = vunpack.c.l.b16 %v1401
    %v2115 = vunpack.c.h.b16 %v1401
    %v2116 = vunpack.c.l.b16 %v1402
    %v2117 = vunpack.c.h.b16 %v1402
    %v2118 = vunpack.c.l.b16 %v1403
    %v2119 = vunpack.c.h.b16 %v1403
    %v2120 = vunpack.c.l.b16 %v1404
    %v2121 = vunpack.c.h.b16 %v1404
    %v2122 = vunpack.c.l.b16 %v1405
    %v2123 = vunpack.c.h.b16 %v1405
    %v2124 = vunpack.c.l.b16 %v1406
    %v2125 = vunpack.c.h.b16 %v1406
    %v2126 = vunpack.c.l.b16 %v1407
    %v2127 = vunpack.c.h.b16 %v1407
    %v2128 = vunpack.c.l.b16 %v1408
    %v2129 = vunpack.c.h.b16 %v1408
    %v2130 = vunpack.c.l.b16 %v1409
    %v2131 = vunpack.c.h.b16 %v1409
    %v2132 = vunpack.c.l.b16 %v1410
    %v2133 = vunpack.c.h.b16 %v1410
    %v2134 = vunpack.c.l.b16 %v1411
    %v2135 = vunpack.c.h.b16 %v1411
    %v2136 = vunpack.c.l.b16 %v1412
    %v2137 = vunpack.c.h.b16 %v1412
    %v2138 = vunpack.c.l.b16 %v1413
    %v2139 = vunpack.c.h.b16 %v1413
    %v2140 = vunpack.c.l.b16 %v1414
    %v2141 = vunpack.c.h.b16 %v1414
    %v2142 = vunpack.c.l.b16 %v1415
    %v2143 = vunpack.c.h.b16 %v1415
    %v2144 = vunpack.c.l.b16 %v1416
    %v2145 = vunpack.c.h.b16 %v1416
    %v2146 = vunpack.c.l.b16 %v1417
    %v2147 = vunpack.c.h.b16 %v1417
    %v2148 = vunpack.c.l.b16 %v1418
    %v2149 = vunpack.c.h.b16 %v1418
    %v2150 = vunpack.c.l.b16 %v1419
    %v2151 = vunpack.c.h.b16 %v1419
    %v2152 = vunpack.c.l.b16 %v1420
    %v2153 = vunpack.c.h.b16 %v1420
    %v2154 = vunpack.c.l.b16 %v1421
    %v2155 = vunpack.c.h.b16 %v1421
    %v2156 = vunpack.c.l.b16 %v1422
    %v2157 = vunpack.c.h.b16 %v1422
    %v2158 = vunpack.c.l.b16 %v1423
    %v2159 = vunpack.c.h.b16 %v1423
    %v2160 = vunpack.c.l.b16 %v1424
    %v2161 = vunpack.c.h.b16 %v1424
    %v2162 = vunpack.c.l.b16 %v1425
    %v2163 = vunpack.c.h.b16 %v1425
    %v2164 = vunpack.c.l.b16 %v1426
    %v2165 = vunpack.c.h.b16 %v1426
    %v2166 = vunpack.c.l.b16 %v1427
    %v2167 = vunpack.c.h.b16 %v1427
    %v2168 = vunpack.c.l.b16 %v1428
    %v2169 = vunpack.c.h.b16 %v1428
    %v2170 = vunpack.c.l.b16 %v1429
    %v2171 = vunpack.c.h.b16 %v1429
    %v2172 = vunpack.c.l.b16 %v1430
    %v2173 = vunpack.c.h.b16 %v1430
    %v2174 = vunpack.c.l.b16 %v1431
    %v2175 = vunpack.c.h.b16 %v1431
    %v2176 = vunpack.c.l.b16 %v1432
    %v2177 = vunpack.c.h.b16 %v1432
    %v2178 = vunpack.c.l.b16 %v1433
    %v2179 = vunpack.c.h.b16 %v1433
    %v2180 = vunpack.c.l.b16 %v1434
    %v2181 = vunpack.c.h.b16 %v1434
    %v2182 = vunpack.c.l.b16 %v1435
    %v2183 = vunpack.c.h.b16 %v1435
    %v2184 = vunpack.c.l.b16 %v1436
    %v2185 = vunpack.c.h.b16 %v1436
    %v2186 = vunpack.c.l.b16 %v1437
    %v2187 = vunpack.c.h.b16 %v1437
    %v2188 = vunpack.c.l.b16 %v1438
    %v2189 = vunpack.c.h.b16 %v1438
    %v2190 = vunpack.c.l.b16 %v1439
    %v2191 = vunpack.c.h.b16 %v1439
    %v2192 = vunpack.c.l.b16 %v1440
    %v2193 = vunpack.c.h.b16 %v1440
    %v2194 = vunpack.c.l.b16 %v1441
    %v2195 = vunpack.c.h.b16 %v1441
    %v2196 = vunpack.c.l.b16 %v1442
    %v2197 = vunpack.c.h.b16 %v1442
    %v2198 = vunpack.c.l.b16 %v1443
    %v2199 = vunpack.c.h.b16 %v1443
    %v2200 = vunpack.c.l.b16 %v1444
    %v2201 = vunpack.c.h.b16 %v1444
    %v2202 = vunpack.c.l.b16 %v1445
    %v2203 = vunpack.c.h.b16 %v1445
    %v2204 = vunpack.c.l.b16 %v1446
    %v2205 = vunpack.c.h.b16 %v1446
    %v2206 = vunpack.c.l.b16 %v1447
    %v2207 = vunpack.c.h.b16 %v1447
    %v2208 = vunpack.c.l.b16 %v1448
    %v2209 = vunpack.c.h.b16 %v1448
    %v2210 = vunpack.c.l.b16 %v1449
    %v2211 = vunpack.c.h.b16 %v1449
    %v2212 = vunpack.c.l.b16 %v1450
    %v2213 = vunpack.c.h.b16 %v1450
    %v2214 = vunpack.c.l.b16 %v1451
    %v2215 = vunpack.c.h.b16 %v1451
    %v2216 = vunpack.c.l.b16 %v1452
    %v2217 = vunpack.c.h.b16 %v1452
    %v2218 = vunpack.c.l.b16 %v1453
    %v2219 = vunpack.c.h.b16 %v1453
    %v2220 = vunpack.c.l.b16 %v1454
    %v2221 = vunpack.c.h.b16 %v1454
    %v2222 = vunpack.c.l.b16 %v1455
    %v2223 = vunpack.c.h.b16 %v1455
    %v2224 = vunpack.c.l.b16 %v1456
    %v2225 = vunpack.c.h.b16 %v1456
    %v2226 = vunpack.c.l.b16 %v1457
    %v2227 = vunpack.c.h.b16 %v1457
    %v2228 = vunpack.c.l.b16 %v1458
    %v2229 = vunpack.c.h.b16 %v1458
    %v2230 = vunpack.c.l.b16 %v1459
    %v2231 = vunpack.c.h.b16 %v1459
    %v2232 = vunpack.c.l.b16 %v1460
    %v2233 = vunpack.c.h.b16 %v1460
    %v2234 = vunpack.c.l.b16 %v1461
    %v2235 = vunpack.c.h.b16 %v1461
    %v2236 = vunpack.c.l.b16 %v1462
    %v2237 = vunpack.c.h.b16 %v1462
    %v2238 = vunpack.c.l.b16 %v1463
    %v2239 = vunpack.c.h.b16 %v1463
    %v2240 = vunpack.c.l.b16 %v1464
    %v2241 = vunpack.c.h.b16 %v1464
    %v2242 = vunpack.c.l.b16 %v1465
    %v2243 = vunpack.c.h.b16 %v1465
    %v2244 = vunpack.c.l.b16 %v1466
    %v2245 = vunpack.c.h.b16 %v1466
    %v2246 = vunpack.c.l.b16 %v1467
    %v2247 = vunpack.c.h.b16 %v1467
    %v2248 = vunpack.c.l.b16 %v1468
    %v2249 = vunpack.c.h.b16 %v1468
    %v2250 = vunpack.c.l.b16 %v1469
    %v2251 = vunpack.c.h.b16 %v1469
    %v2252 = vunpack.c.l.b16 %v1470
    %v2253 = vunpack.c.h.b16 %v1470
    %v2254 = vunpack.c.l.b16 %v1471
    %v2255 = vunpack.c.h.b16 %v1471
    %v2256 = vunpack.c.l.b16 %v1472
    %v2257 = vunpack.c.h.b16 %v1472
    %v2258 = vunpack.c.l.b16 %v1473
    %v2259 = vunpack.c.h.b16 %v1473
    %v2260 = vunpack.c.l.b16 %v1474
    %v2261 = vunpack.c.h.b16 %v1474
    %v2262 = vunpack.c.l.b16 %v1475
    %v2263 = vunpack.c.h.b16 %v1475
    %v2264 = vunpack.c.l.b16 %v1476
    %v2265 = vunpack.c.h.b16 %v1476
    %v2266 = vunpack.c.l.b16 %v1477
    %v2267 = vunpack.c.h.b16 %v1477
    %v2268 = vunpack.c.l.b16 %v1478
    %v2269 = vunpack.c.h.b16 %v1478
    %v2270 = vunpack.c.l.b16 %v1479
    %v2271 = vunpack.c.h.b16 %v1479
    %v2272 = vunpack.c.l.b16 %v1480
    %v2273 = vunpack.c.h.b16 %v1480
    %v2274 = vunpack.c.l.b16 %v1481
    %v2275 = vunpack.c.h.b16 %v1481
    %v2276 = vunpack.c.l.b16 %v1482
    %v2277 = vunpack.c.h.b16 %v1482
    %v2278 = vunpack.c.l.b16 %v1483
    %v2279 = vunpack.c.h.b16 %v1483
    %v2280 = vunpack.c.l.b16 %v1484
    %v2281 = vunpack.c.h.b16 %v1484
    %v2282 = vunpack.c.l.b16 %v1485
    %v2283 = vunpack.c.h.b16 %v1485
    %v2284 = vunpack.c.l.b16 %v1486
    %v2285 = vunpack.c.h.b16 %v1486
    %v2286 = vunpack.c.l.b16 %v1487
    %v2287 = vunpack.c.h.b16 %v1487
    %v2288 = vunpack.c.l.b16 %v1488
    %v2289 = vunpack.c.h.b16 %v1488
    %v2290 = vunpack.c.l.b16 %v1489
    %v2291 = vunpack.c.h.b16 %v1489
    %v2292 = vunpack.c.l.b16 %v1490
    %v2293 = vunpack.c.h.b16 %v1490
    %v2294 = vunpack.c.l.b16 %v1491
    %v2295 = vunpack.c.h.b16 %v1491
    %v2296 = vunpack.c.l.b16 %v1492
    %v2297 = vunpack.c.h.b16 %v1492
    %v2298 = vunpack.c.l.b16 %v1493
    %v2299 = vunpack.c.h.b16 %v1493
    %v2300 = vunpack.c.l.b16 %v1494
    %v2301 = vunpack.c.h.b16 %v1494
    %v2302 = vunpack.c.l.b16 %v1495
    %v2303 = vunpack.c.h.b16 %v1495
    %v2304 = vunpack.c.l.b16 %v1496
    %v2305 = vunpack.c.h.b16 %v1496
    %v2306 = vunpack.c.l.b16 %v1497
    %v2307 = vunpack.c.h.b16 %v1497
    %v2308 = vpack.c.b16 %v1804, %v1796
    %v2309 = vpack.c.b16 %v1805, %v1797
    %v2310 = vpack.c.b16 %v1806, %v1798
    %v2311 = vpack.c.b16 %v1807, %v1799
    %v2312 = vpack.c.b16 %v1808, %v1800
    %v2313 = vpack.c.b16 %v1809, %v1801
    %v2314 = vpack.c.b16 %v1810, %v1802
    %v2315 = vpack.c.b16 %v1811, %v1803
    %v2316 = vpack.c.b16 %v1820, %v1812
    %v2317 = vpack.c.b16 %v1821, %v1813
    %v2318 = vpack.c.b16 %v1822, %v1814
    %v2319 = vpack.c.b16 %v1823, %v1815
    %v2320 = vpack.c.b16 %v1824, %v1816
    %v2321 = vpack.c.b16 %v1825, %v1817
    %v2322 = vpack.c.b16 %v1826, %v1818
    %v2323 = vpack.c.b16 %v1827, %v1819
    %v2324 = vpack.c.b16 %v1836, %v1828
    %v2325 = vpack.c.b16 %v1837, %v1829
    %v2326 = vpack.c.b16 %v1838, %v1830
    %v2327 = vpack.c.b16 %v1839, %v1831
    %v2328 = vpack.c.b16 %v1840, %v1832
    %v2329 = vpack.c.b16 %v1841, %v1833
    %v2330 = vpack.c.b16 %v1842, %v1834
    %v2331 = vpack.c.b16 %v1843, %v1835
    %v2332 = vpack.c.b16 %v1852, %v1844
    %v2333 = vpack.c.b16 %v1853, %v1845
    %v2334 = vpack.c.b16 %v1854, %v1846
    %v2335 = vpack.c.b16 %v1855, %v1847
    %v2336 = vpack.c.b16 %v1856, %v1848
    %v2337 = vpack.c.b16 %v1857, %v1849
    %v2338 = vpack.c.b16 %v1858, %v1850
    %v2339 = vpack.c.b16 %v1859, %v1851
    %v2340 = vpack.c.b16 %v1868, %v1860
    %v2341 = vpack.c.b16 %v1869, %v1861
    %v2342 = vpack.c.b16 %v1870, %v1862
    %v2343 = vpack.c.b16 %v1871, %v1863
    %v2344 = vpack.c.b16 %v1872, %v1864
    %v2345 = vpack.c.b16 %v1873, %v1865
    %v2346 = vpack.c.b16 %v1874, %v1866
    %v2347 = vpack.c.b16 %v1875, %v1867
    %v2348 = vpack.c.b16 %v1884, %v1876
    %v2349 = vpack.c.b16 %v1885, %v1877
    %v2350 = vpack.c.b16 %v1886, %v1878
    %v2351 = vpack.c.b16 %v1887, %v1879
    %v2352 = vpack.c.b16 %v1888, %v1880
    %v2353 = vpack.c.b16 %v1889, %v1881
    %v2354 = vpack.c.b16 %v1890, %v1882
    %v2355 = vpack.c.b16 %v1891, %v1883
    %v2356 = vpack.c.b16 %v1900, %v1892
    %v2357 = vpack.c.b16 %v1901, %v1893
    %v2358 = vpack.c.b16 %v1902, %v1894
    %v2359 = vpack.c.b16 %v1903, %v1895
    %v2360 = vpack.c.b16 %v1904, %v1896
    %v2361 = vpack.c.b16 %v1905, %v1897
    %v2362 = vpack.c.b16 %v1906, %v1898
    %v2363 = vpack.c.b16 %v1907, %v1899
    %v2364 = vpack.c.b16 %v1916, %v1908
    %v2365 = vpack.c.b16 %v1917, %v1909
    %v2366 = vpack.c.b16 %v1918, %v1910
    %v2367 = vpack.c.b16 %v1919, %v1911
    %v2368 = vpack.c.b16 %v1920, %v1912
    %v2369 = vpack.c.b16 %v1921, %v1913
    %v2370 = vpack.c.b16 %v1922, %v1914
    %v2371 = vpack.c.b16 %v1923, %v1915
    %v2372 = vpack.c.b16 %v1932, %v1924
    %v2373 = vpack.c.b16 %v1933, %v1925
    %v2374 = vpack.c.b16 %v1934, %v1926
    %v2375 = vpack.c.b16 %v1935, %v1927
    %v2376 = vpack.c.b16 %v1936, %v1928
    %v2377 = vpack.c.b16 %v1937, %v1929
    %v2378 = vpack.c.b16 %v1938, %v1930
    %v2379 = vpack.c.b16 %v1939, %v1931
    %v2380 = vpack.c.b16 %v1948, %v1940
    %v2381 = vpack.c.b16 %v1949, %v1941
    %v2382 = vpack.c.b16 %v1950, %v1942
    %v2383 = vpack.c.b16 %v1951, %v1943
    %v2384 = vpack.c.b16 %v1952, %v1944
    %v2385 = vpack.c.b16 %v1953, %v1945
    %v2386 = vpack.c.b16 %v1954, %v1946
    %v2387 = vpack.c.b16 %v1955, %v1947
    %v2388 = vpack.c.b16 %v1964, %v1956
    %v2389 = vpack.c.b16 %v1965, %v1957
    %v2390 = vpack.c.b16 %v1966, %v1958
    %v2391 = vpack.c.b16 %v1967, %v1959
    %v2392 = vpack.c.b16 %v1968, %v1960
    %v2393 = vpack.c.b16 %v1969, %v1961
    %v2394 = vpack.c.b16 %v1970, %v1962
    %v2395 = vpack.c.b16 %v1971, %v1963
    %v2396 = vpack.c.b16 %v1980, %v1972
    %v2397 = vpack.c.b16 %v1981, %v1973
    %v2398 = vpack.c.b16 %v1982, %v1974
    %v2399 = vpack.c.b16 %v1983, %v1975
    %v2400 = vpack.c.b16 %v1984, %v1976
    %v2401 = vpack.c.b16 %v1985, %v1977
    %v2402 = vpack.c.b16 %v1986, %v1978
    %v2403 = vpack.c.b16 %v1987, %v1979
    %v2404 = vpack.c.b16 %v1996, %v1988
    %v2405 = vpack.c.b16 %v1997, %v1989
    %v2406 = vpack.c.b16 %v1998, %v1990
    %v2407 = vpack.c.b16 %v1999, %v1991
    %v2408 = vpack.c.b16 %v2000, %v1992
    %v2409 = vpack.c.b16 %v2001, %v1993
    %v2410 = vpack.c.b16 %v2002, %v1994
    %v2411 = vpack.c.b16 %v2003, %v1995
    %v2412 = vpack.c.b16 %v2012, %v2004
    %v2413 = vpack.c.b16 %v2013, %v2005
    %v2414 = vpack.c.b16 %v2014, %v2006
    %v2415 = vpack.c.b16 %v2015, %v2007
    %v2416 = vpack.c.b16 %v2016, %v2008
    %v2417 = vpack.c.b16 %v2017, %v2009
    %v2418 = vpack.c.b16 %v2018, %v2010
    %v2419 = vpack.c.b16 %v2019, %v2011
    %v2420 = vpack.c.b16 %v2028, %v2020
    %v2421 = vpack.c.b16 %v2029, %v2021
    %v2422 = vpack.c.b16 %v2030, %v2022
    %v2423 = vpack.c.b16 %v2031, %v2023
    %v2424 = vpack.c.b16 %v2032, %v2024
    %v2425 = vpack.c.b16 %v2033, %v2025
    %v2426 = vpack.c.b16 %v2034, %v2026
    %v2427 = vpack.c.b16 %v2035, %v2027
    %v2428 = vpack.c.b16 %v2044, %v2036
    %v2429 = vpack.c.b16 %v2045, %v2037
    %v2430 = vpack.c.b16 %v2046, %v2038
    %v2431 = vpack.c.b16 %v2047, %v2039
    %v2432 = vpack.c.b16 %v2048, %v2040
    %v2433 = vpack.c.b16 %v2049, %v2041
    %v2434 = vpack.c.b16 %v2050, %v2042
    %v2435 = vpack.c.b16 %v2051, %v2043
    %v2436 = vpack.c.b16 %v2060, %v2052
    %v2437 = vpack.c.b16 %v2061, %v2053
    %v2438 = vpack.c.b16 %v2062, %v2054
    %v2439 = vpack.c.b16 %v2063, %v2055
    %v2440 = vpack.c.b16 %v2064, %v2056
    %v2441 = vpack.c.b16 %v2065, %v2057
    %v2442 = vpack.c.b16 %v2066, %v2058
    %v2443 = vpack.c.b16 %v2067, %v2059
    %v2444 = vpack.c.b16 %v2076, %v2068
    %v2445 = vpack.c.b16 %v2077, %v2069
    %v2446 = vpack.c.b16 %v2078, %v2070
    %v2447 = vpack.c.b16 %v2079, %v2071
    %v2448 = vpack.c.b16 %v2080, %v2072
    %v2449 = vpack.c.b16 %v2081, %v2073
    %v2450 = vpack.c.b16 %v2082, %v2074
    %v2451 = vpack.c.b16 %v2083, %v2075
    %v2452 = vpack.c.b16 %v2092, %v2084
    %v2453 = vpack.c.b16 %v2093, %v2085
    %v2454 = vpack.c.b16 %v2094, %v2086
    %v2455 = vpack.c.b16 %v2095, %v2087
    %v2456 = vpack.c.b16 %v2096, %v2088
    %v2457 = vpack.c.b16 %v2097, %v2089
    %v2458 = vpack.c.b16 %v2098, %v2090
    %v2459 = vpack.c.b16 %v2099, %v2091
    %v2460 = vpack.c.b16 %v2108, %v2100
    %v2461 = vpack.c.b16 %v2109, %v2101
    %v2462 = vpack.c.b16 %v2110, %v2102
    %v2463 = vpack.c.b16 %v2111, %v2103
    %v2464 = vpack.c.b16 %v2112, %v2104
    %v2465 = vpack.c.b16 %v2113, %v2105
    %v2466 = vpack.c.b16 %v2114, %v2106
    %v2467 = vpack.c.b16 %v2115, %v2107
    %v2468 = vpack.c.b16 %v2124, %v2116
    %v2469 = vpack.c.b16 %v2125, %v2117
    %v2470 = vpack.c.b16 %v2126, %v2118
    %v2471 = vpack.c.b16 %v2127, %v2119
    %v2472 = vpack.c.b16 %v2128, %v2120
    %v2473 = vpack.c.b16 %v2129, %v2121
    %v2474 = vpack.c.b16 %v2130, %v2122
    %v2475 = vpack.c.b16 %v2131, %v2123
    %v2476 = vpack.c.b16 %v2140, %v2132
    %v2477 = vpack.c.b16 %v2141, %v2133
    %v2478 = vpack.c.b16 %v2142, %v2134
    %v2479 = vpack.c.b16 %v2143, %v2135
    %v2480 = vpack.c.b16 %v2144, %v2136
    %v2481 = vpack.c.b16 %v2145, %v2137
    %v2482 = vpack.c.b16 %v2146, %v2138
    %v2483 = vpack.c.b16 %v2147, %v2139
    %v2484 = vpack.c.b16 %v2156, %v2148
    %v2485 = vpack.c.b16 %v2157, %v2149
    %v2486 = vpack.c.b16 %v2158, %v2150
    %v2487 = vpack.c.b16 %v2159, %v2151
    %v2488 = vpack.c.b16 %v2160, %v2152
    %v2489 = vpack.c.b16 %v2161, %v2153
    %v2490 = vpack.c.b16 %v2162, %v2154
    %v2491 = vpack.c.b16 %v2163, %v2155
    %v2492 = vpack.c.b16 %v2172, %v2164
    %v2493 = vpack.c.b16 %v2173, %v2165
    %v2494 = vpack.c.b16 %v2174, %v2166
    %v2495 = vpack.c.b16 %v2175, %v2167
    %v2496 = vpack.c.b16 %v2176, %v2168
    %v2497 = vpack.c.b16 %v2177, %v2169
    %v2498 = vpack.c.b16 %v2178, %v2170
    %v2499 = vpack.c.b16 %v2179, %v2171
    %v2500 = vpack.c.b16 %v2188, %v2180
    %v2501 = vpack.c.b16 %v2189, %v2181
    %v2502 = vpack.c.b16 %v2190, %v2182
    %v2503 = vpack.c.b16 %v2191, %v2183
    %v2504 = vpack.c.b16 %v2192, %v2184
    %v2505 = vpack.c.b16 %v2193, %v2185
    %v2506 = vpack.c.b16 %v2194, %v2186
    %v2507 = vpack.c.b16 %v2195, %v2187
    %v2508 = vpack.c.b16 %v2204, %v2196
    %v2509 = vpack.c.b16 %v2205, %v2197
    %v2510 = vpack.c.b16 %v2206, %v2198
    %v2511 = vpack.c.b16 %v2207, %v2199
    %v2512 = vpack.c.b16 %v2208, %v2200
    %v2513 = vpack.c.b16 %v2209, %v2201
    %v2514 = vpack.c.b16 %v2210, %v2202
    %v2515 = vpack.c.b16 %v2211, %v2203
    %v2516 = vpack.c.b16 %v2220, %v2212
    %v2517 = vpack.c.b16 %v2221, %v2213
    %v2518 = vpack.c.b16 %v2222, %v2214
    %v2519 = vpack.c.b16 %v2223, %v2215
    %v2520 = vpack.c.b16 %v2224, %v2216
    %v2521 = vpack.c.b16 %v2225, %v2217
    %v2522 = vpack.c.b16 %v2226, %v2218
    %v2523 = vpack.c.b16 %v2227, %v2219
    %v2524 = vpack.c.b16 %v2236, %v2228
    %v2525 = vpack.c.b16 %v2237, %v2229
    %v2526 = vpack.c.b16 %v2238, %v2230
    %v2527 = vpack.c.b16 %v2239, %v2231
    %v2528 = vpack.c.b16 %v2240, %v2232
    %v2529 = vpack.c.b16 %v2241, %v2233
    %v2530 = vpack.c.b16 %v2242, %v2234
    %v2531 = vpack.c.b16 %v2243, %v2235
    %v2532 = vpack.c.b16 %v2252, %v2244
    %v2533 = vpack.c.b16 %v2253, %v2245
    %v2534 = vpack.c.b16 %v2254, %v2246
    %v2535 = vpack.c.b16 %v2255, %v2247
    %v2536 = vpack.c.b16 %v2256, %v2248
    %v2537 = vpack.c.b16 %v2257, %v2249
    %v2538 = vpack.c.b16 %v2258, %v2250
    %v2539 = vpack.c.b16 %v2259, %v2251
    %v2540 = vpack.c.b16 %v2268, %v2260
    %v2541 = vpack.c.b16 %v2269, %v2261
    %v2542 = vpack.c.b16 %v2270, %v2262
    %v2543 = vpack.c.b16 %v2271, %v2263
    %v2544 = vpack.c.b16 %v2272, %v2264
    %v2545 = vpack.c.b16 %v2273, %v2265
    %v2546 = vpack.c.b16 %v2274, %v2266
    %v2547 = vpack.c.b16 %v2275, %v2267
    %v2548 = vpack.c.b16 %v2284, %v2276
    %v2549 = vpack.c.b16 %v2285, %v2277
    %v2550 = vpack.c.b16 %v2286, %v2278
    %v2551 = vpack.c.b16 %v2287, %v2279
    %v2552 = vpack.c.b16 %v2288, %v2280
    %v2553 = vpack.c.b16 %v2289, %v2281
    %v2554 = vpack.c.b16 %v2290, %v2282
    %v2555 = vpack.c.b16 %v2291, %v2283
    %v2556 = vpack.c.b16 %v2300, %v2292
    %v2557 = vpack.c.b16 %v2301, %v2293
    %v2558 = vpack.c.b16 %v2302, %v2294
    %v2559 = vpack.c.b16 %v2303, %v2295
    %v2560 = vpack.c.b16 %v2304, %v2296
    %v2561 = vpack.c.b16 %v2305, %v2297
    %v2562 = vpack.c.b16 %v2306, %v2298
    %v2563 = vpack.c.b16 %v2307, %v2299
    %2820 = vmatprep.subr.bf16.mxu0 %v2309
    %2821 = vmatpush1.bf16.msra.mxu0 %v2308
    %2822 = vmatprep.subr.bf16.mxu0 %v2317
    %2823 = vmatpush1.bf16.msra.mxu0 %v2316
    %2824 = vmatprep.subr.bf16.mxu0 %v2325
    %2825 = vmatpush1.bf16.msra.mxu0 %v2324
    %2826 = vmatprep.subr.bf16.mxu0 %v2333
    %2827 = vmatpush1.bf16.msra.mxu0 %v2332
    %2828 = vmatprep.subr.bf16.mxu0 %v2341
    %2829 = vmatpush1.bf16.msra.mxu0 %v2340
    %2830 = vmatprep.subr.bf16.mxu0 %v2349
    %2831 = vmatpush1.bf16.msra.mxu0 %v2348
    %2832 = vmatprep.subr.bf16.mxu0 %v2357
    %2833 = vmatpush1.bf16.msra.mxu0 %v2356
    %2834 = vmatprep.subr.bf16.mxu0 %v2365
    %2835 = vmatpush1.bf16.msra.mxu0 %v2364
    %2836 = vmatprep.subr.bf16.mxu0 %v2373
    %2837 = vmatpush1.bf16.msra.mxu0 %v2372
    %2838 = vmatprep.subr.bf16.mxu0 %v2381
    %2839 = vmatpush1.bf16.msra.mxu0 %v2380
    %2840 = vmatprep.subr.bf16.mxu0 %v2389
    %2841 = vmatpush1.bf16.msra.mxu0 %v2388
    %2842 = vmatprep.subr.bf16.mxu0 %v2397
    %2843 = vmatpush1.bf16.msra.mxu0 %v2396
    %2844 = vmatprep.subr.bf16.mxu0 %v2405
    %2845 = vmatpush1.bf16.msra.mxu0 %v2404
    %2846 = vmatprep.subr.bf16.mxu0 %v2413
    %2847 = vmatpush1.bf16.msra.mxu0 %v2412
    %2848 = vmatprep.subr.bf16.mxu0 %v2421
    %2849 = vmatpush1.bf16.msra.mxu0 %v2420
    %2850 = vmatprep.subr.bf16.mxu0 %v2429
    %2851 = vmatpush1.bf16.msra.mxu0 %v2428
    %2852 = vmatprep.mubr.bf16.mxu0 %v1239
    %2853 = vmatmul.mubr.bf16.gmra.mrb[0].mxu0 %v1238
    %v2854 = vpop.f32.mrb[0].mxu0
    %v2855 = vadd.f32 %v1503, %v2854
    %v2856 = vpop.f32.mrb[0].mxu0
    %v2857 = vadd.f32 %v1507, %v2856
    %v2858 = vpop.f32.mrb[0].mxu0
    %v2859 = vpop.f32.mrb[0].mxu0
    %2860 = vdwg.mxu0
    %2861 = vmatprep.subr.bf16.mxu0 %v2437
    %2862 = vmatpush1.bf16.msra.mxu0 %v2436
    %2863 = vmatprep.subr.bf16.mxu0 %v2445
    %2864 = vmatpush1.bf16.msra.mxu0 %v2444
    %2865 = vmatprep.subr.bf16.mxu0 %v2453
    %2866 = vmatpush1.bf16.msra.mxu0 %v2452
    %2867 = vmatprep.subr.bf16.mxu0 %v2461
    %2868 = vmatpush1.bf16.msra.mxu0 %v2460
    %2869 = vmatprep.subr.bf16.mxu0 %v2469
    %2870 = vmatpush1.bf16.msra.mxu0 %v2468
    %2871 = vmatprep.subr.bf16.mxu0 %v2477
    %2872 = vmatpush1.bf16.msra.mxu0 %v2476
    %2873 = vmatprep.subr.bf16.mxu0 %v2485
    %2874 = vmatpush1.bf16.msra.mxu0 %v2484
    %2875 = vmatprep.subr.bf16.mxu0 %v2493
    %2876 = vmatpush1.bf16.msra.mxu0 %v2492
    %2877 = vmatprep.subr.bf16.mxu0 %v2501
    %2878 = vmatpush1.bf16.msra.mxu0 %v2500
    %2879 = vmatprep.subr.bf16.mxu0 %v2509
    %2880 = vmatpush1.bf16.msra.mxu0 %v2508
    %2881 = vmatprep.subr.bf16.mxu0 %v2517
    %2882 = vmatpush1.bf16.msra.mxu0 %v2516
    %2883 = vmatprep.subr.bf16.mxu0 %v2525
    %2884 = vmatpush1.bf16.msra.mxu0 %v2524
    %2885 = vmatprep.subr.bf16.mxu0 %v2533
    %2886 = vmatpush1.bf16.msra.mxu0 %v2532
    %2887 = vmatprep.subr.bf16.mxu0 %v2541
    %2888 = vmatpush1.bf16.msra.mxu0 %v2540
    %2889 = vmatprep.subr.bf16.mxu0 %v2549
    %2890 = vmatpush1.bf16.msra.mxu0 %v2548
    %2891 = vmatprep.subr.bf16.mxu0 %v2557
    %2892 = vmatpush1.bf16.msra.mxu0 %v2556
    %2893 = vmatprep.mubr.bf16.mxu0 %v1241
    %2894 = vmatmul.mubr.bf16.gmra.mrb[0].mxu0 %v1240
    %v2895 = vpop.f32.mrb[0].mxu0
    %v2896 = vadd.f32 %v2855, %v2895
    %v2897 = vpop.f32.mrb[0].mxu0
    %v2898 = vadd.f32 %v2857, %v2897
    %v2899 = vpop.f32.mrb[0].mxu0
    %v2900 = vpop.f32.mrb[0].mxu0
    %2901 = vdwg.mxu0
    %2902 = vmatprep.subr.bf16.mxu0 %v2311
    %2903 = vmatpush1.bf16.msra.mxu0 %v2310
    %2904 = vmatprep.subr.bf16.mxu0 %v2319
    %2905 = vmatpush1.bf16.msra.mxu0 %v2318
    %2906 = vmatprep.subr.bf16.mxu0 %v2327
    %2907 = vmatpush1.bf16.msra.mxu0 %v2326
    %2908 = vmatprep.subr.bf16.mxu0 %v2335
    %2909 = vmatpush1.bf16.msra.mxu0 %v2334
    %2910 = vmatprep.subr.bf16.mxu0 %v2343
    %2911 = vmatpush1.bf16.msra.mxu0 %v2342
    %2912 = vmatprep.subr.bf16.mxu0 %v2351
    %2913 = vmatpush1.bf16.msra.mxu0 %v2350
    %2914 = vmatprep.subr.bf16.mxu0 %v2359
    %2915 = vmatpush1.bf16.msra.mxu0 %v2358
    %2916 = vmatprep.subr.bf16.mxu0 %v2367
    %2917 = vmatpush1.bf16.msra.mxu0 %v2366
    %2918 = vmatprep.subr.bf16.mxu0 %v2375
    %2919 = vmatpush1.bf16.msra.mxu0 %v2374
    %2920 = vmatprep.subr.bf16.mxu0 %v2383
    %2921 = vmatpush1.bf16.msra.mxu0 %v2382
    %2922 = vmatprep.subr.bf16.mxu0 %v2391
    %2923 = vmatpush1.bf16.msra.mxu0 %v2390
    %2924 = vmatprep.subr.bf16.mxu0 %v2399
    %2925 = vmatpush1.bf16.msra.mxu0 %v2398
    %2926 = vmatprep.subr.bf16.mxu0 %v2407
    %2927 = vmatpush1.bf16.msra.mxu0 %v2406
    %2928 = vmatprep.subr.bf16.mxu0 %v2415
    %2929 = vmatpush1.bf16.msra.mxu0 %v2414
    %2930 = vmatprep.subr.bf16.mxu0 %v2423
    %2931 = vmatpush1.bf16.msra.mxu0 %v2422
    %2932 = vmatprep.subr.bf16.mxu0 %v2431
    %2933 = vmatpush1.bf16.msra.mxu0 %v2430
    %2934 = vmatprep.mubr.bf16.mxu0 %v1239
    %2935 = vmatmul.mubr.bf16.gmra.mrb[0].mxu0 %v1238
    %v2936 = vpop.f32.mrb[0].mxu0
    %v2937 = vadd.f32 %v1511, %v2936
    %v2938 = vpop.f32.mrb[0].mxu0
    %v2939 = vadd.f32 %v1515, %v2938
    %v2940 = vpop.f32.mrb[0].mxu0
    %v2941 = vpop.f32.mrb[0].mxu0
    %2942 = vdwg.mxu0
    %2943 = vmatprep.subr.bf16.mxu0 %v2439
    %2944 = vmatpush1.bf16.msra.mxu0 %v2438
    %2945 = vmatprep.subr.bf16.mxu0 %v2447
    %2946 = vmatpush1.bf16.msra.mxu0 %v2446
    %2947 = vmatprep.subr.bf16.mxu0 %v2455
    %2948 = vmatpush1.bf16.msra.mxu0 %v2454
    %2949 = vmatprep.subr.bf16.mxu0 %v2463
    %2950 = vmatpush1.bf16.msra.mxu0 %v2462
    %2951 = vmatprep.subr.bf16.mxu0 %v2471
    %2952 = vmatpush1.bf16.msra.mxu0 %v2470
    %2953 = vmatprep.subr.bf16.mxu0 %v2479
    %2954 = vmatpush1.bf16.msra.mxu0 %v2478
    %2955 = vmatprep.subr.bf16.mxu0 %v2487
    %2956 = vmatpush1.bf16.msra.mxu0 %v2486
    %2957 = vmatprep.subr.bf16.mxu0 %v2495
    %2958 = vmatpush1.bf16.msra.mxu0 %v2494
    %2959 = vmatprep.subr.bf16.mxu0 %v2503
    %2960 = vmatpush1.bf16.msra.mxu0 %v2502
    %2961 = vmatprep.subr.bf16.mxu0 %v2511
    %2962 = vmatpush1.bf16.msra.mxu0 %v2510
    %2963 = vmatprep.subr.bf16.mxu0 %v2519
    %2964 = vmatpush1.bf16.msra.mxu0 %v2518
    %2965 = vmatprep.subr.bf16.mxu0 %v2527
    %2966 = vmatpush1.bf16.msra.mxu0 %v2526
    %2967 = vmatprep.subr.bf16.mxu0 %v2535
    %2968 = vmatpush1.bf16.msra.mxu0 %v2534
    %2969 = vmatprep.subr.bf16.mxu0 %v2543
    %2970 = vmatpush1.bf16.msra.mxu0 %v2542
    %2971 = vmatprep.subr.bf16.mxu0 %v2551
    %2972 = vmatpush1.bf16.msra.mxu0 %v2550
    %2973 = vmatprep.subr.bf16.mxu0 %v2559
    %2974 = vmatpush1.bf16.msra.mxu0 %v2558
    %2975 = vmatprep.mubr.bf16.mxu0 %v1241
    %2976 = vmatmul.mubr.bf16.gmra.mrb[0].mxu0 %v1240
    %v2977 = vpop.f32.mrb[0].mxu0
    %v2978 = vadd.f32 %v2937, %v2977
    %v2979 = vpop.f32.mrb[0].mxu0
    %v2980 = vadd.f32 %v2939, %v2979
    %v2981 = vpop.f32.mrb[0].mxu0
    %v2982 = vpop.f32.mrb[0].mxu0
    %2983 = vdwg.mxu0
    %2984 = vmatprep.subr.bf16.mxu0 %v2313
    %2985 = vmatpush1.bf16.msra.mxu0 %v2312
    %2986 = vmatprep.subr.bf16.mxu0 %v2321
    %2987 = vmatpush1.bf16.msra.mxu0 %v2320
    %2988 = vmatprep.subr.bf16.mxu0 %v2329
    %2989 = vmatpush1.bf16.msra.mxu0 %v2328
    %2990 = vmatprep.subr.bf16.mxu0 %v2337
    %2991 = vmatpush1.bf16.msra.mxu0 %v2336
    %2992 = vmatprep.subr.bf16.mxu0 %v2345
    %2993 = vmatpush1.bf16.msra.mxu0 %v2344
    %2994 = vmatprep.subr.bf16.mxu0 %v2353
    %2995 = vmatpush1.bf16.msra.mxu0 %v2352
    %2996 = vmatprep.subr.bf16.mxu0 %v2361
    %2997 = vmatpush1.bf16.msra.mxu0 %v2360
    %2998 = vmatprep.subr.bf16.mxu0 %v2369
    %2999 = vmatpush1.bf16.msra.mxu0 %v2368
    %3000 = vmatprep.subr.bf16.mxu0 %v2377
    %3001 = vmatpush1.bf16.msra.mxu0 %v2376
    %3002 = vmatprep.subr.bf16.mxu0 %v2385
    %3003 = vmatpush1.bf16.msra.mxu0 %v2384
    %3004 = vmatprep.subr.bf16.mxu0 %v2393
    %3005 = vmatpush1.bf16.msra.mxu0 %v2392
    %3006 = vmatprep.subr.bf16.mxu0 %v2401
    %3007 = vmatpush1.bf16.msra.mxu0 %v2400
    %3008 = vmatprep.subr.bf16.mxu0 %v2409
    %3009 = vmatpush1.bf16.msra.mxu0 %v2408
    %3010 = vmatprep.subr.bf16.mxu0 %v2417
    %3011 = vmatpush1.bf16.msra.mxu0 %v2416
    %3012 = vmatprep.subr.bf16.mxu0 %v2425
    %3013 = vmatpush1.bf16.msra.mxu0 %v2424
    %3014 = vmatprep.subr.bf16.mxu0 %v2433
    %3015 = vmatpush1.bf16.msra.mxu0 %v2432
    %3016 = vmatprep.mubr.bf16.mxu0 %v1239
    %3017 = vmatmul.mubr.bf16.gmra.mrb[0].mxu0 %v1238
    %v3018 = vpop.f32.mrb[0].mxu0
    %v3019 = vadd.f32 %v1519, %v3018
    %v3020 = vpop.f32.mrb[0].mxu0
    %v3021 = vadd.f32 %v1523, %v3020
    %v3022 = vpop.f32.mrb[0].mxu0
    %v3023 = vpop.f32.mrb[0].mxu0
    %3024 = vdwg.mxu0
    %3025 = vmatprep.subr.bf16.mxu0 %v2441
    %3026 = vmatpush1.bf16.msra.mxu0 %v2440
    %3027 = vmatprep.subr.bf16.mxu0 %v2449
    %3028 = vmatpush1.bf16.msra.mxu0 %v2448
    %3029 = vmatprep.subr.bf16.mxu0 %v2457
    %3030 = vmatpush1.bf16.msra.mxu0 %v2456
    %3031 = vmatprep.subr.bf16.mxu0 %v2465
    %3032 = vmatpush1.bf16.msra.mxu0 %v2464
    %3033 = vmatprep.subr.bf16.mxu0 %v2473
    %3034 = vmatpush1.bf16.msra.mxu0 %v2472
    %3035 = vmatprep.subr.bf16.mxu0 %v2481
    %3036 = vmatpush1.bf16.msra.mxu0 %v2480
    %3037 = vmatprep.subr.bf16.mxu0 %v2489
    %3038 = vmatpush1.bf16.msra.mxu0 %v2488
    %3039 = vmatprep.subr.bf16.mxu0 %v2497
    %3040 = vmatpush1.bf16.msra.mxu0 %v2496
    %3041 = vmatprep.subr.bf16.mxu0 %v2505
    %3042 = vmatpush1.bf16.msra.mxu0 %v2504
    %3043 = vmatprep.subr.bf16.mxu0 %v2513
    %3044 = vmatpush1.bf16.msra.mxu0 %v2512
    %3045 = vmatprep.subr.bf16.mxu0 %v2521
    %3046 = vmatpush1.bf16.msra.mxu0 %v2520
    %3047 = vmatprep.subr.bf16.mxu0 %v2529
    %3048 = vmatpush1.bf16.msra.mxu0 %v2528
    %3049 = vmatprep.subr.bf16.mxu0 %v2537
    %3050 = vmatpush1.bf16.msra.mxu0 %v2536
    %3051 = vmatprep.subr.bf16.mxu0 %v2545
    %3052 = vmatpush1.bf16.msra.mxu0 %v2544
    %3053 = vmatprep.subr.bf16.mxu0 %v2553
    %3054 = vmatpush1.bf16.msra.mxu0 %v2552
    %3055 = vmatprep.subr.bf16.mxu0 %v2561
    %3056 = vmatpush1.bf16.msra.mxu0 %v2560
    %3057 = vmatprep.mubr.bf16.mxu0 %v1241
    %3058 = vmatmul.mubr.bf16.gmra.mrb[0].mxu0 %v1240
    %v3059 = vpop.f32.mrb[0].mxu0
    %v3060 = vadd.f32 %v3019, %v3059
    %v3061 = vpop.f32.mrb[0].mxu0
    %v3062 = vadd.f32 %v3021, %v3061
    %v3063 = vpop.f32.mrb[0].mxu0
    %v3064 = vpop.f32.mrb[0].mxu0
    %3065 = vdwg.mxu0
    %3066 = vmatprep.subr.bf16.mxu0 %v2315
    %3067 = vmatpush1.bf16.msra.mxu0 %v2314
    %3068 = vmatprep.subr.bf16.mxu0 %v2323
    %3069 = vmatpush1.bf16.msra.mxu0 %v2322
    %3070 = vmatprep.subr.bf16.mxu0 %v2331
    %3071 = vmatpush1.bf16.msra.mxu0 %v2330
    %3072 = vmatprep.subr.bf16.mxu0 %v2339
    %3073 = vmatpush1.bf16.msra.mxu0 %v2338
    %3074 = vmatprep.subr.bf16.mxu0 %v2347
    %3075 = vmatpush1.bf16.msra.mxu0 %v2346
    %3076 = vmatprep.subr.bf16.mxu0 %v2355
    %3077 = vmatpush1.bf16.msra.mxu0 %v2354
    %3078 = vmatprep.subr.bf16.mxu0 %v2363
    %3079 = vmatpush1.bf16.msra.mxu0 %v2362
    %3080 = vmatprep.subr.bf16.mxu0 %v2371
    %3081 = vmatpush1.bf16.msra.mxu0 %v2370
    %3082 = vmatprep.subr.bf16.mxu0 %v2379
    %3083 = vmatpush1.bf16.msra.mxu0 %v2378
    %3084 = vmatprep.subr.bf16.mxu0 %v2387
    %3085 = vmatpush1.bf16.msra.mxu0 %v2386
    %3086 = vmatprep.subr.bf16.mxu0 %v2395
    %3087 = vmatpush1.bf16.msra.mxu0 %v2394
    %3088 = vmatprep.subr.bf16.mxu0 %v2403
    %3089 = vmatpush1.bf16.msra.mxu0 %v2402
    %3090 = vmatprep.subr.bf16.mxu0 %v2411
    %3091 = vmatpush1.bf16.msra.mxu0 %v2410
    %3092 = vmatprep.subr.bf16.mxu0 %v2419
    %3093 = vmatpush1.bf16.msra.mxu0 %v2418
    %3094 = vmatprep.subr.bf16.mxu0 %v2427
    %3095 = vmatpush1.bf16.msra.mxu0 %v2426
    %3096 = vmatprep.subr.bf16.mxu0 %v2435
    %3097 = vmatpush1.bf16.msra.mxu0 %v2434
    %3098 = vmatprep.mubr.bf16.mxu0 %v1239
    %3099 = vmatmul.mubr.bf16.gmra.mrb[0].mxu0 %v1238
    %v3100 = vpop.f32.mrb[0].mxu0
    %v3101 = vadd.f32 %v1527, %v3100
    %v3102 = vpop.f32.mrb[0].mxu0
    %v3103 = vadd.f32 %v1531, %v3102
    %v3104 = vpop.f32.mrb[0].mxu0
    %v3105 = vpop.f32.mrb[0].mxu0
    %3106 = vdwg.mxu0
    %3107 = vmatprep.subr.bf16.mxu0 %v2443
    %3108 = vmatpush1.bf16.msra.mxu0 %v2442
    %3109 = vmatprep.subr.bf16.mxu0 %v2451
    %3110 = vmatpush1.bf16.msra.mxu0 %v2450
    %3111 = vmatprep.subr.bf16.mxu0 %v2459
    %3112 = vmatpush1.bf16.msra.mxu0 %v2458
    %3113 = vmatprep.subr.bf16.mxu0 %v2467
    %3114 = vmatpush1.bf16.msra.mxu0 %v2466
    %3115 = vmatprep.subr.bf16.mxu0 %v2475
    %3116 = vmatpush1.bf16.msra.mxu0 %v2474
    %3117 = vmatprep.subr.bf16.mxu0 %v2483
    %3118 = vmatpush1.bf16.msra.mxu0 %v2482
    %3119 = vmatprep.subr.bf16.mxu0 %v2491
    %3120 = vmatpush1.bf16.msra.mxu0 %v2490
    %3121 = vmatprep.subr.bf16.mxu0 %v2499
    %3122 = vmatpush1.bf16.msra.mxu0 %v2498
    %3123 = vmatprep.subr.bf16.mxu0 %v2507
    %3124 = vmatpush1.bf16.msra.mxu0 %v2506
    %3125 = vmatprep.subr.bf16.mxu0 %v2515
    %3126 = vmatpush1.bf16.msra.mxu0 %v2514
    %3127 = vmatprep.subr.bf16.mxu0 %v2523
    %3128 = vmatpush1.bf16.msra.mxu0 %v2522
    %3129 = vmatprep.subr.bf16.mxu0 %v2531
    %3130 = vmatpush1.bf16.msra.mxu0 %v2530
    %3131 = vmatprep.subr.bf16.mxu0 %v2539
    %3132 = vmatpush1.bf16.msra.mxu0 %v2538
    %3133 = vmatprep.subr.bf16.mxu0 %v2547
    %3134 = vmatpush1.bf16.msra.mxu0 %v2546
    %3135 = vmatprep.subr.bf16.mxu0 %v2555
    %3136 = vmatpush1.bf16.msra.mxu0 %v2554
    %3137 = vmatprep.subr.bf16.mxu0 %v2563
    %3138 = vmatpush1.bf16.msra.mxu0 %v2562
    %3139 = vmatprep.mubr.bf16.mxu0 %v1241
    %3140 = vmatmul.mubr.bf16.gmra.mrb[0].mxu0 %v1240
    %v3141 = vpop.f32.mrb[0].mxu0
    %v3142 = vadd.f32 %v3101, %v3141
    %v3143 = vpop.f32.mrb[0].mxu0
    %v3144 = vadd.f32 %v3103, %v3143
    %v3145 = vpop.f32.mrb[0].mxu0
    %v3146 = vpop.f32.mrb[0].mxu0
    %3147 = vdwg.mxu0
    %v3148 = vrot.slane %v2896, 4
    %v3149 = vadd.f32 %v2896, %v3148
    %v3150 = vrot.slane %v3149, 2
    %v3151 = vadd.f32 %v3149, %v3150
    %v3152 = vrot.slane %v3151, 1
    %v3153 = vadd.f32 %v3151, %v3152
    %v3154 = vrot.slane %v2898, 4
    %v3155 = vadd.f32 %v2898, %v3154
    %v3156 = vrot.slane %v3155, 2
    %v3157 = vadd.f32 %v3155, %v3156
    %v3158 = vrot.slane %v3157, 1
    %v3159 = vadd.f32 %v3157, %v3158
    %v3160 = vrot.slane %v2978, 4
    %v3161 = vadd.f32 %v2978, %v3160
    %v3162 = vrot.slane %v3161, 2
    %v3163 = vadd.f32 %v3161, %v3162
    %v3164 = vrot.slane %v3163, 1
    %v3165 = vadd.f32 %v3163, %v3164
    %v3166 = vrot.slane %v2980, 4
    %v3167 = vadd.f32 %v2980, %v3166
    %v3168 = vrot.slane %v3167, 2
    %v3169 = vadd.f32 %v3167, %v3168
    %v3170 = vrot.slane %v3169, 1
    %v3171 = vadd.f32 %v3169, %v3170
    %v3172 = vrot.slane %v3060, 4
    %v3173 = vadd.f32 %v3060, %v3172
    %v3174 = vrot.slane %v3173, 2
    %v3175 = vadd.f32 %v3173, %v3174
    %v3176 = vrot.slane %v3175, 1
    %v3177 = vadd.f32 %v3175, %v3176
    %v3178 = vrot.slane %v3062, 4
    %v3179 = vadd.f32 %v3062, %v3178
    %v3180 = vrot.slane %v3179, 2
    %v3181 = vadd.f32 %v3179, %v3180
    %v3182 = vrot.slane %v3181, 1
    %v3183 = vadd.f32 %v3181, %v3182
    %v3184 = vrot.slane %v3142, 4
    %v3185 = vadd.f32 %v3142, %v3184
    %v3186 = vrot.slane %v3185, 2
    %v3187 = vadd.f32 %v3185, %v3186
    %v3188 = vrot.slane %v3187, 1
    %v3189 = vadd.f32 %v3187, %v3188
    %v3190 = vrot.slane %v3144, 4
    %v3191 = vadd.f32 %v3144, %v3190
    %v3192 = vrot.slane %v3191, 2
    %v3193 = vadd.f32 %v3191, %v3192
    %v3194 = vrot.slane %v3193, 1
    %v3195 = vadd.f32 %v3193, %v3194
    %v3196 = vmul.f32 %v2896, %v2896
    %v3197 = vmul.f32 %v2898, %v2898
    %v3198 = vmul.f32 %v2978, %v2978
    %v3199 = vmul.f32 %v2980, %v2980
    %v3200 = vmul.f32 %v3060, %v3060
    %v3201 = vmul.f32 %v3062, %v3062
    %v3202 = vmul.f32 %v3142, %v3142
    %v3203 = vmul.f32 %v3144, %v3144
    %v3204 = vrot.slane %v3196, 4
    %v3205 = vadd.f32 %v3196, %v3204
    %v3206 = vrot.slane %v3205, 2
    %v3207 = vadd.f32 %v3205, %v3206
    %v3208 = vrot.slane %v3207, 1
    %v3209 = vadd.f32 %v3207, %v3208
    %v3210 = vrot.slane %v3197, 4
    %v3211 = vadd.f32 %v3197, %v3210
    %v3212 = vrot.slane %v3211, 2
    %v3213 = vadd.f32 %v3211, %v3212
    %v3214 = vrot.slane %v3213, 1
    %v3215 = vadd.f32 %v3213, %v3214
    %v3216 = vrot.slane %v3198, 4
    %v3217 = vadd.f32 %v3198, %v3216
    %v3218 = vrot.slane %v3217, 2
    %v3219 = vadd.f32 %v3217, %v3218
    %v3220 = vrot.slane %v3219, 1
    %v3221 = vadd.f32 %v3219, %v3220
    %v3222 = vrot.slane %v3199, 4
    %v3223 = vadd.f32 %v3199, %v3222
    %v3224 = vrot.slane %v3223, 2
    %v3225 = vadd.f32 %v3223, %v3224
    %v3226 = vrot.slane %v3225, 1
    %v3227 = vadd.f32 %v3225, %v3226
    %v3228 = vrot.slane %v3200, 4
    %v3229 = vadd.f32 %v3200, %v3228
    %v3230 = vrot.slane %v3229, 2
    %v3231 = vadd.f32 %v3229, %v3230
    %v3232 = vrot.slane %v3231, 1
    %v3233 = vadd.f32 %v3231, %v3232
    %v3234 = vrot.slane %v3201, 4
    %v3235 = vadd.f32 %v3201, %v3234
    %v3236 = vrot.slane %v3235, 2
    %v3237 = vadd.f32 %v3235, %v3236
    %v3238 = vrot.slane %v3237, 1
    %v3239 = vadd.f32 %v3237, %v3238
    %v3240 = vrot.slane %v3202, 4
    %v3241 = vadd.f32 %v3202, %v3240
    %v3242 = vrot.slane %v3241, 2
    %v3243 = vadd.f32 %v3241, %v3242
    %v3244 = vrot.slane %v3243, 1
    %v3245 = vadd.f32 %v3243, %v3244
    %v3246 = vrot.slane %v3203, 4
    %v3247 = vadd.f32 %v3203, %v3246
    %v3248 = vrot.slane %v3247, 2
    %v3249 = vadd.f32 %v3247, %v3248
    %v3250 = vrot.slane %v3249, 1
    %v3251 = vadd.f32 %v3249, %v3250
    %v3252 = vmul.f32 %v3153, 0.125
    %v3253 = vmul.f32 %v3159, 0.125
    %v3254 = vmul.f32 %v3165, 0.125
    %v3255 = vmul.f32 %v3171, 0.125
    %v3256 = vmul.f32 %v3177, 0.125
    %v3257 = vmul.f32 %v3183, 0.125
    %v3258 = vmul.f32 %v3189, 0.125
    %v3259 = vmul.f32 %v3195, 0.125
    %v3260 = vmul.f32 %v3209, 0.125
    %v3261 = vmul.f32 %v3215, 0.125
    %v3262 = vmul.f32 %v3221, 0.125
    %v3263 = vmul.f32 %v3227, 0.125
    %v3264 = vmul.f32 %v3233, 0.125
    %v3265 = vmul.f32 %v3239, 0.125
    %v3266 = vmul.f32 %v3245, 0.125
    %v3267 = vmul.f32 %v3251, 0.125
    %v3268 = vmul.f32 %v3252, %v3252
    %v3269 = vmul.f32 %v3253, %v3253
    %v3270 = vmul.f32 %v3254, %v3254
    %v3271 = vmul.f32 %v3255, %v3255
    %v3272 = vmul.f32 %v3256, %v3256
    %v3273 = vmul.f32 %v3257, %v3257
    %v3274 = vmul.f32 %v3258, %v3258
    %v3275 = vmul.f32 %v3259, %v3259
    %v3276 = vsub.f32 %v3260, %v3268
    %v3277 = vsub.f32 %v3261, %v3269
    %v3278 = vsub.f32 %v3262, %v3270
    %v3279 = vsub.f32 %v3263, %v3271
    %v3280 = vsub.f32 %v3264, %v3272
    %v3281 = vsub.f32 %v3265, %v3273
    %v3282 = vsub.f32 %v3266, %v3274
    %v3283 = vsub.f32 %v3267, %v3275
    %v3284 = vmax.f32 %v3276, 0.0
    %v3285 = vmax.f32 %v3277, 0.0
    %v3286 = vmax.f32 %v3278, 0.0
    %v3287 = vmax.f32 %v3279, 0.0
    %v3288 = vmax.f32 %v3280, 0.0
    %v3289 = vmax.f32 %v3281, 0.0
    %v3290 = vmax.f32 %v3282, 0.0
    %v3291 = vmax.f32 %v3283, 0.0
    %v3292 = vsub.f32 %v2896, %v3252
    %v3293 = vsub.f32 %v2898, %v3253
    %v3294 = vsub.f32 %v2978, %v3254
    %v3295 = vsub.f32 %v2980, %v3255
    %v3296 = vsub.f32 %v3060, %v3256
    %v3297 = vsub.f32 %v3062, %v3257
    %v3298 = vsub.f32 %v3142, %v3258
    %v3299 = vsub.f32 %v3144, %v3259
    %v3300 = vadd.f32 %v3284, 1e-05
    %v3301 = vadd.f32 %v3285, 1e-05
    %v3302 = vadd.f32 %v3286, 1e-05
    %v3303 = vadd.f32 %v3287, 1e-05
    %v3304 = vadd.f32 %v3288, 1e-05
    %v3305 = vadd.f32 %v3289, 1e-05
    %v3306 = vadd.f32 %v3290, 1e-05
    %v3307 = vadd.f32 %v3291, 1e-05
    %v3308 = vrsqrt.pop %v3300
    %v3309 = vrsqrt.pop %v3301
    %v3310 = vrsqrt.pop %v3302
    %v3311 = vrsqrt.pop %v3303
    %v3312 = vrsqrt.pop %v3304
    %v3313 = vrsqrt.pop %v3305
    %v3314 = vrsqrt.pop %v3306
    %v3315 = vrsqrt.pop %v3307
    %v3316 = vmul.f32 %v3292, %v3308
    %v3317 = vmul.f32 %v3293, %v3309
    %v3318 = vmul.f32 %v3294, %v3310
    %v3319 = vmul.f32 %v3295, %v3311
    %v3320 = vmul.f32 %v3296, %v3312
    %v3321 = vmul.f32 %v3297, %v3313
    %v3322 = vmul.f32 %v3298, %v3314
    %v3323 = vmul.f32 %v3299, %v3315
    %v3324 = vld [vmem:[#allocation21] sm:$0xff]
    %v3326 = vlaneseq
    %v3327 = vshrl.u32 %v3326, 7
    %v3328 = vsub.s32 0, %v3327
    %v3329 = vrot.slane %v3324, %v3328
    %v3330 = vlaneseq
    %v3331 = vshrl.u32 %v3330, 7
    %v3332 = vsub.s32 1, %v3331
    %v3333 = vrot.slane %v3324, %v3332
    %v3334 = vlaneseq
    %v3335 = vshrl.u32 %v3334, 7
    %v3336 = vsub.s32 2, %v3335
    %v3337 = vrot.slane %v3324, %v3336
    %v3338 = vlaneseq
    %v3339 = vshrl.u32 %v3338, 7
    %v3340 = vsub.s32 3, %v3339
    %v3341 = vrot.slane %v3324, %v3340
    %v3342 = vlaneseq
    %v3343 = vshrl.u32 %v3342, 7
    %v3344 = vsub.s32 4, %v3343
    %v3345 = vrot.slane %v3324, %v3344
    %v3346 = vlaneseq
    %v3347 = vshrl.u32 %v3346, 7
    %v3348 = vsub.s32 5, %v3347
    %v3349 = vrot.slane %v3324, %v3348
    %v3350 = vlaneseq
    %v3351 = vshrl.u32 %v3350, 7
    %v3352 = vsub.s32 6, %v3351
    %v3353 = vrot.slane %v3324, %v3352
    %v3354 = vlaneseq
    %v3355 = vshrl.u32 %v3354, 7
    %v3356 = vsub.s32 7, %v3355
    %v3357 = vrot.slane %v3324, %v3356
    %v3366 = vmul.f32 %v3316, %v3329
    %v3367 = vmul.f32 %v3317, %v3333
    %v3368 = vmul.f32 %v3318, %v3337
    %v3369 = vmul.f32 %v3319, %v3341
    %v3370 = vmul.f32 %v3320, %v3345
    %v3371 = vmul.f32 %v3321, %v3349
    %v3372 = vmul.f32 %v3322, %v3353
    %v3373 = vmul.f32 %v3323, %v3357
    %v3374 = vld [vmem:[#allocation22] sm:$0xff]
    %v3376 = vlaneseq
    %v3377 = vshrl.u32 %v3376, 7
    %v3378 = vsub.s32 0, %v3377
    %v3379 = vrot.slane %v3374, %v3378
    %v3380 = vlaneseq
    %v3381 = vshrl.u32 %v3380, 7
    %v3382 = vsub.s32 1, %v3381
    %v3383 = vrot.slane %v3374, %v3382
    %v3384 = vlaneseq
    %v3385 = vshrl.u32 %v3384, 7
    %v3386 = vsub.s32 2, %v3385
    %v3387 = vrot.slane %v3374, %v3386
    %v3388 = vlaneseq
    %v3389 = vshrl.u32 %v3388, 7
    %v3390 = vsub.s32 3, %v3389
    %v3391 = vrot.slane %v3374, %v3390
    %v3392 = vlaneseq
    %v3393 = vshrl.u32 %v3392, 7
    %v3394 = vsub.s32 4, %v3393
    %v3395 = vrot.slane %v3374, %v3394
    %v3396 = vlaneseq
    %v3397 = vshrl.u32 %v3396, 7
    %v3398 = vsub.s32 5, %v3397
    %v3399 = vrot.slane %v3374, %v3398
    %v3400 = vlaneseq
    %v3401 = vshrl.u32 %v3400, 7
    %v3402 = vsub.s32 6, %v3401
    %v3403 = vrot.slane %v3374, %v3402
    %v3404 = vlaneseq
    %v3405 = vshrl.u32 %v3404, 7
    %v3406 = vsub.s32 7, %v3405
    %v3407 = vrot.slane %v3374, %v3406
    %v3416 = vadd.f32 %v3366, %v3379
    %v3417 = vadd.f32 %v3367, %v3383
    %v3418 = vadd.f32 %v3368, %v3387
    %v3419 = vadd.f32 %v3369, %v3391
    %v3420 = vadd.f32 %v3370, %v3395
    %v3421 = vadd.f32 %v3371, %v3399
    %v3422 = vadd.f32 %v3372, %v3403
    %v3423 = vadd.f32 %v3373, %v3407
    %vm3424 = vcmp.gt.f32.partialorder %v3416, 0.0
    %vm3425 = vcmp.gt.f32.partialorder %v3417, 0.0
    %vm3426 = vcmp.gt.f32.partialorder %v3418, 0.0
    %vm3427 = vcmp.gt.f32.partialorder %v3419, 0.0
    %vm3428 = vcmp.gt.f32.partialorder %v3420, 0.0
    %vm3429 = vcmp.gt.f32.partialorder %v3421, 0.0
    %vm3430 = vcmp.gt.f32.partialorder %v3422, 0.0
    %vm3431 = vcmp.gt.f32.partialorder %v3423, 0.0
    %v3432 = vmul.f32 %v3416, 0.2
    %v3433 = vmul.f32 %v3417, 0.2
    %v3434 = vmul.f32 %v3418, 0.2
    %v3435 = vmul.f32 %v3419, 0.2
    %v3436 = vmul.f32 %v3420, 0.2
    %v3437 = vmul.f32 %v3421, 0.2
    %v3438 = vmul.f32 %v3422, 0.2
    %v3439 = vmul.f32 %v3423, 0.2
    %v3440 = vsel %vm3424, %v3416, %v3432
    %v3441 = vsel %vm3425, %v3417, %v3433
    %v3442 = vsel %vm3426, %v3418, %v3434
    %v3443 = vsel %vm3427, %v3419, %v3435
    %v3444 = vsel %vm3428, %v3420, %v3436
    %v3445 = vsel %vm3429, %v3421, %v3437
    %v3446 = vsel %vm3430, %v3422, %v3438
    %v3447 = vsel %vm3431, %v3423, %v3439
    %v3448 = vpack.c.bf16 %v3440, %v3440
    %v3449 = vpack.c.bf16 %v3441, %v3441
    %v3450 = vpack.c.bf16 %v3442, %v3442
    %v3451 = vpack.c.bf16 %v3443, %v3443
    %v3452 = vpack.c.bf16 %v3444, %v3444
    %v3453 = vpack.c.bf16 %v3445, %v3445
    %v3454 = vpack.c.bf16 %v3446, %v3446
    %v3455 = vpack.c.bf16 %v3447, %v3447
    %v3456 = vld [vmem:[#allocation24] sm:$0xff]
    %v3457 = vld [vmem:[#allocation24 + $0x8] sm:$0xff]
    %v3458 = vld [vmem:[#allocation24 + $0x10] sm:$0xff]
    %v3459 = vld [vmem:[#allocation24 + $0x18] sm:$0xf]
    %v3460 = vld [vmem:[#allocation24 + $0x1c] sm:$0xff]
    %v3461 = vld [vmem:[#allocation24 + $0x24] sm:$0xff]
    %v3462 = vld [vmem:[#allocation24 + $0x2c] sm:$0xff]
    %v3463 = vld [vmem:[#allocation24 + $0x34] sm:$0xf]
    %v3464 = vld [vmem:[#allocation24 + $0x38] sm:$0xff]
    %v3465 = vld [vmem:[#allocation24 + $0x40] sm:$0xff]
    %v3466 = vld [vmem:[#allocation24 + $0x48] sm:$0xff]
    %v3467 = vld [vmem:[#allocation24 + $0x50] sm:$0xf]
    %v3468 = vld [vmem:[#allocation24 + $0x54] sm:$0xff]
    %v3469 = vld [vmem:[#allocation24 + $0x5c] sm:$0xff]
    %v3470 = vld [vmem:[#allocation24 + $0x64] sm:$0xff]
    %v3471 = vld [vmem:[#allocation24 + $0x6c] sm:$0xf]
    %v3472 = vld [vmem:[#allocation24 + $0x70] sm:$0xff]
    %v3473 = vld [vmem:[#allocation24 + $0x78] sm:$0xff]
    %v3474 = vld [vmem:[#allocation24 + $0x80] sm:$0xff]
    %v3475 = vld [vmem:[#allocation24 + $0x88] sm:$0xf]
    %v3476 = vld [vmem:[#allocation24 + $0x8c] sm:$0xff]
    %v3477 = vld [vmem:[#allocation24 + $0x94] sm:$0xff]
    %v3478 = vld [vmem:[#allocation24 + $0x9c] sm:$0xff]
    %v3479 = vld [vmem:[#allocation24 + $0xa4] sm:$0xf]
    %v3480 = vld [vmem:[#allocation24 + $0xa8] sm:$0xff]
    %v3481 = vld [vmem:[#allocation24 + $0xb0] sm:$0xff]
    %v3482 = vld [vmem:[#allocation24 + $0xb8] sm:$0xff]
    %v3483 = vld [vmem:[#allocation24 + $0xc0] sm:$0xf]
    %v3484 = vld [vmem:[#allocation24 + $0xc4] sm:$0xff]
    %v3485 = vld [vmem:[#allocation24 + $0xcc] sm:$0xff]
    %v3486 = vld [vmem:[#allocation24 + $0xd4] sm:$0xff]
    %v3487 = vld [vmem:[#allocation24 + $0xdc] sm:$0xf]
    %v3488 = vld [vmem:[#allocation24 + $0xe0] sm:$0xff]
    %v3489 = vld [vmem:[#allocation24 + $0xe8] sm:$0xff]
    %v3490 = vld [vmem:[#allocation24 + $0xf0] sm:$0xff]
    %v3491 = vld [vmem:[#allocation24 + $0xf8] sm:$0xf]
    %v3492 = vld [vmem:[#allocation24 + $0xfc] sm:$0xff]
    %v3493 = vld [vmem:[#allocation24 + $0x104] sm:$0xff]
    %v3494 = vld [vmem:[#allocation24 + $0x10c] sm:$0xff]
    %v3495 = vld [vmem:[#allocation24 + $0x114] sm:$0xf]
    %v3496 = vld [vmem:[#allocation24 + $0x118] sm:$0xff]
    %v3497 = vld [vmem:[#allocation24 + $0x120] sm:$0xff]
    %v3498 = vld [vmem:[#allocation24 + $0x128] sm:$0xff]
    %v3499 = vld [vmem:[#allocation24 + $0x130] sm:$0xf]
    %v3500 = vld [vmem:[#allocation24 + $0x134] sm:$0xff]
    %v3501 = vld [vmem:[#allocation24 + $0x13c] sm:$0xff]
    %v3502 = vld [vmem:[#allocation24 + $0x144] sm:$0xff]
    %v3503 = vld [vmem:[#allocation24 + $0x14c] sm:$0xf]
    %v3504 = vld [vmem:[#allocation24 + $0x150] sm:$0xff]
    %v3505 = vld [vmem:[#allocation24 + $0x158] sm:$0xff]
    %v3506 = vld [vmem:[#allocation24 + $0x160] sm:$0xff]
    %v3507 = vld [vmem:[#allocation24 + $0x168] sm:$0xf]
    %v3508 = vld [vmem:[#allocation24 + $0x16c] sm:$0xff]
    %v3509 = vld [vmem:[#allocation24 + $0x174] sm:$0xff]
    %v3510 = vld [vmem:[#allocation24 + $0x17c] sm:$0xff]
    %v3511 = vld [vmem:[#allocation24 + $0x184] sm:$0xf]
    %v3512 = vld [vmem:[#allocation24 + $0x188] sm:$0xff]
    %v3513 = vld [vmem:[#allocation24 + $0x190] sm:$0xff]
    %v3514 = vld [vmem:[#allocation24 + $0x198] sm:$0xff]
    %v3515 = vld [vmem:[#allocation24 + $0x1a0] sm:$0xf]
    %v3516 = vld [vmem:[#allocation24 + $0x1a4] sm:$0xff]
    %v3517 = vld [vmem:[#allocation24 + $0x1ac] sm:$0xff]
    %v3518 = vld [vmem:[#allocation24 + $0x1b4] sm:$0xff]
    %v3519 = vld [vmem:[#allocation24 + $0x1bc] sm:$0xf]
    %v3520 = vld [vmem:[#allocation24 + $0x1c0] sm:$0xff]
    %v3521 = vld [vmem:[#allocation24 + $0x1c8] sm:$0xff]
    %v3522 = vld [vmem:[#allocation24 + $0x1d0] sm:$0xff]
    %v3523 = vld [vmem:[#allocation24 + $0x1d8] sm:$0xf]
    %v3524 = vld [vmem:[#allocation24 + $0x1dc] sm:$0xff]
    %v3525 = vld [vmem:[#allocation24 + $0x1e4] sm:$0xff]
    %v3526 = vld [vmem:[#allocation24 + $0x1ec] sm:$0xff]
    %v3527 = vld [vmem:[#allocation24 + $0x1f4] sm:$0xf]
    %v3528 = vld [vmem:[#allocation24 + $0x1f8] sm:$0xff]
    %v3529 = vld [vmem:[#allocation24 + $0x200] sm:$0xff]
    %v3530 = vld [vmem:[#allocation24 + $0x208] sm:$0xff]
    %v3531 = vld [vmem:[#allocation24 + $0x210] sm:$0xf]
    %v3532 = vld [vmem:[#allocation24 + $0x214] sm:$0xff]
    %v3533 = vld [vmem:[#allocation24 + $0x21c] sm:$0xff]
    %v3534 = vld [vmem:[#allocation24 + $0x224] sm:$0xff]
    %v3535 = vld [vmem:[#allocation24 + $0x22c] sm:$0xf]
    %v3536 = vld [vmem:[#allocation24 + $0x230] sm:$0xff]
    %v3537 = vld [vmem:[#allocation24 + $0x238] sm:$0xff]
    %v3538 = vld [vmem:[#allocation24 + $0x240] sm:$0xff]
    %v3539 = vld [vmem:[#allocation24 + $0x248] sm:$0xf]
    %v3540 = vld [vmem:[#allocation24 + $0x24c] sm:$0xff]
    %v3541 = vld [vmem:[#allocation24 + $0x254] sm:$0xff]
    %v3542 = vld [vmem:[#allocation24 + $0x25c] sm:$0xff]
    %v3543 = vld [vmem:[#allocation24 + $0x264] sm:$0xf]
    %v3544 = vld [vmem:[#allocation24 + $0x268] sm:$0xff]
    %v3545 = vld [vmem:[#allocation24 + $0x270] sm:$0xff]
    %v3546 = vld [vmem:[#allocation24 + $0x278] sm:$0xff]
    %v3547 = vld [vmem:[#allocation24 + $0x280] sm:$0xf]
    %v3548 = vld [vmem:[#allocation24 + $0x284] sm:$0xff]
    %v3549 = vld [vmem:[#allocation24 + $0x28c] sm:$0xff]
    %v3550 = vld [vmem:[#allocation24 + $0x294] sm:$0xff]
    %v3551 = vld [vmem:[#allocation24 + $0x29c] sm:$0xf]
    %v3552 = vld [vmem:[#allocation24 + $0x2a0] sm:$0xff]
    %v3553 = vld [vmem:[#allocation24 + $0x2a8] sm:$0xff]
    %v3554 = vld [vmem:[#allocation24 + $0x2b0] sm:$0xff]
    %v3555 = vld [vmem:[#allocation24 + $0x2b8] sm:$0xf]
    %v3556 = vld [vmem:[#allocation24 + $0x2bc] sm:$0xff]
    %v3557 = vld [vmem:[#allocation24 + $0x2c4] sm:$0xff]
    %v3558 = vld [vmem:[#allocation24 + $0x2cc] sm:$0xff]
    %v3559 = vld [vmem:[#allocation24 + $0x2d4] sm:$0xf]
    %v3560 = vld [vmem:[#allocation24 + $0x2d8] sm:$0xff]
    %v3561 = vld [vmem:[#allocation24 + $0x2e0] sm:$0xff]
    %v3562 = vld [vmem:[#allocation24 + $0x2e8] sm:$0xff]
    %v3563 = vld [vmem:[#allocation24 + $0x2f0] sm:$0xf]
    %v3564 = vld [vmem:[#allocation24 + $0x2f4] sm:$0xff]
    %v3565 = vld [vmem:[#allocation24 + $0x2fc] sm:$0xff]
    %v3566 = vld [vmem:[#allocation24 + $0x304] sm:$0xff]
    %v3567 = vld [vmem:[#allocation24 + $0x30c] sm:$0xf]
    %v3568 = vld [vmem:[#allocation24 + $0x310] sm:$0xff]
    %v3569 = vld [vmem:[#allocation24 + $0x318] sm:$0xff]
    %v3570 = vld [vmem:[#allocation24 + $0x320] sm:$0xff]
    %v3571 = vld [vmem:[#allocation24 + $0x328] sm:$0xf]
    %v3572 = vld [vmem:[#allocation24 + $0x32c] sm:$0xff]
    %v3573 = vld [vmem:[#allocation24 + $0x334] sm:$0xff]
    %v3574 = vld [vmem:[#allocation24 + $0x33c] sm:$0xff]
    %v3575 = vld [vmem:[#allocation24 + $0x344] sm:$0xf]
    %v3576 = vld [vmem:[#allocation24 + $0x348] sm:$0xff]
    %v3577 = vld [vmem:[#allocation24 + $0x350] sm:$0xff]
    %v3578 = vld [vmem:[#allocation24 + $0x358] sm:$0xff]
    %v3579 = vld [vmem:[#allocation24 + $0x360] sm:$0xf]
    %v3580 = vld [vmem:[#allocation24 + $0x364] sm:$0xff]
    %v3581 = vld [vmem:[#allocation24 + $0x36c] sm:$0xff]
    %v3582 = vld [vmem:[#allocation24 + $0x374] sm:$0xff]
    %v3583 = vld [vmem:[#allocation24 + $0x37c] sm:$0xf]
    %v3584 = vld [vmem:[#allocation24 + $0x380] sm:$0xff]
    %v3585 = vld [vmem:[#allocation24 + $0x388] sm:$0xff]
    %v3586 = vld [vmem:[#allocation24 + $0x390] sm:$0xff]
    %v3587 = vld [vmem:[#allocation24 + $0x398] sm:$0xf]
    %v3588 = vld [vmem:[#allocation24 + $0x39c] sm:$0xff]
    %v3589 = vld [vmem:[#allocation24 + $0x3a4] sm:$0xff]
    %v3590 = vld [vmem:[#allocation24 + $0x3ac] sm:$0xff]
    %v3591 = vld [vmem:[#allocation24 + $0x3b4] sm:$0xf]
    %v3592 = vld [vmem:[#allocation24 + $0x3b8] sm:$0xff]
    %v3593 = vld [vmem:[#allocation24 + $0x3c0] sm:$0xff]
    %v3594 = vld [vmem:[#allocation24 + $0x3c8] sm:$0xff]
    %v3595 = vld [vmem:[#allocation24 + $0x3d0] sm:$0xf]
    %v3596 = vld [vmem:[#allocation24 + $0x3d4] sm:$0xff]
    %v3597 = vld [vmem:[#allocation24 + $0x3dc] sm:$0xff]
    %v3598 = vld [vmem:[#allocation24 + $0x3e4] sm:$0xff]
    %v3599 = vld [vmem:[#allocation24 + $0x3ec] sm:$0xf]
    %v3600 = vld [vmem:[#allocation24 + $0x3f0] sm:$0xff]
    %v3601 = vld [vmem:[#allocation24 + $0x3f8] sm:$0xff]
    %v3602 = vld [vmem:[#allocation24 + $0x400] sm:$0xff]
    %v3603 = vld [vmem:[#allocation24 + $0x408] sm:$0xf]
    %v3604 = vld [vmem:[#allocation24 + $0x40c] sm:$0xff]
    %v3605 = vld [vmem:[#allocation24 + $0x414] sm:$0xff]
    %v3606 = vld [vmem:[#allocation24 + $0x41c] sm:$0xff]
    %v3607 = vld [vmem:[#allocation24 + $0x424] sm:$0xf]
    %v3608 = vld [vmem:[#allocation24 + $0x428] sm:$0xff]
    %v3609 = vld [vmem:[#allocation24 + $0x430] sm:$0xff]
    %v3610 = vld [vmem:[#allocation24 + $0x438] sm:$0xff]
    %v3611 = vld [vmem:[#allocation24 + $0x440] sm:$0xf]
    %v3612 = vld [vmem:[#allocation24 + $0x444] sm:$0xff]
    %v3613 = vld [vmem:[#allocation24 + $0x44c] sm:$0xff]
    %v3614 = vld [vmem:[#allocation24 + $0x454] sm:$0xff]
    %v3615 = vld [vmem:[#allocation24 + $0x45c] sm:$0xf]
    %v3616 = vld [vmem:[#allocation24 + $0x460] sm:$0xff]
    %v3617 = vld [vmem:[#allocation24 + $0x468] sm:$0xff]
    %v3618 = vld [vmem:[#allocation24 + $0x470] sm:$0xff]
    %v3619 = vld [vmem:[#allocation24 + $0x478] sm:$0xf]
    %v3620 = vld [vmem:[#allocation24 + $0x47c] sm:$0xff]
    %v3621 = vld [vmem:[#allocation24 + $0x484] sm:$0xff]
    %v3622 = vld [vmem:[#allocation24 + $0x48c] sm:$0xff]
    %v3623 = vld [vmem:[#allocation24 + $0x494] sm:$0xf]
    %v3624 = vld [vmem:[#allocation24 + $0x498] sm:$0xff]
    %v3625 = vld [vmem:[#allocation24 + $0x4a0] sm:$0xff]
    %v3626 = vld [vmem:[#allocation24 + $0x4a8] sm:$0xff]
    %v3627 = vld [vmem:[#allocation24 + $0x4b0] sm:$0xf]
    %v3628 = vld [vmem:[#allocation24 + $0x4b4] sm:$0xff]
    %v3629 = vld [vmem:[#allocation24 + $0x4bc] sm:$0xff]
    %v3630 = vld [vmem:[#allocation24 + $0x4c4] sm:$0xff]
    %v3631 = vld [vmem:[#allocation24 + $0x4cc] sm:$0xf]
    %v3632 = vld [vmem:[#allocation24 + $0x4d0] sm:$0xff]
    %v3633 = vld [vmem:[#allocation24 + $0x4d8] sm:$0xff]
    %v3634 = vld [vmem:[#allocation24 + $0x4e0] sm:$0xff]
    %v3635 = vld [vmem:[#allocation24 + $0x4e8] sm:$0xf]
    %v3636 = vld [vmem:[#allocation24 + $0x4ec] sm:$0xff]
    %v3637 = vld [vmem:[#allocation24 + $0x4f4] sm:$0xff]
    %v3638 = vld [vmem:[#allocation24 + $0x4fc] sm:$0xff]
    %v3639 = vld [vmem:[#allocation24 + $0x504] sm:$0xf]
    %v3640 = vld [vmem:[#allocation24 + $0x508] sm:$0xff]
    %v3641 = vld [vmem:[#allocation24 + $0x510] sm:$0xff]
    %v3642 = vld [vmem:[#allocation24 + $0x518] sm:$0xff]
    %v3643 = vld [vmem:[#allocation24 + $0x520] sm:$0xf]
    %v3644 = vld [vmem:[#allocation24 + $0x524] sm:$0xff]
    %v3645 = vld [vmem:[#allocation24 + $0x52c] sm:$0xff]
    %v3646 = vld [vmem:[#allocation24 + $0x534] sm:$0xff]
    %v3647 = vld [vmem:[#allocation24 + $0x53c] sm:$0xf]
    %v3648 = vld [vmem:[#allocation24 + $0x540] sm:$0xff]
    %v3649 = vld [vmem:[#allocation24 + $0x548] sm:$0xff]
    %v3650 = vld [vmem:[#allocation24 + $0x550] sm:$0xff]
    %v3651 = vld [vmem:[#allocation24 + $0x558] sm:$0xf]
    %v3652 = vld [vmem:[#allocation24 + $0x55c] sm:$0xff]
    %v3653 = vld [vmem:[#allocation24 + $0x564] sm:$0xff]
    %v3654 = vld [vmem:[#allocation24 + $0x56c] sm:$0xff]
    %v3655 = vld [vmem:[#allocation24 + $0x574] sm:$0xf]
    %v3656 = vld [vmem:[#allocation24 + $0x578] sm:$0xff]
    %v3657 = vld [vmem:[#allocation24 + $0x580] sm:$0xff]
    %v3658 = vld [vmem:[#allocation24 + $0x588] sm:$0xff]
    %v3659 = vld [vmem:[#allocation24 + $0x590] sm:$0xf]
    %v3660 = vld [vmem:[#allocation24 + $0x594] sm:$0xff]
    %v3661 = vld [vmem:[#allocation24 + $0x59c] sm:$0xff]
    %v3662 = vld [vmem:[#allocation24 + $0x5a4] sm:$0xff]
    %v3663 = vld [vmem:[#allocation24 + $0x5ac] sm:$0xf]
    %v3664 = vld [vmem:[#allocation24 + $0x5b0] sm:$0xff]
    %v3665 = vld [vmem:[#allocation24 + $0x5b8] sm:$0xff]
    %v3666 = vld [vmem:[#allocation24 + $0x5c0] sm:$0xff]
    %v3667 = vld [vmem:[#allocation24 + $0x5c8] sm:$0xf]
    %v3668 = vld [vmem:[#allocation24 + $0x5cc] sm:$0xff]
    %v3669 = vld [vmem:[#allocation24 + $0x5d4] sm:$0xff]
    %v3670 = vld [vmem:[#allocation24 + $0x5dc] sm:$0xff]
    %v3671 = vld [vmem:[#allocation24 + $0x5e4] sm:$0xf]
    %v3672 = vld [vmem:[#allocation24 + $0x5e8] sm:$0xff]
    %v3673 = vld [vmem:[#allocation24 + $0x5f0] sm:$0xff]
    %v3674 = vld [vmem:[#allocation24 + $0x5f8] sm:$0xff]
    %v3675 = vld [vmem:[#allocation24 + $0x600] sm:$0xf]
    %v3676 = vld [vmem:[#allocation24 + $0x604] sm:$0xff]
    %v3677 = vld [vmem:[#allocation24 + $0x60c] sm:$0xff]
    %v3678 = vld [vmem:[#allocation24 + $0x614] sm:$0xff]
    %v3679 = vld [vmem:[#allocation24 + $0x61c] sm:$0xf]
    %v3680 = vld [vmem:[#allocation24 + $0x620] sm:$0xff]
    %v3681 = vld [vmem:[#allocation24 + $0x628] sm:$0xff]
    %v3682 = vld [vmem:[#allocation24 + $0x630] sm:$0xff]
    %v3683 = vld [vmem:[#allocation24 + $0x638] sm:$0xf]
    %v3684 = vld [vmem:[#allocation24 + $0x63c] sm:$0xff]
    %v3685 = vld [vmem:[#allocation24 + $0x644] sm:$0xff]
    %v3686 = vld [vmem:[#allocation24 + $0x64c] sm:$0xff]
    %v3687 = vld [vmem:[#allocation24 + $0x654] sm:$0xf]
    %v3688 = vld [vmem:[#allocation24 + $0x658] sm:$0xff]
    %v3689 = vld [vmem:[#allocation24 + $0x660] sm:$0xff]
    %v3690 = vld [vmem:[#allocation24 + $0x668] sm:$0xff]
    %v3691 = vld [vmem:[#allocation24 + $0x670] sm:$0xf]
    %v3692 = vld [vmem:[#allocation24 + $0x674] sm:$0xff]
    %v3693 = vld [vmem:[#allocation24 + $0x67c] sm:$0xff]
    %v3694 = vld [vmem:[#allocation24 + $0x684] sm:$0xff]
    %v3695 = vld [vmem:[#allocation24 + $0x68c] sm:$0xf]
    %v3696 = vld [vmem:[#allocation24 + $0x690] sm:$0xff]
    %v3697 = vld [vmem:[#allocation24 + $0x698] sm:$0xff]
    %v3698 = vld [vmem:[#allocation24 + $0x6a0] sm:$0xff]
    %v3699 = vld [vmem:[#allocation24 + $0x6a8] sm:$0xf]
    %v3700 = vld [vmem:[#allocation24 + $0x6ac] sm:$0xff]
    %v3701 = vld [vmem:[#allocation24 + $0x6b4] sm:$0xff]
    %v3702 = vld [vmem:[#allocation24 + $0x6bc] sm:$0xff]
    %v3703 = vld [vmem:[#allocation24 + $0x6c4] sm:$0xf]
    %v3704 = vld [vmem:[#allocation24 + $0x6c8] sm:$0xff]
    %v3705 = vld [vmem:[#allocation24 + $0x6d0] sm:$0xff]
    %v3706 = vld [vmem:[#allocation24 + $0x6d8] sm:$0xff]
    %v3707 = vld [vmem:[#allocation24 + $0x6e0] sm:$0xf]
    %v3708 = vld [vmem:[#allocation24 + $0x6e4] sm:$0xff]
    %v3709 = vld [vmem:[#allocation24 + $0x6ec] sm:$0xff]
    %v3710 = vld [vmem:[#allocation24 + $0x6f4] sm:$0xff]
    %v3711 = vld [vmem:[#allocation24 + $0x6fc] sm:$0xf]
    %v3712 = vld [vmem:[#allocation24 + $0x700] sm:$0xff]
    %v3713 = vld [vmem:[#allocation24 + $0x708] sm:$0xff]
    %v3714 = vld [vmem:[#allocation24 + $0x710] sm:$0xff]
    %v3715 = vld [vmem:[#allocation24 + $0x718] sm:$0xf]
    %v3716 = vld [vmem:[#allocation24 + $0x71c] sm:$0xff]
    %v3717 = vld [vmem:[#allocation24 + $0x724] sm:$0xff]
    %v3718 = vld [vmem:[#allocation24 + $0x72c] sm:$0xff]
    %v3719 = vld [vmem:[#allocation24 + $0x734] sm:$0xf]
    %v3720 = vld [vmem:[#allocation24 + $0x738] sm:$0xff]
    %v3721 = vld [vmem:[#allocation24 + $0x740] sm:$0xff]
    %v3722 = vld [vmem:[#allocation24 + $0x748] sm:$0xff]
    %v3723 = vld [vmem:[#allocation24 + $0x750] sm:$0xf]
    %v3724 = vld [vmem:[#allocation24 + $0x754] sm:$0xff]
    %v3725 = vld [vmem:[#allocation24 + $0x75c] sm:$0xff]
    %v3726 = vld [vmem:[#allocation24 + $0x764] sm:$0xff]
    %v3727 = vld [vmem:[#allocation24 + $0x76c] sm:$0xf]
    %v3728 = vld [vmem:[#allocation24 + $0x770] sm:$0xff]
    %v3729 = vld [vmem:[#allocation24 + $0x778] sm:$0xff]
    %v3730 = vld [vmem:[#allocation24 + $0x780] sm:$0xff]
    %v3731 = vld [vmem:[#allocation24 + $0x788] sm:$0xf]
    %v3732 = vld [vmem:[#allocation24 + $0x78c] sm:$0xff]
    %v3733 = vld [vmem:[#allocation24 + $0x794] sm:$0xff]
    %v3734 = vld [vmem:[#allocation24 + $0x79c] sm:$0xff]
    %v3735 = vld [vmem:[#allocation24 + $0x7a4] sm:$0xf]
    %v3736 = vld [vmem:[#allocation24 + $0x7a8] sm:$0xff]
    %v3737 = vld [vmem:[#allocation24 + $0x7b0] sm:$0xff]
    %v3738 = vld [vmem:[#allocation24 + $0x7b8] sm:$0xff]
    %v3739 = vld [vmem:[#allocation24 + $0x7c0] sm:$0xf]
    %v3740 = vld [vmem:[#allocation24 + $0x7c4] sm:$0xff]
    %v3741 = vld [vmem:[#allocation24 + $0x7cc] sm:$0xff]
    %v3742 = vld [vmem:[#allocation24 + $0x7d4] sm:$0xff]
    %v3743 = vld [vmem:[#allocation24 + $0x7dc] sm:$0xf]
    %v3744 = vld [vmem:[#allocation24 + $0x7e0] sm:$0xff]
    %v3745 = vld [vmem:[#allocation24 + $0x7e8] sm:$0xff]
    %v3746 = vld [vmem:[#allocation24 + $0x7f0] sm:$0xff]
    %v3747 = vld [vmem:[#allocation24 + $0x7f8] sm:$0xf]
    %v3748 = vld [vmem:[#allocation24 + $0x7fc] sm:$0xff]
    %v3749 = vld [vmem:[#allocation24 + $0x804] sm:$0xff]
    %v3750 = vld [vmem:[#allocation24 + $0x80c] sm:$0xff]
    %v3751 = vld [vmem:[#allocation24 + $0x814] sm:$0xf]
    %v3752 = vld [vmem:[#allocation24 + $0x818] sm:$0xff]
    %v3753 = vld [vmem:[#allocation24 + $0x820] sm:$0xff]
    %v3754 = vld [vmem:[#allocation24 + $0x828] sm:$0xff]
    %v3755 = vld [vmem:[#allocation24 + $0x830] sm:$0xf]
    %v3756 = vld [vmem:[#allocation24 + $0x834] sm:$0xff]
    %v3757 = vld [vmem:[#allocation24 + $0x83c] sm:$0xff]
    %v3758 = vld [vmem:[#allocation24 + $0x844] sm:$0xff]
    %v3759 = vld [vmem:[#allocation24 + $0x84c] sm:$0xf]
    %v3760 = vld [vmem:[#allocation24 + $0x850] sm:$0xff]
    %v3761 = vld [vmem:[#allocation24 + $0x858] sm:$0xff]
    %v3762 = vld [vmem:[#allocation24 + $0x860] sm:$0xff]
    %v3763 = vld [vmem:[#allocation24 + $0x868] sm:$0xf]
    %v3764 = vld [vmem:[#allocation24 + $0x86c] sm:$0xff]
    %v3765 = vld [vmem:[#allocation24 + $0x874] sm:$0xff]
    %v3766 = vld [vmem:[#allocation24 + $0x87c] sm:$0xff]
    %v3767 = vld [vmem:[#allocation24 + $0x884] sm:$0xf]
    %v3768 = vld [vmem:[#allocation24 + $0x888] sm:$0xff]
    %v3769 = vld [vmem:[#allocation24 + $0x890] sm:$0xff]
    %v3770 = vld [vmem:[#allocation24 + $0x898] sm:$0xff]
    %v3771 = vld [vmem:[#allocation24 + $0x8a0] sm:$0xf]
    %v3772 = vld [vmem:[#allocation24 + $0x8a4] sm:$0xff]
    %v3773 = vld [vmem:[#allocation24 + $0x8ac] sm:$0xff]
    %v3774 = vld [vmem:[#allocation24 + $0x8b4] sm:$0xff]
    %v3775 = vld [vmem:[#allocation24 + $0x8bc] sm:$0xf]
    %v3776 = vld [vmem:[#allocation24 + $0x8c0] sm:$0xff]
    %v3777 = vld [vmem:[#allocation24 + $0x8c8] sm:$0xff]
    %v3778 = vld [vmem:[#allocation24 + $0x8d0] sm:$0xff]
    %v3779 = vld [vmem:[#allocation24 + $0x8d8] sm:$0xf]
    %v3780 = vld [vmem:[#allocation24 + $0x8dc] sm:$0xff]
    %v3781 = vld [vmem:[#allocation24 + $0x8e4] sm:$0xff]
    %v3782 = vld [vmem:[#allocation24 + $0x8ec] sm:$0xff]
    %v3783 = vld [vmem:[#allocation24 + $0x8f4] sm:$0xf]
    %v3784 = vld [vmem:[#allocation24 + $0x8f8] sm:$0xff]
    %v3785 = vld [vmem:[#allocation24 + $0x900] sm:$0xff]
    %v3786 = vld [vmem:[#allocation24 + $0x908] sm:$0xff]
    %v3787 = vld [vmem:[#allocation24 + $0x910] sm:$0xf]
    %v3788 = vld [vmem:[#allocation24 + $0x914] sm:$0xff]
    %v3789 = vld [vmem:[#allocation24 + $0x91c] sm:$0xff]
    %v3790 = vld [vmem:[#allocation24 + $0x924] sm:$0xff]
    %v3791 = vld [vmem:[#allocation24 + $0x92c] sm:$0xf]
    %v3792 = vld [vmem:[#allocation24 + $0x930] sm:$0xff]
    %v3793 = vld [vmem:[#allocation24 + $0x938] sm:$0xff]
    %v3794 = vld [vmem:[#allocation24 + $0x940] sm:$0xff]
    %v3795 = vld [vmem:[#allocation24 + $0x948] sm:$0xf]
    %v3796 = vld [vmem:[#allocation24 + $0x94c] sm:$0xff]
    %v3797 = vld [vmem:[#allocation24 + $0x954] sm:$0xff]
    %v3798 = vld [vmem:[#allocation24 + $0x95c] sm:$0xff]
    %v3799 = vld [vmem:[#allocation24 + $0x964] sm:$0xf]
    %v3800 = vld [vmem:[#allocation24 + $0x968] sm:$0xff]
    %v3801 = vld [vmem:[#allocation24 + $0x970] sm:$0xff]
    %v3802 = vld [vmem:[#allocation24 + $0x978] sm:$0xff]
    %v3803 = vld [vmem:[#allocation24 + $0x980] sm:$0xf]
    %v3804 = vld [vmem:[#allocation24 + $0x984] sm:$0xff]
    %v3805 = vld [vmem:[#allocation24 + $0x98c] sm:$0xff]
    %v3806 = vld [vmem:[#allocation24 + $0x994] sm:$0xff]
    %v3807 = vld [vmem:[#allocation24 + $0x99c] sm:$0xf]
    %v3808 = vld [vmem:[#allocation24 + $0x9a0] sm:$0xff]
    %v3809 = vld [vmem:[#allocation24 + $0x9a8] sm:$0xff]
    %v3810 = vld [vmem:[#allocation24 + $0x9b0] sm:$0xff]
    %v3811 = vld [vmem:[#allocation24 + $0x9b8] sm:$0xf]
    %v3812 = vld [vmem:[#allocation24 + $0x9bc] sm:$0xff]
    %v3813 = vld [vmem:[#allocation24 + $0x9c4] sm:$0xff]
    %v3814 = vld [vmem:[#allocation24 + $0x9cc] sm:$0xff]
    %v3815 = vld [vmem:[#allocation24 + $0x9d4] sm:$0xf]
    %v3816 = vld [vmem:[#allocation24 + $0x9d8] sm:$0xff]
    %v3817 = vld [vmem:[#allocation24 + $0x9e0] sm:$0xff]
    %v3818 = vld [vmem:[#allocation24 + $0x9e8] sm:$0xff]
    %v3819 = vld [vmem:[#allocation24 + $0x9f0] sm:$0xf]
    %v3820 = vld [vmem:[#allocation24 + $0x9f4] sm:$0xff]
    %v3821 = vld [vmem:[#allocation24 + $0x9fc] sm:$0xff]
    %v3822 = vld [vmem:[#allocation24 + $0xa04] sm:$0xff]
    %v3823 = vld [vmem:[#allocation24 + $0xa0c] sm:$0xf]
    %v3824 = vld [vmem:[#allocation24 + $0xa10] sm:$0xff]
    %v3825 = vld [vmem:[#allocation24 + $0xa18] sm:$0xff]
    %v3826 = vld [vmem:[#allocation24 + $0xa20] sm:$0xff]
    %v3827 = vld [vmem:[#allocation24 + $0xa28] sm:$0xf]
    %v3828 = vld [vmem:[#allocation24 + $0xa2c] sm:$0xff]
    %v3829 = vld [vmem:[#allocation24 + $0xa34] sm:$0xff]
    %v3830 = vld [vmem:[#allocation24 + $0xa3c] sm:$0xff]
    %v3831 = vld [vmem:[#allocation24 + $0xa44] sm:$0xf]
    %v3832 = vld [vmem:[#allocation24 + $0xa48] sm:$0xff]
    %v3833 = vld [vmem:[#allocation24 + $0xa50] sm:$0xff]
    %v3834 = vld [vmem:[#allocation24 + $0xa58] sm:$0xff]
    %v3835 = vld [vmem:[#allocation24 + $0xa60] sm:$0xf]
    %v3836 = vld [vmem:[#allocation24 + $0xa64] sm:$0xff]
    %v3837 = vld [vmem:[#allocation24 + $0xa6c] sm:$0xff]
    %v3838 = vld [vmem:[#allocation24 + $0xa74] sm:$0xff]
    %v3839 = vld [vmem:[#allocation24 + $0xa7c] sm:$0xf]
    %v3840 = vld [vmem:[#allocation24 + $0xa80] sm:$0xff]
    %v3841 = vld [vmem:[#allocation24 + $0xa88] sm:$0xff]
    %v3842 = vld [vmem:[#allocation24 + $0xa90] sm:$0xff]
    %v3843 = vld [vmem:[#allocation24 + $0xa98] sm:$0xf]
    %v3844 = vld [vmem:[#allocation24 + $0xa9c] sm:$0xff]
    %v3845 = vld [vmem:[#allocation24 + $0xaa4] sm:$0xff]
    %v3846 = vld [vmem:[#allocation24 + $0xaac] sm:$0xff]
    %v3847 = vld [vmem:[#allocation24 + $0xab4] sm:$0xf]
    %v3848 = vld [vmem:[#allocation24 + $0xab8] sm:$0xff]
    %v3849 = vld [vmem:[#allocation24 + $0xac0] sm:$0xff]
    %v3850 = vld [vmem:[#allocation24 + $0xac8] sm:$0xff]
    %v3851 = vld [vmem:[#allocation24 + $0xad0] sm:$0xf]
    %v3852 = vld [vmem:[#allocation24 + $0xad4] sm:$0xff]
    %v3853 = vld [vmem:[#allocation24 + $0xadc] sm:$0xff]
    %v3854 = vld [vmem:[#allocation24 + $0xae4] sm:$0xff]
    %v3855 = vld [vmem:[#allocation24 + $0xaec] sm:$0xf]
    %v3856 = vld [vmem:[#allocation24 + $0xaf0] sm:$0xff]
    %v3857 = vld [vmem:[#allocation24 + $0xaf8] sm:$0xff]
    %v3858 = vld [vmem:[#allocation24 + $0xb00] sm:$0xff]
    %v3859 = vld [vmem:[#allocation24 + $0xb08] sm:$0xf]
    %v3860 = vld [vmem:[#allocation24 + $0xb0c] sm:$0xff]
    %v3861 = vld [vmem:[#allocation24 + $0xb14] sm:$0xff]
    %v3862 = vld [vmem:[#allocation24 + $0xb1c] sm:$0xff]
    %v3863 = vld [vmem:[#allocation24 + $0xb24] sm:$0xf]
    %v3864 = vld [vmem:[#allocation24 + $0xb28] sm:$0xff]
    %v3865 = vld [vmem:[#allocation24 + $0xb30] sm:$0xff]
    %v3866 = vld [vmem:[#allocation24 + $0xb38] sm:$0xff]
    %v3867 = vld [vmem:[#allocation24 + $0xb40] sm:$0xf]
    %v3868 = vld [vmem:[#allocation24 + $0xb44] sm:$0xff]
    %v3869 = vld [vmem:[#allocation24 + $0xb4c] sm:$0xff]
    %v3870 = vld [vmem:[#allocation24 + $0xb54] sm:$0xff]
    %v3871 = vld [vmem:[#allocation24 + $0xb5c] sm:$0xf]
    %v3872 = vld [vmem:[#allocation24 + $0xb60] sm:$0xff]
    %v3873 = vld [vmem:[#allocation24 + $0xb68] sm:$0xff]
    %v3874 = vld [vmem:[#allocation24 + $0xb70] sm:$0xff]
    %v3875 = vld [vmem:[#allocation24 + $0xb78] sm:$0xf]
    %v3876 = vld [vmem:[#allocation24 + $0xb7c] sm:$0xff]
    %v3877 = vld [vmem:[#allocation24 + $0xb84] sm:$0xff]
    %v3878 = vld [vmem:[#allocation24 + $0xb8c] sm:$0xff]
    %v3879 = vld [vmem:[#allocation24 + $0xb94] sm:$0xf]
    %v3880 = vld [vmem:[#allocation24 + $0xb98] sm:$0xff]
    %v3881 = vld [vmem:[#allocation24 + $0xba0] sm:$0xff]
    %v3882 = vld [vmem:[#allocation24 + $0xba8] sm:$0xff]
    %v3883 = vld [vmem:[#allocation24 + $0xbb0] sm:$0xf]
    %v3884 = vld [vmem:[#allocation24 + $0xbb4] sm:$0xff]
    %v3885 = vld [vmem:[#allocation24 + $0xbbc] sm:$0xff]
    %v3886 = vld [vmem:[#allocation24 + $0xbc4] sm:$0xff]
    %v3887 = vld [vmem:[#allocation24 + $0xbcc] sm:$0xf]
    %v3888 = vld [vmem:[#allocation24 + $0xbd0] sm:$0xff]
    %v3889 = vld [vmem:[#allocation24 + $0xbd8] sm:$0xff]
    %v3890 = vld [vmem:[#allocation24 + $0xbe0] sm:$0xff]
    %v3891 = vld [vmem:[#allocation24 + $0xbe8] sm:$0xf]
    %v3892 = vld [vmem:[#allocation24 + $0xbec] sm:$0xff]
    %v3893 = vld [vmem:[#allocation24 + $0xbf4] sm:$0xff]
    %v3894 = vld [vmem:[#allocation24 + $0xbfc] sm:$0xff]
    %v3895 = vld [vmem:[#allocation24 + $0xc04] sm:$0xf]
    %v3896 = vld [vmem:[#allocation24 + $0xc08] sm:$0xff]
    %v3897 = vld [vmem:[#allocation24 + $0xc10] sm:$0xff]
    %v3898 = vld [vmem:[#allocation24 + $0xc18] sm:$0xff]
    %v3899 = vld [vmem:[#allocation24 + $0xc20] sm:$0xf]
    %v3900 = vld [vmem:[#allocation24 + $0xc24] sm:$0xff]
    %v3901 = vld [vmem:[#allocation24 + $0xc2c] sm:$0xff]
    %v3902 = vld [vmem:[#allocation24 + $0xc34] sm:$0xff]
    %v3903 = vld [vmem:[#allocation24 + $0xc3c] sm:$0xf]
    %v3904 = vld [vmem:[#allocation24 + $0xc40] sm:$0xff]
    %v3905 = vld [vmem:[#allocation24 + $0xc48] sm:$0xff]
    %v3906 = vld [vmem:[#allocation24 + $0xc50] sm:$0xff]
    %v3907 = vld [vmem:[#allocation24 + $0xc58] sm:$0xf]
    %v3908 = vld [vmem:[#allocation24 + $0xc5c] sm:$0xff]
    %v3909 = vld [vmem:[#allocation24 + $0xc64] sm:$0xff]
    %v3910 = vld [vmem:[#allocation24 + $0xc6c] sm:$0xff]
    %v3911 = vld [vmem:[#allocation24 + $0xc74] sm:$0xf]
    %v3912 = vld [vmem:[#allocation24 + $0xc78] sm:$0xff]
    %v3913 = vld [vmem:[#allocation24 + $0xc80] sm:$0xff]
    %v3914 = vld [vmem:[#allocation24 + $0xc88] sm:$0xff]
    %v3915 = vld [vmem:[#allocation24 + $0xc90] sm:$0xf]
    %v3916 = vld [vmem:[#allocation24 + $0xc94] sm:$0xff]
    %v3917 = vld [vmem:[#allocation24 + $0xc9c] sm:$0xff]
    %v3918 = vld [vmem:[#allocation24 + $0xca4] sm:$0xff]
    %v3919 = vld [vmem:[#allocation24 + $0xcac] sm:$0xf]
    %v3920 = vld [vmem:[#allocation24 + $0xcb0] sm:$0xff]
    %v3921 = vld [vmem:[#allocation24 + $0xcb8] sm:$0xff]
    %v3922 = vld [vmem:[#allocation24 + $0xcc0] sm:$0xff]
    %v3923 = vld [vmem:[#allocation24 + $0xcc8] sm:$0xf]
    %v3924 = vld [vmem:[#allocation24 + $0xccc] sm:$0xff]
    %v3925 = vld [vmem:[#allocation24 + $0xcd4] sm:$0xff]
    %v3926 = vld [vmem:[#allocation24 + $0xcdc] sm:$0xff]
    %v3927 = vld [vmem:[#allocation24 + $0xce4] sm:$0xf]
    %v3928 = vld [vmem:[#allocation24 + $0xce8] sm:$0xff]
    %v3929 = vld [vmem:[#allocation24 + $0xcf0] sm:$0xff]
    %v3930 = vld [vmem:[#allocation24 + $0xcf8] sm:$0xff]
    %v3931 = vld [vmem:[#allocation24 + $0xd00] sm:$0xf]
    %v3932 = vld [vmem:[#allocation24 + $0xd04] sm:$0xff]
    %v3933 = vld [vmem:[#allocation24 + $0xd0c] sm:$0xff]
    %v3934 = vld [vmem:[#allocation24 + $0xd14] sm:$0xff]
    %v3935 = vld [vmem:[#allocation24 + $0xd1c] sm:$0xf]
    %v3936 = vld [vmem:[#allocation24 + $0xd20] sm:$0xff]
    %v3937 = vld [vmem:[#allocation24 + $0xd28] sm:$0xff]
    %v3938 = vld [vmem:[#allocation24 + $0xd30] sm:$0xff]
    %v3939 = vld [vmem:[#allocation24 + $0xd38] sm:$0xf]
    %v3940 = vld [vmem:[#allocation24 + $0xd3c] sm:$0xff]
    %v3941 = vld [vmem:[#allocation24 + $0xd44] sm:$0xff]
    %v3942 = vld [vmem:[#allocation24 + $0xd4c] sm:$0xff]
    %v3943 = vld [vmem:[#allocation24 + $0xd54] sm:$0xf]
    %v3944 = vld [vmem:[#allocation24 + $0xd58] sm:$0xff]
    %v3945 = vld [vmem:[#allocation24 + $0xd60] sm:$0xff]
    %v3946 = vld [vmem:[#allocation24 + $0xd68] sm:$0xff]
    %v3947 = vld [vmem:[#allocation24 + $0xd70] sm:$0xf]
    %v3948 = vld [vmem:[#allocation24 + $0xd74] sm:$0xff]
    %v3949 = vld [vmem:[#allocation24 + $0xd7c] sm:$0xff]
    %v3950 = vld [vmem:[#allocation24 + $0xd84] sm:$0xff]
    %v3951 = vld [vmem:[#allocation24 + $0xd8c] sm:$0xf]
    %v3952 = vld [vmem:[#allocation24 + $0xd90] sm:$0xff]
    %v3953 = vld [vmem:[#allocation24 + $0xd98] sm:$0xff]
    %v3954 = vld [vmem:[#allocation24 + $0xda0] sm:$0xff]
    %v3955 = vld [vmem:[#allocation24 + $0xda8] sm:$0xf]
    %v3956 = vld [vmem:[#allocation24 + $0xdac] sm:$0xff]
    %v3957 = vld [vmem:[#allocation24 + $0xdb4] sm:$0xff]
    %v3958 = vld [vmem:[#allocation24 + $0xdbc] sm:$0xff]
    %v3959 = vld [vmem:[#allocation24 + $0xdc4] sm:$0xf]
    %v3960 = vld [vmem:[#allocation24 + $0xdc8] sm:$0xff]
    %v3961 = vld [vmem:[#allocation24 + $0xdd0] sm:$0xff]
    %v3962 = vld [vmem:[#allocation24 + $0xdd8] sm:$0xff]
    %v3963 = vld [vmem:[#allocation24 + $0xde0] sm:$0xf]
    %v3964 = vld [vmem:[#allocation24 + $0xde4] sm:$0xff]
    %v3965 = vld [vmem:[#allocation24 + $0xdec] sm:$0xff]
    %v3966 = vld [vmem:[#allocation24 + $0xdf4] sm:$0xff]
    %v3967 = vld [vmem:[#allocation24 + $0xdfc] sm:$0xf]
    %v3968 = vld [vmem:[#allocation25] sm:$0xff]
    %v3970 = vlaneseq
    %v3971 = vshrl.u32 %v3970, 7
    %v3972 = vsub.s32 0, %v3971
    %v3973 = vrot.slane %v3968, %v3972
    %v3974 = vlaneseq
    %v3975 = vshrl.u32 %v3974, 7
    %v3976 = vsub.s32 1, %v3975
    %v3977 = vrot.slane %v3968, %v3976
    %v3978 = vlaneseq
    %v3979 = vshrl.u32 %v3978, 7
    %v3980 = vsub.s32 2, %v3979
    %v3981 = vrot.slane %v3968, %v3980
    %v3982 = vlaneseq
    %v3983 = vshrl.u32 %v3982, 7
    %v3984 = vsub.s32 3, %v3983
    %v3985 = vrot.slane %v3968, %v3984
    %v3986 = vlaneseq
    %v3987 = vshrl.u32 %v3986, 7
    %v3988 = vsub.s32 4, %v3987
    %v3989 = vrot.slane %v3968, %v3988
    %v3990 = vlaneseq
    %v3991 = vshrl.u32 %v3990, 7
    %v3992 = vsub.s32 5, %v3991
    %v3993 = vrot.slane %v3968, %v3992
    %v3994 = vlaneseq
    %v3995 = vshrl.u32 %v3994, 7
    %v3996 = vsub.s32 6, %v3995
    %v3997 = vrot.slane %v3968, %v3996
    %v4517 = vunpack.c.l.b16 %v3456
    %v4518 = vunpack.c.h.b16 %v3456
    %v4519 = vunpack.c.l.b16 %v3457
    %v4520 = vunpack.c.h.b16 %v3457
    %v4521 = vunpack.c.l.b16 %v3458
    %v4522 = vunpack.c.h.b16 %v3458
    %v4523 = vunpack.c.l.b16 %v3459
    %v4524 = vunpack.c.l.b16 %v3460
    %v4525 = vunpack.c.h.b16 %v3460
    %v4526 = vunpack.c.l.b16 %v3461
    %v4527 = vunpack.c.h.b16 %v3461
    %v4528 = vunpack.c.l.b16 %v3462
    %v4529 = vunpack.c.h.b16 %v3462
    %v4530 = vunpack.c.l.b16 %v3463
    %v4531 = vunpack.c.l.b16 %v3464
    %v4532 = vunpack.c.h.b16 %v3464
    %v4533 = vunpack.c.l.b16 %v3465
    %v4534 = vunpack.c.h.b16 %v3465
    %v4535 = vunpack.c.l.b16 %v3466
    %v4536 = vunpack.c.h.b16 %v3466
    %v4537 = vunpack.c.l.b16 %v3467
    %v4538 = vunpack.c.l.b16 %v3468
    %v4539 = vunpack.c.h.b16 %v3468
    %v4540 = vunpack.c.l.b16 %v3469
    %v4541 = vunpack.c.h.b16 %v3469
    %v4542 = vunpack.c.l.b16 %v3470
    %v4543 = vunpack.c.h.b16 %v3470
    %v4544 = vunpack.c.l.b16 %v3471
    %v4545 = vunpack.c.l.b16 %v3472
    %v4546 = vunpack.c.h.b16 %v3472
    %v4547 = vunpack.c.l.b16 %v3473
    %v4548 = vunpack.c.h.b16 %v3473
    %v4549 = vunpack.c.l.b16 %v3474
    %v4550 = vunpack.c.h.b16 %v3474
    %v4551 = vunpack.c.l.b16 %v3475
    %v4552 = vunpack.c.l.b16 %v3476
    %v4553 = vunpack.c.h.b16 %v3476
    %v4554 = vunpack.c.l.b16 %v3477
    %v4555 = vunpack.c.h.b16 %v3477
    %v4556 = vunpack.c.l.b16 %v3478
    %v4557 = vunpack.c.h.b16 %v3478
    %v4558 = vunpack.c.l.b16 %v3479
    %v4559 = vunpack.c.l.b16 %v3480
    %v4560 = vunpack.c.h.b16 %v3480
    %v4561 = vunpack.c.l.b16 %v3481
    %v4562 = vunpack.c.h.b16 %v3481
    %v4563 = vunpack.c.l.b16 %v3482
    %v4564 = vunpack.c.h.b16 %v3482
    %v4565 = vunpack.c.l.b16 %v3483
    %v4566 = vunpack.c.l.b16 %v3484
    %v4567 = vunpack.c.h.b16 %v3484
    %v4568 = vunpack.c.l.b16 %v3485
    %v4569 = vunpack.c.h.b16 %v3485
    %v4570 = vunpack.c.l.b16 %v3486
    %v4571 = vunpack.c.h.b16 %v3486
    %v4572 = vunpack.c.l.b16 %v3487
    %v4573 = vunpack.c.l.b16 %v3488
    %v4574 = vunpack.c.h.b16 %v3488
    %v4575 = vunpack.c.l.b16 %v3489
    %v4576 = vunpack.c.h.b16 %v3489
    %v4577 = vunpack.c.l.b16 %v3490
    %v4578 = vunpack.c.h.b16 %v3490
    %v4579 = vunpack.c.l.b16 %v3491
    %v4580 = vunpack.c.l.b16 %v3492
    %v4581 = vunpack.c.h.b16 %v3492
    %v4582 = vunpack.c.l.b16 %v3493
    %v4583 = vunpack.c.h.b16 %v3493
    %v4584 = vunpack.c.l.b16 %v3494
    %v4585 = vunpack.c.h.b16 %v3494
    %v4586 = vunpack.c.l.b16 %v3495
    %v4587 = vunpack.c.l.b16 %v3496
    %v4588 = vunpack.c.h.b16 %v3496
    %v4589 = vunpack.c.l.b16 %v3497
    %v4590 = vunpack.c.h.b16 %v3497
    %v4591 = vunpack.c.l.b16 %v3498
    %v4592 = vunpack.c.h.b16 %v3498
    %v4593 = vunpack.c.l.b16 %v3499
    %v4594 = vunpack.c.l.b16 %v3500
    %v4595 = vunpack.c.h.b16 %v3500
    %v4596 = vunpack.c.l.b16 %v3501
    %v4597 = vunpack.c.h.b16 %v3501
    %v4598 = vunpack.c.l.b16 %v3502
    %v4599 = vunpack.c.h.b16 %v3502
    %v4600 = vunpack.c.l.b16 %v3503
    %v4601 = vunpack.c.l.b16 %v3504
    %v4602 = vunpack.c.h.b16 %v3504
    %v4603 = vunpack.c.l.b16 %v3505
    %v4604 = vunpack.c.h.b16 %v3505
    %v4605 = vunpack.c.l.b16 %v3506
    %v4606 = vunpack.c.h.b16 %v3506
    %v4607 = vunpack.c.l.b16 %v3507
    %v4608 = vunpack.c.l.b16 %v3508
    %v4609 = vunpack.c.h.b16 %v3508
    %v4610 = vunpack.c.l.b16 %v3509
    %v4611 = vunpack.c.h.b16 %v3509
    %v4612 = vunpack.c.l.b16 %v3510
    %v4613 = vunpack.c.h.b16 %v3510
    %v4614 = vunpack.c.l.b16 %v3511
    %v4615 = vunpack.c.l.b16 %v3512
    %v4616 = vunpack.c.h.b16 %v3512
    %v4617 = vunpack.c.l.b16 %v3513
    %v4618 = vunpack.c.h.b16 %v3513
    %v4619 = vunpack.c.l.b16 %v3514
    %v4620 = vunpack.c.h.b16 %v3514
    %v4621 = vunpack.c.l.b16 %v3515
    %v4622 = vunpack.c.l.b16 %v3516
    %v4623 = vunpack.c.h.b16 %v3516
    %v4624 = vunpack.c.l.b16 %v3517
    %v4625 = vunpack.c.h.b16 %v3517
    %v4626 = vunpack.c.l.b16 %v3518
    %v4627 = vunpack.c.h.b16 %v3518
    %v4628 = vunpack.c.l.b16 %v3519
    %v4629 = vunpack.c.l.b16 %v3520
    %v4630 = vunpack.c.h.b16 %v3520
    %v4631 = vunpack.c.l.b16 %v3521
    %v4632 = vunpack.c.h.b16 %v3521
    %v4633 = vunpack.c.l.b16 %v3522
    %v4634 = vunpack.c.h.b16 %v3522
    %v4635 = vunpack.c.l.b16 %v3523
    %v4636 = vunpack.c.l.b16 %v3524
    %v4637 = vunpack.c.h.b16 %v3524
    %v4638 = vunpack.c.l.b16 %v3525
    %v4639 = vunpack.c.h.b16 %v3525
    %v4640 = vunpack.c.l.b16 %v3526
    %v4641 = vunpack.c.h.b16 %v3526
    %v4642 = vunpack.c.l.b16 %v3527
    %v4643 = vunpack.c.l.b16 %v3528
    %v4644 = vunpack.c.h.b16 %v3528
    %v4645 = vunpack.c.l.b16 %v3529
    %v4646 = vunpack.c.h.b16 %v3529
    %v4647 = vunpack.c.l.b16 %v3530
    %v4648 = vunpack.c.h.b16 %v3530
    %v4649 = vunpack.c.l.b16 %v3531
    %v4650 = vunpack.c.l.b16 %v3532
    %v4651 = vunpack.c.h.b16 %v3532
    %v4652 = vunpack.c.l.b16 %v3533
    %v4653 = vunpack.c.h.b16 %v3533
    %v4654 = vunpack.c.l.b16 %v3534
    %v4655 = vunpack.c.h.b16 %v3534
    %v4656 = vunpack.c.l.b16 %v3535
    %v4657 = vunpack.c.l.b16 %v3536
    %v4658 = vunpack.c.h.b16 %v3536
    %v4659 = vunpack.c.l.b16 %v3537
    %v4660 = vunpack.c.h.b16 %v3537
    %v4661 = vunpack.c.l.b16 %v3538
    %v4662 = vunpack.c.h.b16 %v3538
    %v4663 = vunpack.c.l.b16 %v3539
    %v4664 = vunpack.c.l.b16 %v3540
    %v4665 = vunpack.c.h.b16 %v3540
    %v4666 = vunpack.c.l.b16 %v3541
    %v4667 = vunpack.c.h.b16 %v3541
    %v4668 = vunpack.c.l.b16 %v3542
    %v4669 = vunpack.c.h.b16 %v3542
    %v4670 = vunpack.c.l.b16 %v3543
    %v4671 = vunpack.c.l.b16 %v3544
    %v4672 = vunpack.c.h.b16 %v3544
    %v4673 = vunpack.c.l.b16 %v3545
    %v4674 = vunpack.c.h.b16 %v3545
    %v4675 = vunpack.c.l.b16 %v3546
    %v4676 = vunpack.c.h.b16 %v3546
    %v4677 = vunpack.c.l.b16 %v3547
    %v4678 = vunpack.c.l.b16 %v3548
    %v4679 = vunpack.c.h.b16 %v3548
    %v4680 = vunpack.c.l.b16 %v3549
    %v4681 = vunpack.c.h.b16 %v3549
    %v4682 = vunpack.c.l.b16 %v3550
    %v4683 = vunpack.c.h.b16 %v3550
    %v4684 = vunpack.c.l.b16 %v3551
    %v4685 = vunpack.c.l.b16 %v3552
    %v4686 = vunpack.c.h.b16 %v3552
    %v4687 = vunpack.c.l.b16 %v3553
    %v4688 = vunpack.c.h.b16 %v3553
    %v4689 = vunpack.c.l.b16 %v3554
    %v4690 = vunpack.c.h.b16 %v3554
    %v4691 = vunpack.c.l.b16 %v3555
    %v4692 = vunpack.c.l.b16 %v3556
    %v4693 = vunpack.c.h.b16 %v3556
    %v4694 = vunpack.c.l.b16 %v3557
    %v4695 = vunpack.c.h.b16 %v3557
    %v4696 = vunpack.c.l.b16 %v3558
    %v4697 = vunpack.c.h.b16 %v3558
    %v4698 = vunpack.c.l.b16 %v3559
    %v4699 = vunpack.c.l.b16 %v3560
    %v4700 = vunpack.c.h.b16 %v3560
    %v4701 = vunpack.c.l.b16 %v3561
    %v4702 = vunpack.c.h.b16 %v3561
    %v4703 = vunpack.c.l.b16 %v3562
    %v4704 = vunpack.c.h.b16 %v3562
    %v4705 = vunpack.c.l.b16 %v3563
    %v4706 = vunpack.c.l.b16 %v3564
    %v4707 = vunpack.c.h.b16 %v3564
    %v4708 = vunpack.c.l.b16 %v3565
    %v4709 = vunpack.c.h.b16 %v3565
    %v4710 = vunpack.c.l.b16 %v3566
    %v4711 = vunpack.c.h.b16 %v3566
    %v4712 = vunpack.c.l.b16 %v3567
    %v4713 = vunpack.c.l.b16 %v3568
    %v4714 = vunpack.c.h.b16 %v3568
    %v4715 = vunpack.c.l.b16 %v3569
    %v4716 = vunpack.c.h.b16 %v3569
    %v4717 = vunpack.c.l.b16 %v3570
    %v4718 = vunpack.c.h.b16 %v3570
    %v4719 = vunpack.c.l.b16 %v3571
    %v4720 = vunpack.c.l.b16 %v3572
    %v4721 = vunpack.c.h.b16 %v3572
    %v4722 = vunpack.c.l.b16 %v3573
    %v4723 = vunpack.c.h.b16 %v3573
    %v4724 = vunpack.c.l.b16 %v3574
    %v4725 = vunpack.c.h.b16 %v3574
    %v4726 = vunpack.c.l.b16 %v3575
    %v4727 = vunpack.c.l.b16 %v3576
    %v4728 = vunpack.c.h.b16 %v3576
    %v4729 = vunpack.c.l.b16 %v3577
    %v4730 = vunpack.c.h.b16 %v3577
    %v4731 = vunpack.c.l.b16 %v3578
    %v4732 = vunpack.c.h.b16 %v3578
    %v4733 = vunpack.c.l.b16 %v3579
    %v4734 = vunpack.c.l.b16 %v3580
    %v4735 = vunpack.c.h.b16 %v3580
    %v4736 = vunpack.c.l.b16 %v3581
    %v4737 = vunpack.c.h.b16 %v3581
    %v4738 = vunpack.c.l.b16 %v3582
    %v4739 = vunpack.c.h.b16 %v3582
    %v4740 = vunpack.c.l.b16 %v3583
    %v4741 = vunpack.c.l.b16 %v3584
    %v4742 = vunpack.c.h.b16 %v3584
    %v4743 = vunpack.c.l.b16 %v3585
    %v4744 = vunpack.c.h.b16 %v3585
    %v4745 = vunpack.c.l.b16 %v3586
    %v4746 = vunpack.c.h.b16 %v3586
    %v4747 = vunpack.c.l.b16 %v3587
    %v4748 = vunpack.c.l.b16 %v3588
    %v4749 = vunpack.c.h.b16 %v3588
    %v4750 = vunpack.c.l.b16 %v3589
    %v4751 = vunpack.c.h.b16 %v3589
    %v4752 = vunpack.c.l.b16 %v3590
    %v4753 = vunpack.c.h.b16 %v3590
    %v4754 = vunpack.c.l.b16 %v3591
    %v4755 = vunpack.c.l.b16 %v3592
    %v4756 = vunpack.c.h.b16 %v3592
    %v4757 = vunpack.c.l.b16 %v3593
    %v4758 = vunpack.c.h.b16 %v3593
    %v4759 = vunpack.c.l.b16 %v3594
    %v4760 = vunpack.c.h.b16 %v3594
    %v4761 = vunpack.c.l.b16 %v3595
    %v4762 = vunpack.c.l.b16 %v3596
    %v4763 = vunpack.c.h.b16 %v3596
    %v4764 = vunpack.c.l.b16 %v3597
    %v4765 = vunpack.c.h.b16 %v3597
    %v4766 = vunpack.c.l.b16 %v3598
    %v4767 = vunpack.c.h.b16 %v3598
    %v4768 = vunpack.c.l.b16 %v3599
    %v4769 = vunpack.c.l.b16 %v3600
    %v4770 = vunpack.c.h.b16 %v3600
    %v4771 = vunpack.c.l.b16 %v3601
    %v4772 = vunpack.c.h.b16 %v3601
    %v4773 = vunpack.c.l.b16 %v3602
    %v4774 = vunpack.c.h.b16 %v3602
    %v4775 = vunpack.c.l.b16 %v3603
    %v4776 = vunpack.c.l.b16 %v3604
    %v4777 = vunpack.c.h.b16 %v3604
    %v4778 = vunpack.c.l.b16 %v3605
    %v4779 = vunpack.c.h.b16 %v3605
    %v4780 = vunpack.c.l.b16 %v3606
    %v4781 = vunpack.c.h.b16 %v3606
    %v4782 = vunpack.c.l.b16 %v3607
    %v4783 = vunpack.c.l.b16 %v3608
    %v4784 = vunpack.c.h.b16 %v3608
    %v4785 = vunpack.c.l.b16 %v3609
    %v4786 = vunpack.c.h.b16 %v3609
    %v4787 = vunpack.c.l.b16 %v3610
    %v4788 = vunpack.c.h.b16 %v3610
    %v4789 = vunpack.c.l.b16 %v3611
    %v4790 = vunpack.c.l.b16 %v3612
    %v4791 = vunpack.c.h.b16 %v3612
    %v4792 = vunpack.c.l.b16 %v3613
    %v4793 = vunpack.c.h.b16 %v3613
    %v4794 = vunpack.c.l.b16 %v3614
    %v4795 = vunpack.c.h.b16 %v3614
    %v4796 = vunpack.c.l.b16 %v3615
    %v4797 = vunpack.c.l.b16 %v3616
    %v4798 = vunpack.c.h.b16 %v3616
    %v4799 = vunpack.c.l.b16 %v3617
    %v4800 = vunpack.c.h.b16 %v3617
    %v4801 = vunpack.c.l.b16 %v3618
    %v4802 = vunpack.c.h.b16 %v3618
    %v4803 = vunpack.c.l.b16 %v3619
    %v4804 = vunpack.c.l.b16 %v3620
    %v4805 = vunpack.c.h.b16 %v3620
    %v4806 = vunpack.c.l.b16 %v3621
    %v4807 = vunpack.c.h.b16 %v3621
    %v4808 = vunpack.c.l.b16 %v3622
    %v4809 = vunpack.c.h.b16 %v3622
    %v4810 = vunpack.c.l.b16 %v3623
    %v4811 = vunpack.c.l.b16 %v3624
    %v4812 = vunpack.c.h.b16 %v3624
    %v4813 = vunpack.c.l.b16 %v3625
    %v4814 = vunpack.c.h.b16 %v3625
    %v4815 = vunpack.c.l.b16 %v3626
    %v4816 = vunpack.c.h.b16 %v3626
    %v4817 = vunpack.c.l.b16 %v3627
    %v4818 = vunpack.c.l.b16 %v3628
    %v4819 = vunpack.c.h.b16 %v3628
    %v4820 = vunpack.c.l.b16 %v3629
    %v4821 = vunpack.c.h.b16 %v3629
    %v4822 = vunpack.c.l.b16 %v3630
    %v4823 = vunpack.c.h.b16 %v3630
    %v4824 = vunpack.c.l.b16 %v3631
    %v4825 = vunpack.c.l.b16 %v3632
    %v4826 = vunpack.c.h.b16 %v3632
    %v4827 = vunpack.c.l.b16 %v3633
    %v4828 = vunpack.c.h.b16 %v3633
    %v4829 = vunpack.c.l.b16 %v3634
    %v4830 = vunpack.c.h.b16 %v3634
    %v4831 = vunpack.c.l.b16 %v3635
    %v4832 = vunpack.c.l.b16 %v3636
    %v4833 = vunpack.c.h.b16 %v3636
    %v4834 = vunpack.c.l.b16 %v3637
    %v4835 = vunpack.c.h.b16 %v3637
    %v4836 = vunpack.c.l.b16 %v3638
    %v4837 = vunpack.c.h.b16 %v3638
    %v4838 = vunpack.c.l.b16 %v3639
    %v4839 = vunpack.c.l.b16 %v3640
    %v4840 = vunpack.c.h.b16 %v3640
    %v4841 = vunpack.c.l.b16 %v3641
    %v4842 = vunpack.c.h.b16 %v3641
    %v4843 = vunpack.c.l.b16 %v3642
    %v4844 = vunpack.c.h.b16 %v3642
    %v4845 = vunpack.c.l.b16 %v3643
    %v4846 = vunpack.c.l.b16 %v3644
    %v4847 = vunpack.c.h.b16 %v3644
    %v4848 = vunpack.c.l.b16 %v3645
    %v4849 = vunpack.c.h.b16 %v3645
    %v4850 = vunpack.c.l.b16 %v3646
    %v4851 = vunpack.c.h.b16 %v3646
    %v4852 = vunpack.c.l.b16 %v3647
    %v4853 = vunpack.c.l.b16 %v3648
    %v4854 = vunpack.c.h.b16 %v3648
    %v4855 = vunpack.c.l.b16 %v3649
    %v4856 = vunpack.c.h.b16 %v3649
    %v4857 = vunpack.c.l.b16 %v3650
    %v4858 = vunpack.c.h.b16 %v3650
    %v4859 = vunpack.c.l.b16 %v3651
    %v4860 = vunpack.c.l.b16 %v3652
    %v4861 = vunpack.c.h.b16 %v3652
    %v4862 = vunpack.c.l.b16 %v3653
    %v4863 = vunpack.c.h.b16 %v3653
    %v4864 = vunpack.c.l.b16 %v3654
    %v4865 = vunpack.c.h.b16 %v3654
    %v4866 = vunpack.c.l.b16 %v3655
    %v4867 = vunpack.c.l.b16 %v3656
    %v4868 = vunpack.c.h.b16 %v3656
    %v4869 = vunpack.c.l.b16 %v3657
    %v4870 = vunpack.c.h.b16 %v3657
    %v4871 = vunpack.c.l.b16 %v3658
    %v4872 = vunpack.c.h.b16 %v3658
    %v4873 = vunpack.c.l.b16 %v3659
    %v4874 = vunpack.c.l.b16 %v3660
    %v4875 = vunpack.c.h.b16 %v3660
    %v4876 = vunpack.c.l.b16 %v3661
    %v4877 = vunpack.c.h.b16 %v3661
    %v4878 = vunpack.c.l.b16 %v3662
    %v4879 = vunpack.c.h.b16 %v3662
    %v4880 = vunpack.c.l.b16 %v3663
    %v4881 = vunpack.c.l.b16 %v3664
    %v4882 = vunpack.c.h.b16 %v3664
    %v4883 = vunpack.c.l.b16 %v3665
    %v4884 = vunpack.c.h.b16 %v3665
    %v4885 = vunpack.c.l.b16 %v3666
    %v4886 = vunpack.c.h.b16 %v3666
    %v4887 = vunpack.c.l.b16 %v3667
    %v4888 = vunpack.c.l.b16 %v3668
    %v4889 = vunpack.c.h.b16 %v3668
    %v4890 = vunpack.c.l.b16 %v3669
    %v4891 = vunpack.c.h.b16 %v3669
    %v4892 = vunpack.c.l.b16 %v3670
    %v4893 = vunpack.c.h.b16 %v3670
    %v4894 = vunpack.c.l.b16 %v3671
    %v4895 = vunpack.c.l.b16 %v3672
    %v4896 = vunpack.c.h.b16 %v3672
    %v4897 = vunpack.c.l.b16 %v3673
    %v4898 = vunpack.c.h.b16 %v3673
    %v4899 = vunpack.c.l.b16 %v3674
    %v4900 = vunpack.c.h.b16 %v3674
    %v4901 = vunpack.c.l.b16 %v3675
    %v4902 = vunpack.c.l.b16 %v3676
    %v4903 = vunpack.c.h.b16 %v3676
    %v4904 = vunpack.c.l.b16 %v3677
    %v4905 = vunpack.c.h.b16 %v3677
    %v4906 = vunpack.c.l.b16 %v3678
    %v4907 = vunpack.c.h.b16 %v3678
    %v4908 = vunpack.c.l.b16 %v3679
    %v4909 = vunpack.c.l.b16 %v3680
    %v4910 = vunpack.c.h.b16 %v3680
    %v4911 = vunpack.c.l.b16 %v3681
    %v4912 = vunpack.c.h.b16 %v3681
    %v4913 = vunpack.c.l.b16 %v3682
    %v4914 = vunpack.c.h.b16 %v3682
    %v4915 = vunpack.c.l.b16 %v3683
    %v4916 = vunpack.c.l.b16 %v3684
    %v4917 = vunpack.c.h.b16 %v3684
    %v4918 = vunpack.c.l.b16 %v3685
    %v4919 = vunpack.c.h.b16 %v3685
    %v4920 = vunpack.c.l.b16 %v3686
    %v4921 = vunpack.c.h.b16 %v3686
    %v4922 = vunpack.c.l.b16 %v3687
    %v4923 = vunpack.c.l.b16 %v3688
    %v4924 = vunpack.c.h.b16 %v3688
    %v4925 = vunpack.c.l.b16 %v3689
    %v4926 = vunpack.c.h.b16 %v3689
    %v4927 = vunpack.c.l.b16 %v3690
    %v4928 = vunpack.c.h.b16 %v3690
    %v4929 = vunpack.c.l.b16 %v3691
    %v4930 = vunpack.c.l.b16 %v3692
    %v4931 = vunpack.c.h.b16 %v3692
    %v4932 = vunpack.c.l.b16 %v3693
    %v4933 = vunpack.c.h.b16 %v3693
    %v4934 = vunpack.c.l.b16 %v3694
    %v4935 = vunpack.c.h.b16 %v3694
    %v4936 = vunpack.c.l.b16 %v3695
    %v4937 = vunpack.c.l.b16 %v3696
    %v4938 = vunpack.c.h.b16 %v3696
    %v4939 = vunpack.c.l.b16 %v3697
    %v4940 = vunpack.c.h.b16 %v3697
    %v4941 = vunpack.c.l.b16 %v3698
    %v4942 = vunpack.c.h.b16 %v3698
    %v4943 = vunpack.c.l.b16 %v3699
    %v4944 = vunpack.c.l.b16 %v3700
    %v4945 = vunpack.c.h.b16 %v3700
    %v4946 = vunpack.c.l.b16 %v3701
    %v4947 = vunpack.c.h.b16 %v3701
    %v4948 = vunpack.c.l.b16 %v3702
    %v4949 = vunpack.c.h.b16 %v3702
    %v4950 = vunpack.c.l.b16 %v3703
    %v4951 = vunpack.c.l.b16 %v3704
    %v4952 = vunpack.c.h.b16 %v3704
    %v4953 = vunpack.c.l.b16 %v3705
    %v4954 = vunpack.c.h.b16 %v3705
    %v4955 = vunpack.c.l.b16 %v3706
    %v4956 = vunpack.c.h.b16 %v3706
    %v4957 = vunpack.c.l.b16 %v3707
    %v4958 = vunpack.c.l.b16 %v3708
    %v4959 = vunpack.c.h.b16 %v3708
    %v4960 = vunpack.c.l.b16 %v3709
    %v4961 = vunpack.c.h.b16 %v3709
    %v4962 = vunpack.c.l.b16 %v3710
    %v4963 = vunpack.c.h.b16 %v3710
    %v4964 = vunpack.c.l.b16 %v3711
    %v4965 = vunpack.c.l.b16 %v3712
    %v4966 = vunpack.c.h.b16 %v3712
    %v4967 = vunpack.c.l.b16 %v3713
    %v4968 = vunpack.c.h.b16 %v3713
    %v4969 = vunpack.c.l.b16 %v3714
    %v4970 = vunpack.c.h.b16 %v3714
    %v4971 = vunpack.c.l.b16 %v3715
    %v4972 = vunpack.c.l.b16 %v3716
    %v4973 = vunpack.c.h.b16 %v3716
    %v4974 = vunpack.c.l.b16 %v3717
    %v4975 = vunpack.c.h.b16 %v3717
    %v4976 = vunpack.c.l.b16 %v3718
    %v4977 = vunpack.c.h.b16 %v3718
    %v4978 = vunpack.c.l.b16 %v3719
    %v4979 = vunpack.c.l.b16 %v3720
    %v4980 = vunpack.c.h.b16 %v3720
    %v4981 = vunpack.c.l.b16 %v3721
    %v4982 = vunpack.c.h.b16 %v3721
    %v4983 = vunpack.c.l.b16 %v3722
    %v4984 = vunpack.c.h.b16 %v3722
    %v4985 = vunpack.c.l.b16 %v3723
    %v4986 = vunpack.c.l.b16 %v3724
    %v4987 = vunpack.c.h.b16 %v3724
    %v4988 = vunpack.c.l.b16 %v3725
    %v4989 = vunpack.c.h.b16 %v3725
    %v4990 = vunpack.c.l.b16 %v3726
    %v4991 = vunpack.c.h.b16 %v3726
    %v4992 = vunpack.c.l.b16 %v3727
    %v4993 = vunpack.c.l.b16 %v3728
    %v4994 = vunpack.c.h.b16 %v3728
    %v4995 = vunpack.c.l.b16 %v3729
    %v4996 = vunpack.c.h.b16 %v3729
    %v4997 = vunpack.c.l.b16 %v3730
    %v4998 = vunpack.c.h.b16 %v3730
    %v4999 = vunpack.c.l.b16 %v3731
    %v5000 = vunpack.c.l.b16 %v3732
    %v5001 = vunpack.c.h.b16 %v3732
    %v5002 = vunpack.c.l.b16 %v3733
    %v5003 = vunpack.c.h.b16 %v3733
    %v5004 = vunpack.c.l.b16 %v3734
    %v5005 = vunpack.c.h.b16 %v3734
    %v5006 = vunpack.c.l.b16 %v3735
    %v5007 = vunpack.c.l.b16 %v3736
    %v5008 = vunpack.c.h.b16 %v3736
    %v5009 = vunpack.c.l.b16 %v3737
    %v5010 = vunpack.c.h.b16 %v3737
    %v5011 = vunpack.c.l.b16 %v3738
    %v5012 = vunpack.c.h.b16 %v3738
    %v5013 = vunpack.c.l.b16 %v3739
    %v5014 = vunpack.c.l.b16 %v3740
    %v5015 = vunpack.c.h.b16 %v3740
    %v5016 = vunpack.c.l.b16 %v3741
    %v5017 = vunpack.c.h.b16 %v3741
    %v5018 = vunpack.c.l.b16 %v3742
    %v5019 = vunpack.c.h.b16 %v3742
    %v5020 = vunpack.c.l.b16 %v3743
    %v5021 = vunpack.c.l.b16 %v3744
    %v5022 = vunpack.c.h.b16 %v3744
    %v5023 = vunpack.c.l.b16 %v3745
    %v5024 = vunpack.c.h.b16 %v3745
    %v5025 = vunpack.c.l.b16 %v3746
    %v5026 = vunpack.c.h.b16 %v3746
    %v5027 = vunpack.c.l.b16 %v3747
    %v5028 = vunpack.c.l.b16 %v3748
    %v5029 = vunpack.c.h.b16 %v3748
    %v5030 = vunpack.c.l.b16 %v3749
    %v5031 = vunpack.c.h.b16 %v3749
    %v5032 = vunpack.c.l.b16 %v3750
    %v5033 = vunpack.c.h.b16 %v3750
    %v5034 = vunpack.c.l.b16 %v3751
    %v5035 = vunpack.c.l.b16 %v3752
    %v5036 = vunpack.c.h.b16 %v3752
    %v5037 = vunpack.c.l.b16 %v3753
    %v5038 = vunpack.c.h.b16 %v3753
    %v5039 = vunpack.c.l.b16 %v3754
    %v5040 = vunpack.c.h.b16 %v3754
    %v5041 = vunpack.c.l.b16 %v3755
    %v5042 = vunpack.c.l.b16 %v3756
    %v5043 = vunpack.c.h.b16 %v3756
    %v5044 = vunpack.c.l.b16 %v3757
    %v5045 = vunpack.c.h.b16 %v3757
    %v5046 = vunpack.c.l.b16 %v3758
    %v5047 = vunpack.c.h.b16 %v3758
    %v5048 = vunpack.c.l.b16 %v3759
    %v5049 = vunpack.c.l.b16 %v3760
    %v5050 = vunpack.c.h.b16 %v3760
    %v5051 = vunpack.c.l.b16 %v3761
    %v5052 = vunpack.c.h.b16 %v3761
    %v5053 = vunpack.c.l.b16 %v3762
    %v5054 = vunpack.c.h.b16 %v3762
    %v5055 = vunpack.c.l.b16 %v3763
    %v5056 = vunpack.c.l.b16 %v3764
    %v5057 = vunpack.c.h.b16 %v3764
    %v5058 = vunpack.c.l.b16 %v3765
    %v5059 = vunpack.c.h.b16 %v3765
    %v5060 = vunpack.c.l.b16 %v3766
    %v5061 = vunpack.c.h.b16 %v3766
    %v5062 = vunpack.c.l.b16 %v3767
    %v5063 = vunpack.c.l.b16 %v3768
    %v5064 = vunpack.c.h.b16 %v3768
    %v5065 = vunpack.c.l.b16 %v3769
    %v5066 = vunpack.c.h.b16 %v3769
    %v5067 = vunpack.c.l.b16 %v3770
    %v5068 = vunpack.c.h.b16 %v3770
    %v5069 = vunpack.c.l.b16 %v3771
    %v5070 = vunpack.c.l.b16 %v3772
    %v5071 = vunpack.c.h.b16 %v3772
    %v5072 = vunpack.c.l.b16 %v3773
    %v5073 = vunpack.c.h.b16 %v3773
    %v5074 = vunpack.c.l.b16 %v3774
    %v5075 = vunpack.c.h.b16 %v3774
    %v5076 = vunpack.c.l.b16 %v3775
    %v5077 = vunpack.c.l.b16 %v3776
    %v5078 = vunpack.c.h.b16 %v3776
    %v5079 = vunpack.c.l.b16 %v3777
    %v5080 = vunpack.c.h.b16 %v3777
    %v5081 = vunpack.c.l.b16 %v3778
    %v5082 = vunpack.c.h.b16 %v3778
    %v5083 = vunpack.c.l.b16 %v3779
    %v5084 = vunpack.c.l.b16 %v3780
    %v5085 = vunpack.c.h.b16 %v3780
    %v5086 = vunpack.c.l.b16 %v3781
    %v5087 = vunpack.c.h.b16 %v3781
    %v5088 = vunpack.c.l.b16 %v3782
    %v5089 = vunpack.c.h.b16 %v3782
    %v5090 = vunpack.c.l.b16 %v3783
    %v5091 = vunpack.c.l.b16 %v3784
    %v5092 = vunpack.c.h.b16 %v3784
    %v5093 = vunpack.c.l.b16 %v3785
    %v5094 = vunpack.c.h.b16 %v3785
    %v5095 = vunpack.c.l.b16 %v3786
    %v5096 = vunpack.c.h.b16 %v3786
    %v5097 = vunpack.c.l.b16 %v3787
    %v5098 = vunpack.c.l.b16 %v3788
    %v5099 = vunpack.c.h.b16 %v3788
    %v5100 = vunpack.c.l.b16 %v3789
    %v5101 = vunpack.c.h.b16 %v3789
    %v5102 = vunpack.c.l.b16 %v3790
    %v5103 = vunpack.c.h.b16 %v3790
    %v5104 = vunpack.c.l.b16 %v3791
    %v5105 = vunpack.c.l.b16 %v3792
    %v5106 = vunpack.c.h.b16 %v3792
    %v5107 = vunpack.c.l.b16 %v3793
    %v5108 = vunpack.c.h.b16 %v3793
    %v5109 = vunpack.c.l.b16 %v3794
    %v5110 = vunpack.c.h.b16 %v3794
    %v5111 = vunpack.c.l.b16 %v3795
    %v5112 = vunpack.c.l.b16 %v3796
    %v5113 = vunpack.c.h.b16 %v3796
    %v5114 = vunpack.c.l.b16 %v3797
    %v5115 = vunpack.c.h.b16 %v3797
    %v5116 = vunpack.c.l.b16 %v3798
    %v5117 = vunpack.c.h.b16 %v3798
    %v5118 = vunpack.c.l.b16 %v3799
    %v5119 = vunpack.c.l.b16 %v3800
    %v5120 = vunpack.c.h.b16 %v3800
    %v5121 = vunpack.c.l.b16 %v3801
    %v5122 = vunpack.c.h.b16 %v3801
    %v5123 = vunpack.c.l.b16 %v3802
    %v5124 = vunpack.c.h.b16 %v3802
    %v5125 = vunpack.c.l.b16 %v3803
    %v5126 = vunpack.c.l.b16 %v3804
    %v5127 = vunpack.c.h.b16 %v3804
    %v5128 = vunpack.c.l.b16 %v3805
    %v5129 = vunpack.c.h.b16 %v3805
    %v5130 = vunpack.c.l.b16 %v3806
    %v5131 = vunpack.c.h.b16 %v3806
    %v5132 = vunpack.c.l.b16 %v3807
    %v5133 = vunpack.c.l.b16 %v3808
    %v5134 = vunpack.c.h.b16 %v3808
    %v5135 = vunpack.c.l.b16 %v3809
    %v5136 = vunpack.c.h.b16 %v3809
    %v5137 = vunpack.c.l.b16 %v3810
    %v5138 = vunpack.c.h.b16 %v3810
    %v5139 = vunpack.c.l.b16 %v3811
    %v5140 = vunpack.c.l.b16 %v3812
    %v5141 = vunpack.c.h.b16 %v3812
    %v5142 = vunpack.c.l.b16 %v3813
    %v5143 = vunpack.c.h.b16 %v3813
    %v5144 = vunpack.c.l.b16 %v3814
    %v5145 = vunpack.c.h.b16 %v3814
    %v5146 = vunpack.c.l.b16 %v3815
    %v5147 = vunpack.c.l.b16 %v3816
    %v5148 = vunpack.c.h.b16 %v3816
    %v5149 = vunpack.c.l.b16 %v3817
    %v5150 = vunpack.c.h.b16 %v3817
    %v5151 = vunpack.c.l.b16 %v3818
    %v5152 = vunpack.c.h.b16 %v3818
    %v5153 = vunpack.c.l.b16 %v3819
    %v5154 = vunpack.c.l.b16 %v3820
    %v5155 = vunpack.c.h.b16 %v3820
    %v5156 = vunpack.c.l.b16 %v3821
    %v5157 = vunpack.c.h.b16 %v3821
    %v5158 = vunpack.c.l.b16 %v3822
    %v5159 = vunpack.c.h.b16 %v3822
    %v5160 = vunpack.c.l.b16 %v3823
    %v5161 = vunpack.c.l.b16 %v3824
    %v5162 = vunpack.c.h.b16 %v3824
    %v5163 = vunpack.c.l.b16 %v3825
    %v5164 = vunpack.c.h.b16 %v3825
    %v5165 = vunpack.c.l.b16 %v3826
    %v5166 = vunpack.c.h.b16 %v3826
    %v5167 = vunpack.c.l.b16 %v3827
    %v5168 = vunpack.c.l.b16 %v3828
    %v5169 = vunpack.c.h.b16 %v3828
    %v5170 = vunpack.c.l.b16 %v3829
    %v5171 = vunpack.c.h.b16 %v3829
    %v5172 = vunpack.c.l.b16 %v3830
    %v5173 = vunpack.c.h.b16 %v3830
    %v5174 = vunpack.c.l.b16 %v3831
    %v5175 = vunpack.c.l.b16 %v3832
    %v5176 = vunpack.c.h.b16 %v3832
    %v5177 = vunpack.c.l.b16 %v3833
    %v5178 = vunpack.c.h.b16 %v3833
    %v5179 = vunpack.c.l.b16 %v3834
    %v5180 = vunpack.c.h.b16 %v3834
    %v5181 = vunpack.c.l.b16 %v3835
    %v5182 = vunpack.c.l.b16 %v3836
    %v5183 = vunpack.c.h.b16 %v3836
    %v5184 = vunpack.c.l.b16 %v3837
    %v5185 = vunpack.c.h.b16 %v3837
    %v5186 = vunpack.c.l.b16 %v3838
    %v5187 = vunpack.c.h.b16 %v3838
    %v5188 = vunpack.c.l.b16 %v3839
    %v5189 = vunpack.c.l.b16 %v3840
    %v5190 = vunpack.c.h.b16 %v3840
    %v5191 = vunpack.c.l.b16 %v3841
    %v5192 = vunpack.c.h.b16 %v3841
    %v5193 = vunpack.c.l.b16 %v3842
    %v5194 = vunpack.c.h.b16 %v3842
    %v5195 = vunpack.c.l.b16 %v3843
    %v5196 = vunpack.c.l.b16 %v3844
    %v5197 = vunpack.c.h.b16 %v3844
    %v5198 = vunpack.c.l.b16 %v3845
    %v5199 = vunpack.c.h.b16 %v3845
    %v5200 = vunpack.c.l.b16 %v3846
    %v5201 = vunpack.c.h.b16 %v3846
    %v5202 = vunpack.c.l.b16 %v3847
    %v5203 = vunpack.c.l.b16 %v3848
    %v5204 = vunpack.c.h.b16 %v3848
    %v5205 = vunpack.c.l.b16 %v3849
    %v5206 = vunpack.c.h.b16 %v3849
    %v5207 = vunpack.c.l.b16 %v3850
    %v5208 = vunpack.c.h.b16 %v3850
    %v5209 = vunpack.c.l.b16 %v3851
    %v5210 = vunpack.c.l.b16 %v3852
    %v5211 = vunpack.c.h.b16 %v3852
    %v5212 = vunpack.c.l.b16 %v3853
    %v5213 = vunpack.c.h.b16 %v3853
    %v5214 = vunpack.c.l.b16 %v3854
    %v5215 = vunpack.c.h.b16 %v3854
    %v5216 = vunpack.c.l.b16 %v3855
    %v5217 = vunpack.c.l.b16 %v3856
    %v5218 = vunpack.c.h.b16 %v3856
    %v5219 = vunpack.c.l.b16 %v3857
    %v5220 = vunpack.c.h.b16 %v3857
    %v5221 = vunpack.c.l.b16 %v3858
    %v5222 = vunpack.c.h.b16 %v3858
    %v5223 = vunpack.c.l.b16 %v3859
    %v5224 = vunpack.c.l.b16 %v3860
    %v5225 = vunpack.c.h.b16 %v3860
    %v5226 = vunpack.c.l.b16 %v3861
    %v5227 = vunpack.c.h.b16 %v3861
    %v5228 = vunpack.c.l.b16 %v3862
    %v5229 = vunpack.c.h.b16 %v3862
    %v5230 = vunpack.c.l.b16 %v3863
    %v5231 = vunpack.c.l.b16 %v3864
    %v5232 = vunpack.c.h.b16 %v3864
    %v5233 = vunpack.c.l.b16 %v3865
    %v5234 = vunpack.c.h.b16 %v3865
    %v5235 = vunpack.c.l.b16 %v3866
    %v5236 = vunpack.c.h.b16 %v3866
    %v5237 = vunpack.c.l.b16 %v3867
    %v5238 = vunpack.c.l.b16 %v3868
    %v5239 = vunpack.c.h.b16 %v3868
    %v5240 = vunpack.c.l.b16 %v3869
    %v5241 = vunpack.c.h.b16 %v3869
    %v5242 = vunpack.c.l.b16 %v3870
    %v5243 = vunpack.c.h.b16 %v3870
    %v5244 = vunpack.c.l.b16 %v3871
    %v5245 = vunpack.c.l.b16 %v3872
    %v5246 = vunpack.c.h.b16 %v3872
    %v5247 = vunpack.c.l.b16 %v3873
    %v5248 = vunpack.c.h.b16 %v3873
    %v5249 = vunpack.c.l.b16 %v3874
    %v5250 = vunpack.c.h.b16 %v3874
    %v5251 = vunpack.c.l.b16 %v3875
    %v5252 = vunpack.c.l.b16 %v3876
    %v5253 = vunpack.c.h.b16 %v3876
    %v5254 = vunpack.c.l.b16 %v3877
    %v5255 = vunpack.c.h.b16 %v3877
    %v5256 = vunpack.c.l.b16 %v3878
    %v5257 = vunpack.c.h.b16 %v3878
    %v5258 = vunpack.c.l.b16 %v3879
    %v5259 = vunpack.c.l.b16 %v3880
    %v5260 = vunpack.c.h.b16 %v3880
    %v5261 = vunpack.c.l.b16 %v3881
    %v5262 = vunpack.c.h.b16 %v3881
    %v5263 = vunpack.c.l.b16 %v3882
    %v5264 = vunpack.c.h.b16 %v3882
    %v5265 = vunpack.c.l.b16 %v3883
    %v5266 = vunpack.c.l.b16 %v3884
    %v5267 = vunpack.c.h.b16 %v3884
    %v5268 = vunpack.c.l.b16 %v3885
    %v5269 = vunpack.c.h.b16 %v3885
    %v5270 = vunpack.c.l.b16 %v3886
    %v5271 = vunpack.c.h.b16 %v3886
    %v5272 = vunpack.c.l.b16 %v3887
    %v5273 = vunpack.c.l.b16 %v3888
    %v5274 = vunpack.c.h.b16 %v3888
    %v5275 = vunpack.c.l.b16 %v3889
    %v5276 = vunpack.c.h.b16 %v3889
    %v5277 = vunpack.c.l.b16 %v3890
    %v5278 = vunpack.c.h.b16 %v3890
    %v5279 = vunpack.c.l.b16 %v3891
    %v5280 = vunpack.c.l.b16 %v3892
    %v5281 = vunpack.c.h.b16 %v3892
    %v5282 = vunpack.c.l.b16 %v3893
    %v5283 = vunpack.c.h.b16 %v3893
    %v5284 = vunpack.c.l.b16 %v3894
    %v5285 = vunpack.c.h.b16 %v3894
    %v5286 = vunpack.c.l.b16 %v3895
    %v5287 = vunpack.c.l.b16 %v3896
    %v5288 = vunpack.c.h.b16 %v3896
    %v5289 = vunpack.c.l.b16 %v3897
    %v5290 = vunpack.c.h.b16 %v3897
    %v5291 = vunpack.c.l.b16 %v3898
    %v5292 = vunpack.c.h.b16 %v3898
    %v5293 = vunpack.c.l.b16 %v3899
    %v5294 = vunpack.c.l.b16 %v3900
    %v5295 = vunpack.c.h.b16 %v3900
    %v5296 = vunpack.c.l.b16 %v3901
    %v5297 = vunpack.c.h.b16 %v3901
    %v5298 = vunpack.c.l.b16 %v3902
    %v5299 = vunpack.c.h.b16 %v3902
    %v5300 = vunpack.c.l.b16 %v3903
    %v5301 = vunpack.c.l.b16 %v3904
    %v5302 = vunpack.c.h.b16 %v3904
    %v5303 = vunpack.c.l.b16 %v3905
    %v5304 = vunpack.c.h.b16 %v3905
    %v5305 = vunpack.c.l.b16 %v3906
    %v5306 = vunpack.c.h.b16 %v3906
    %v5307 = vunpack.c.l.b16 %v3907
    %v5308 = vunpack.c.l.b16 %v3908
    %v5309 = vunpack.c.h.b16 %v3908
    %v5310 = vunpack.c.l.b16 %v3909
    %v5311 = vunpack.c.h.b16 %v3909
    %v5312 = vunpack.c.l.b16 %v3910
    %v5313 = vunpack.c.h.b16 %v3910
    %v5314 = vunpack.c.l.b16 %v3911
    %v5315 = vunpack.c.l.b16 %v3912
    %v5316 = vunpack.c.h.b16 %v3912
    %v5317 = vunpack.c.l.b16 %v3913
    %v5318 = vunpack.c.h.b16 %v3913
    %v5319 = vunpack.c.l.b16 %v3914
    %v5320 = vunpack.c.h.b16 %v3914
    %v5321 = vunpack.c.l.b16 %v3915
    %v5322 = vunpack.c.l.b16 %v3916
    %v5323 = vunpack.c.h.b16 %v3916
    %v5324 = vunpack.c.l.b16 %v3917
    %v5325 = vunpack.c.h.b16 %v3917
    %v5326 = vunpack.c.l.b16 %v3918
    %v5327 = vunpack.c.h.b16 %v3918
    %v5328 = vunpack.c.l.b16 %v3919
    %v5329 = vunpack.c.l.b16 %v3920
    %v5330 = vunpack.c.h.b16 %v3920
    %v5331 = vunpack.c.l.b16 %v3921
    %v5332 = vunpack.c.h.b16 %v3921
    %v5333 = vunpack.c.l.b16 %v3922
    %v5334 = vunpack.c.h.b16 %v3922
    %v5335 = vunpack.c.l.b16 %v3923
    %v5336 = vunpack.c.l.b16 %v3924
    %v5337 = vunpack.c.h.b16 %v3924
    %v5338 = vunpack.c.l.b16 %v3925
    %v5339 = vunpack.c.h.b16 %v3925
    %v5340 = vunpack.c.l.b16 %v3926
    %v5341 = vunpack.c.h.b16 %v3926
    %v5342 = vunpack.c.l.b16 %v3927
    %v5343 = vunpack.c.l.b16 %v3928
    %v5344 = vunpack.c.h.b16 %v3928
    %v5345 = vunpack.c.l.b16 %v3929
    %v5346 = vunpack.c.h.b16 %v3929
    %v5347 = vunpack.c.l.b16 %v3930
    %v5348 = vunpack.c.h.b16 %v3930
    %v5349 = vunpack.c.l.b16 %v3931
    %v5350 = vunpack.c.l.b16 %v3932
    %v5351 = vunpack.c.h.b16 %v3932
    %v5352 = vunpack.c.l.b16 %v3933
    %v5353 = vunpack.c.h.b16 %v3933
    %v5354 = vunpack.c.l.b16 %v3934
    %v5355 = vunpack.c.h.b16 %v3934
    %v5356 = vunpack.c.l.b16 %v3935
    %v5357 = vunpack.c.l.b16 %v3936
    %v5358 = vunpack.c.h.b16 %v3936
    %v5359 = vunpack.c.l.b16 %v3937
    %v5360 = vunpack.c.h.b16 %v3937
    %v5361 = vunpack.c.l.b16 %v3938
    %v5362 = vunpack.c.h.b16 %v3938
    %v5363 = vunpack.c.l.b16 %v3939
    %v5364 = vunpack.c.l.b16 %v3940
    %v5365 = vunpack.c.h.b16 %v3940
    %v5366 = vunpack.c.l.b16 %v3941
    %v5367 = vunpack.c.h.b16 %v3941
    %v5368 = vunpack.c.l.b16 %v3942
    %v5369 = vunpack.c.h.b16 %v3942
    %v5370 = vunpack.c.l.b16 %v3943
    %v5371 = vunpack.c.l.b16 %v3944
    %v5372 = vunpack.c.h.b16 %v3944
    %v5373 = vunpack.c.l.b16 %v3945
    %v5374 = vunpack.c.h.b16 %v3945
    %v5375 = vunpack.c.l.b16 %v3946
    %v5376 = vunpack.c.h.b16 %v3946
    %v5377 = vunpack.c.l.b16 %v3947
    %v5378 = vunpack.c.l.b16 %v3948
    %v5379 = vunpack.c.h.b16 %v3948
    %v5380 = vunpack.c.l.b16 %v3949
    %v5381 = vunpack.c.h.b16 %v3949
    %v5382 = vunpack.c.l.b16 %v3950
    %v5383 = vunpack.c.h.b16 %v3950
    %v5384 = vunpack.c.l.b16 %v3951
    %v5385 = vunpack.c.l.b16 %v3952
    %v5386 = vunpack.c.h.b16 %v3952
    %v5387 = vunpack.c.l.b16 %v3953
    %v5388 = vunpack.c.h.b16 %v3953
    %v5389 = vunpack.c.l.b16 %v3954
    %v5390 = vunpack.c.h.b16 %v3954
    %v5391 = vunpack.c.l.b16 %v3955
    %v5392 = vunpack.c.l.b16 %v3956
    %v5393 = vunpack.c.h.b16 %v3956
    %v5394 = vunpack.c.l.b16 %v3957
    %v5395 = vunpack.c.h.b16 %v3957
    %v5396 = vunpack.c.l.b16 %v3958
    %v5397 = vunpack.c.h.b16 %v3958
    %v5398 = vunpack.c.l.b16 %v3959
    %v5399 = vunpack.c.l.b16 %v3960
    %v5400 = vunpack.c.h.b16 %v3960
    %v5401 = vunpack.c.l.b16 %v3961
    %v5402 = vunpack.c.h.b16 %v3961
    %v5403 = vunpack.c.l.b16 %v3962
    %v5404 = vunpack.c.h.b16 %v3962
    %v5405 = vunpack.c.l.b16 %v3963
    %v5406 = vunpack.c.l.b16 %v3964
    %v5407 = vunpack.c.h.b16 %v3964
    %v5408 = vunpack.c.l.b16 %v3965
    %v5409 = vunpack.c.h.b16 %v3965
    %v5410 = vunpack.c.l.b16 %v3966
    %v5411 = vunpack.c.h.b16 %v3966
    %v5412 = vunpack.c.l.b16 %v3967
    %v5413 = vpack.c.b16 %v4524, %v4517
    %v5414 = vpack.c.b16 %v4525, %v4518
    %v5415 = vpack.c.b16 %v4526, %v4519
    %v5416 = vpack.c.b16 %v4527, %v4520
    %v5417 = vpack.c.b16 %v4528, %v4521
    %v5418 = vpack.c.b16 %v4529, %v4522
    %v5419 = vpack.c.b16 %v4530, %v4523
    %v5420 = vpack.c.b16 %v4538, %v4531
    %v5421 = vpack.c.b16 %v4539, %v4532
    %v5422 = vpack.c.b16 %v4540, %v4533
    %v5423 = vpack.c.b16 %v4541, %v4534
    %v5424 = vpack.c.b16 %v4542, %v4535
    %v5425 = vpack.c.b16 %v4543, %v4536
    %v5426 = vpack.c.b16 %v4544, %v4537
    %v5427 = vpack.c.b16 %v4552, %v4545
    %v5428 = vpack.c.b16 %v4553, %v4546
    %v5429 = vpack.c.b16 %v4554, %v4547
    %v5430 = vpack.c.b16 %v4555, %v4548
    %v5431 = vpack.c.b16 %v4556, %v4549
    %v5432 = vpack.c.b16 %v4557, %v4550
    %v5433 = vpack.c.b16 %v4558, %v4551
    %v5434 = vpack.c.b16 %v4566, %v4559
    %v5435 = vpack.c.b16 %v4567, %v4560
    %v5436 = vpack.c.b16 %v4568, %v4561
    %v5437 = vpack.c.b16 %v4569, %v4562
    %v5438 = vpack.c.b16 %v4570, %v4563
    %v5439 = vpack.c.b16 %v4571, %v4564
    %v5440 = vpack.c.b16 %v4572, %v4565
    %v5441 = vpack.c.b16 %v4580, %v4573
    %v5442 = vpack.c.b16 %v4581, %v4574
    %v5443 = vpack.c.b16 %v4582, %v4575
    %v5444 = vpack.c.b16 %v4583, %v4576
    %v5445 = vpack.c.b16 %v4584, %v4577
    %v5446 = vpack.c.b16 %v4585, %v4578
    %v5447 = vpack.c.b16 %v4586, %v4579
    %v5448 = vpack.c.b16 %v4594, %v4587
    %v5449 = vpack.c.b16 %v4595, %v4588
    %v5450 = vpack.c.b16 %v4596, %v4589
    %v5451 = vpack.c.b16 %v4597, %v4590
    %v5452 = vpack.c.b16 %v4598, %v4591
    %v5453 = vpack.c.b16 %v4599, %v4592
    %v5454 = vpack.c.b16 %v4600, %v4593
    %v5455 = vpack.c.b16 %v4608, %v4601
    %v5456 = vpack.c.b16 %v4609, %v4602
    %v5457 = vpack.c.b16 %v4610, %v4603
    %v5458 = vpack.c.b16 %v4611, %v4604
    %v5459 = vpack.c.b16 %v4612, %v4605
    %v5460 = vpack.c.b16 %v4613, %v4606
    %v5461 = vpack.c.b16 %v4614, %v4607
    %v5462 = vpack.c.b16 %v4622, %v4615
    %v5463 = vpack.c.b16 %v4623, %v4616
    %v5464 = vpack.c.b16 %v4624, %v4617
    %v5465 = vpack.c.b16 %v4625, %v4618
    %v5466 = vpack.c.b16 %v4626, %v4619
    %v5467 = vpack.c.b16 %v4627, %v4620
    %v5468 = vpack.c.b16 %v4628, %v4621
    %v5469 = vpack.c.b16 %v4636, %v4629
    %v5470 = vpack.c.b16 %v4637, %v4630
    %v5471 = vpack.c.b16 %v4638, %v4631
    %v5472 = vpack.c.b16 %v4639, %v4632
    %v5473 = vpack.c.b16 %v4640, %v4633
    %v5474 = vpack.c.b16 %v4641, %v4634
    %v5475 = vpack.c.b16 %v4642, %v4635
    %v5476 = vpack.c.b16 %v4650, %v4643
    %v5477 = vpack.c.b16 %v4651, %v4644
    %v5478 = vpack.c.b16 %v4652, %v4645
    %v5479 = vpack.c.b16 %v4653, %v4646
    %v5480 = vpack.c.b16 %v4654, %v4647
    %v5481 = vpack.c.b16 %v4655, %v4648
    %v5482 = vpack.c.b16 %v4656, %v4649
    %v5483 = vpack.c.b16 %v4664, %v4657
    %v5484 = vpack.c.b16 %v4665, %v4658
    %v5485 = vpack.c.b16 %v4666, %v4659
    %v5486 = vpack.c.b16 %v4667, %v4660
    %v5487 = vpack.c.b16 %v4668, %v4661
    %v5488 = vpack.c.b16 %v4669, %v4662
    %v5489 = vpack.c.b16 %v4670, %v4663
    %v5490 = vpack.c.b16 %v4678, %v4671
    %v5491 = vpack.c.b16 %v4679, %v4672
    %v5492 = vpack.c.b16 %v4680, %v4673
    %v5493 = vpack.c.b16 %v4681, %v4674
    %v5494 = vpack.c.b16 %v4682, %v4675
    %v5495 = vpack.c.b16 %v4683, %v4676
    %v5496 = vpack.c.b16 %v4684, %v4677
    %v5497 = vpack.c.b16 %v4692, %v4685
    %v5498 = vpack.c.b16 %v4693, %v4686
    %v5499 = vpack.c.b16 %v4694, %v4687
    %v5500 = vpack.c.b16 %v4695, %v4688
    %v5501 = vpack.c.b16 %v4696, %v4689
    %v5502 = vpack.c.b16 %v4697, %v4690
    %v5503 = vpack.c.b16 %v4698, %v4691
    %v5504 = vpack.c.b16 %v4706, %v4699
    %v5505 = vpack.c.b16 %v4707, %v4700
    %v5506 = vpack.c.b16 %v4708, %v4701
    %v5507 = vpack.c.b16 %v4709, %v4702
    %v5508 = vpack.c.b16 %v4710, %v4703
    %v5509 = vpack.c.b16 %v4711, %v4704
    %v5510 = vpack.c.b16 %v4712, %v4705
    %v5511 = vpack.c.b16 %v4720, %v4713
    %v5512 = vpack.c.b16 %v4721, %v4714
    %v5513 = vpack.c.b16 %v4722, %v4715
    %v5514 = vpack.c.b16 %v4723, %v4716
    %v5515 = vpack.c.b16 %v4724, %v4717
    %v5516 = vpack.c.b16 %v4725, %v4718
    %v5517 = vpack.c.b16 %v4726, %v4719
    %v5518 = vpack.c.b16 %v4734, %v4727
    %v5519 = vpack.c.b16 %v4735, %v4728
    %v5520 = vpack.c.b16 %v4736, %v4729
    %v5521 = vpack.c.b16 %v4737, %v4730
    %v5522 = vpack.c.b16 %v4738, %v4731
    %v5523 = vpack.c.b16 %v4739, %v4732
    %v5524 = vpack.c.b16 %v4740, %v4733
    %v5525 = vpack.c.b16 %v4748, %v4741
    %v5526 = vpack.c.b16 %v4749, %v4742
    %v5527 = vpack.c.b16 %v4750, %v4743
    %v5528 = vpack.c.b16 %v4751, %v4744
    %v5529 = vpack.c.b16 %v4752, %v4745
    %v5530 = vpack.c.b16 %v4753, %v4746
    %v5531 = vpack.c.b16 %v4754, %v4747
    %v5532 = vpack.c.b16 %v4762, %v4755
    %v5533 = vpack.c.b16 %v4763, %v4756
    %v5534 = vpack.c.b16 %v4764, %v4757
    %v5535 = vpack.c.b16 %v4765, %v4758
    %v5536 = vpack.c.b16 %v4766, %v4759
    %v5537 = vpack.c.b16 %v4767, %v4760
    %v5538 = vpack.c.b16 %v4768, %v4761
    %v5539 = vpack.c.b16 %v4776, %v4769
    %v5540 = vpack.c.b16 %v4777, %v4770
    %v5541 = vpack.c.b16 %v4778, %v4771
    %v5542 = vpack.c.b16 %v4779, %v4772
    %v5543 = vpack.c.b16 %v4780, %v4773
    %v5544 = vpack.c.b16 %v4781, %v4774
    %v5545 = vpack.c.b16 %v4782, %v4775
    %v5546 = vpack.c.b16 %v4790, %v4783
    %v5547 = vpack.c.b16 %v4791, %v4784
    %v5548 = vpack.c.b16 %v4792, %v4785
    %v5549 = vpack.c.b16 %v4793, %v4786
    %v5550 = vpack.c.b16 %v4794, %v4787
    %v5551 = vpack.c.b16 %v4795, %v4788
    %v5552 = vpack.c.b16 %v4796, %v4789
    %v5553 = vpack.c.b16 %v4804, %v4797
    %v5554 = vpack.c.b16 %v4805, %v4798
    %v5555 = vpack.c.b16 %v4806, %v4799
    %v5556 = vpack.c.b16 %v4807, %v4800
    %v5557 = vpack.c.b16 %v4808, %v4801
    %v5558 = vpack.c.b16 %v4809, %v4802
    %v5559 = vpack.c.b16 %v4810, %v4803
    %v5560 = vpack.c.b16 %v4818, %v4811
    %v5561 = vpack.c.b16 %v4819, %v4812
    %v5562 = vpack.c.b16 %v4820, %v4813
    %v5563 = vpack.c.b16 %v4821, %v4814
    %v5564 = vpack.c.b16 %v4822, %v4815
    %v5565 = vpack.c.b16 %v4823, %v4816
    %v5566 = vpack.c.b16 %v4824, %v4817
    %v5567 = vpack.c.b16 %v4832, %v4825
    %v5568 = vpack.c.b16 %v4833, %v4826
    %v5569 = vpack.c.b16 %v4834, %v4827
    %v5570 = vpack.c.b16 %v4835, %v4828
    %v5571 = vpack.c.b16 %v4836, %v4829
    %v5572 = vpack.c.b16 %v4837, %v4830
    %v5573 = vpack.c.b16 %v4838, %v4831
    %v5574 = vpack.c.b16 %v4846, %v4839
    %v5575 = vpack.c.b16 %v4847, %v4840
    %v5576 = vpack.c.b16 %v4848, %v4841
    %v5577 = vpack.c.b16 %v4849, %v4842
    %v5578 = vpack.c.b16 %v4850, %v4843
    %v5579 = vpack.c.b16 %v4851, %v4844
    %v5580 = vpack.c.b16 %v4852, %v4845
    %v5581 = vpack.c.b16 %v4860, %v4853
    %v5582 = vpack.c.b16 %v4861, %v4854
    %v5583 = vpack.c.b16 %v4862, %v4855
    %v5584 = vpack.c.b16 %v4863, %v4856
    %v5585 = vpack.c.b16 %v4864, %v4857
    %v5586 = vpack.c.b16 %v4865, %v4858
    %v5587 = vpack.c.b16 %v4866, %v4859
    %v5588 = vpack.c.b16 %v4874, %v4867
    %v5589 = vpack.c.b16 %v4875, %v4868
    %v5590 = vpack.c.b16 %v4876, %v4869
    %v5591 = vpack.c.b16 %v4877, %v4870
    %v5592 = vpack.c.b16 %v4878, %v4871
    %v5593 = vpack.c.b16 %v4879, %v4872
    %v5594 = vpack.c.b16 %v4880, %v4873
    %v5595 = vpack.c.b16 %v4888, %v4881
    %v5596 = vpack.c.b16 %v4889, %v4882
    %v5597 = vpack.c.b16 %v4890, %v4883
    %v5598 = vpack.c.b16 %v4891, %v4884
    %v5599 = vpack.c.b16 %v4892, %v4885
    %v5600 = vpack.c.b16 %v4893, %v4886
    %v5601 = vpack.c.b16 %v4894, %v4887
    %v5602 = vpack.c.b16 %v4902, %v4895
    %v5603 = vpack.c.b16 %v4903, %v4896
    %v5604 = vpack.c.b16 %v4904, %v4897
    %v5605 = vpack.c.b16 %v4905, %v4898
    %v5606 = vpack.c.b16 %v4906, %v4899
    %v5607 = vpack.c.b16 %v4907, %v4900
    %v5608 = vpack.c.b16 %v4908, %v4901
    %v5609 = vpack.c.b16 %v4916, %v4909
    %v5610 = vpack.c.b16 %v4917, %v4910
    %v5611 = vpack.c.b16 %v4918, %v4911
    %v5612 = vpack.c.b16 %v4919, %v4912
    %v5613 = vpack.c.b16 %v4920, %v4913
    %v5614 = vpack.c.b16 %v4921, %v4914
    %v5615 = vpack.c.b16 %v4922, %v4915
    %v5616 = vpack.c.b16 %v4930, %v4923
    %v5617 = vpack.c.b16 %v4931, %v4924
    %v5618 = vpack.c.b16 %v4932, %v4925
    %v5619 = vpack.c.b16 %v4933, %v4926
    %v5620 = vpack.c.b16 %v4934, %v4927
    %v5621 = vpack.c.b16 %v4935, %v4928
    %v5622 = vpack.c.b16 %v4936, %v4929
    %v5623 = vpack.c.b16 %v4944, %v4937
    %v5624 = vpack.c.b16 %v4945, %v4938
    %v5625 = vpack.c.b16 %v4946, %v4939
    %v5626 = vpack.c.b16 %v4947, %v4940
    %v5627 = vpack.c.b16 %v4948, %v4941
    %v5628 = vpack.c.b16 %v4949, %v4942
    %v5629 = vpack.c.b16 %v4950, %v4943
    %v5630 = vpack.c.b16 %v4958, %v4951
    %v5631 = vpack.c.b16 %v4959, %v4952
    %v5632 = vpack.c.b16 %v4960, %v4953
    %v5633 = vpack.c.b16 %v4961, %v4954
    %v5634 = vpack.c.b16 %v4962, %v4955
    %v5635 = vpack.c.b16 %v4963, %v4956
    %v5636 = vpack.c.b16 %v4964, %v4957
    %v5637 = vpack.c.b16 %v4972, %v4965
    %v5638 = vpack.c.b16 %v4973, %v4966
    %v5639 = vpack.c.b16 %v4974, %v4967
    %v5640 = vpack.c.b16 %v4975, %v4968
    %v5641 = vpack.c.b16 %v4976, %v4969
    %v5642 = vpack.c.b16 %v4977, %v4970
    %v5643 = vpack.c.b16 %v4978, %v4971
    %v5644 = vpack.c.b16 %v4986, %v4979
    %v5645 = vpack.c.b16 %v4987, %v4980
    %v5646 = vpack.c.b16 %v4988, %v4981
    %v5647 = vpack.c.b16 %v4989, %v4982
    %v5648 = vpack.c.b16 %v4990, %v4983
    %v5649 = vpack.c.b16 %v4991, %v4984
    %v5650 = vpack.c.b16 %v4992, %v4985
    %v5651 = vpack.c.b16 %v5000, %v4993
    %v5652 = vpack.c.b16 %v5001, %v4994
    %v5653 = vpack.c.b16 %v5002, %v4995
    %v5654 = vpack.c.b16 %v5003, %v4996
    %v5655 = vpack.c.b16 %v5004, %v4997
    %v5656 = vpack.c.b16 %v5005, %v4998
    %v5657 = vpack.c.b16 %v5006, %v4999
    %v5658 = vpack.c.b16 %v5014, %v5007
    %v5659 = vpack.c.b16 %v5015, %v5008
    %v5660 = vpack.c.b16 %v5016, %v5009
    %v5661 = vpack.c.b16 %v5017, %v5010
    %v5662 = vpack.c.b16 %v5018, %v5011
    %v5663 = vpack.c.b16 %v5019, %v5012
    %v5664 = vpack.c.b16 %v5020, %v5013
    %v5665 = vpack.c.b16 %v5028, %v5021
    %v5666 = vpack.c.b16 %v5029, %v5022
    %v5667 = vpack.c.b16 %v5030, %v5023
    %v5668 = vpack.c.b16 %v5031, %v5024
    %v5669 = vpack.c.b16 %v5032, %v5025
    %v5670 = vpack.c.b16 %v5033, %v5026
    %v5671 = vpack.c.b16 %v5034, %v5027
    %v5672 = vpack.c.b16 %v5042, %v5035
    %v5673 = vpack.c.b16 %v5043, %v5036
    %v5674 = vpack.c.b16 %v5044, %v5037
    %v5675 = vpack.c.b16 %v5045, %v5038
    %v5676 = vpack.c.b16 %v5046, %v5039
    %v5677 = vpack.c.b16 %v5047, %v5040
    %v5678 = vpack.c.b16 %v5048, %v5041
    %v5679 = vpack.c.b16 %v5056, %v5049
    %v5680 = vpack.c.b16 %v5057, %v5050
    %v5681 = vpack.c.b16 %v5058, %v5051
    %v5682 = vpack.c.b16 %v5059, %v5052
    %v5683 = vpack.c.b16 %v5060, %v5053
    %v5684 = vpack.c.b16 %v5061, %v5054
    %v5685 = vpack.c.b16 %v5062, %v5055
    %v5686 = vpack.c.b16 %v5070, %v5063
    %v5687 = vpack.c.b16 %v5071, %v5064
    %v5688 = vpack.c.b16 %v5072, %v5065
    %v5689 = vpack.c.b16 %v5073, %v5066
    %v5690 = vpack.c.b16 %v5074, %v5067
    %v5691 = vpack.c.b16 %v5075, %v5068
    %v5692 = vpack.c.b16 %v5076, %v5069
    %v5693 = vpack.c.b16 %v5084, %v5077
    %v5694 = vpack.c.b16 %v5085, %v5078
    %v5695 = vpack.c.b16 %v5086, %v5079
    %v5696 = vpack.c.b16 %v5087, %v5080
    %v5697 = vpack.c.b16 %v5088, %v5081
    %v5698 = vpack.c.b16 %v5089, %v5082
    %v5699 = vpack.c.b16 %v5090, %v5083
    %v5700 = vpack.c.b16 %v5098, %v5091
    %v5701 = vpack.c.b16 %v5099, %v5092
    %v5702 = vpack.c.b16 %v5100, %v5093
    %v5703 = vpack.c.b16 %v5101, %v5094
    %v5704 = vpack.c.b16 %v5102, %v5095
    %v5705 = vpack.c.b16 %v5103, %v5096
    %v5706 = vpack.c.b16 %v5104, %v5097
    %v5707 = vpack.c.b16 %v5112, %v5105
    %v5708 = vpack.c.b16 %v5113, %v5106
    %v5709 = vpack.c.b16 %v5114, %v5107
    %v5710 = vpack.c.b16 %v5115, %v5108
    %v5711 = vpack.c.b16 %v5116, %v5109
    %v5712 = vpack.c.b16 %v5117, %v5110
    %v5713 = vpack.c.b16 %v5118, %v5111
    %v5714 = vpack.c.b16 %v5126, %v5119
    %v5715 = vpack.c.b16 %v5127, %v5120
    %v5716 = vpack.c.b16 %v5128, %v5121
    %v5717 = vpack.c.b16 %v5129, %v5122
    %v5718 = vpack.c.b16 %v5130, %v5123
    %v5719 = vpack.c.b16 %v5131, %v5124
    %v5720 = vpack.c.b16 %v5132, %v5125
    %v5721 = vpack.c.b16 %v5140, %v5133
    %v5722 = vpack.c.b16 %v5141, %v5134
    %v5723 = vpack.c.b16 %v5142, %v5135
    %v5724 = vpack.c.b16 %v5143, %v5136
    %v5725 = vpack.c.b16 %v5144, %v5137
    %v5726 = vpack.c.b16 %v5145, %v5138
    %v5727 = vpack.c.b16 %v5146, %v5139
    %v5728 = vpack.c.b16 %v5154, %v5147
    %v5729 = vpack.c.b16 %v5155, %v5148
    %v5730 = vpack.c.b16 %v5156, %v5149
    %v5731 = vpack.c.b16 %v5157, %v5150
    %v5732 = vpack.c.b16 %v5158, %v5151
    %v5733 = vpack.c.b16 %v5159, %v5152
    %v5734 = vpack.c.b16 %v5160, %v5153
    %v5735 = vpack.c.b16 %v5168, %v5161
    %v5736 = vpack.c.b16 %v5169, %v5162
    %v5737 = vpack.c.b16 %v5170, %v5163
    %v5738 = vpack.c.b16 %v5171, %v5164
    %v5739 = vpack.c.b16 %v5172, %v5165
    %v5740 = vpack.c.b16 %v5173, %v5166
    %v5741 = vpack.c.b16 %v5174, %v5167
    %v5742 = vpack.c.b16 %v5182, %v5175
    %v5743 = vpack.c.b16 %v5183, %v5176
    %v5744 = vpack.c.b16 %v5184, %v5177
    %v5745 = vpack.c.b16 %v5185, %v5178
    %v5746 = vpack.c.b16 %v5186, %v5179
    %v5747 = vpack.c.b16 %v5187, %v5180
    %v5748 = vpack.c.b16 %v5188, %v5181
    %v5749 = vpack.c.b16 %v5196, %v5189
    %v5750 = vpack.c.b16 %v5197, %v5190
    %v5751 = vpack.c.b16 %v5198, %v5191
    %v5752 = vpack.c.b16 %v5199, %v5192
    %v5753 = vpack.c.b16 %v5200, %v5193
    %v5754 = vpack.c.b16 %v5201, %v5194
    %v5755 = vpack.c.b16 %v5202, %v5195
    %v5756 = vpack.c.b16 %v5210, %v5203
    %v5757 = vpack.c.b16 %v5211, %v5204
    %v5758 = vpack.c.b16 %v5212, %v5205
    %v5759 = vpack.c.b16 %v5213, %v5206
    %v5760 = vpack.c.b16 %v5214, %v5207
    %v5761 = vpack.c.b16 %v5215, %v5208
    %v5762 = vpack.c.b16 %v5216, %v5209
    %v5763 = vpack.c.b16 %v5224, %v5217
    %v5764 = vpack.c.b16 %v5225, %v5218
    %v5765 = vpack.c.b16 %v5226, %v5219
    %v5766 = vpack.c.b16 %v5227, %v5220
    %v5767 = vpack.c.b16 %v5228, %v5221
    %v5768 = vpack.c.b16 %v5229, %v5222
    %v5769 = vpack.c.b16 %v5230, %v5223
    %v5770 = vpack.c.b16 %v5238, %v5231
    %v5771 = vpack.c.b16 %v5239, %v5232
    %v5772 = vpack.c.b16 %v5240, %v5233
    %v5773 = vpack.c.b16 %v5241, %v5234
    %v5774 = vpack.c.b16 %v5242, %v5235
    %v5775 = vpack.c.b16 %v5243, %v5236
    %v5776 = vpack.c.b16 %v5244, %v5237
    %v5777 = vpack.c.b16 %v5252, %v5245
    %v5778 = vpack.c.b16 %v5253, %v5246
    %v5779 = vpack.c.b16 %v5254, %v5247
    %v5780 = vpack.c.b16 %v5255, %v5248
    %v5781 = vpack.c.b16 %v5256, %v5249
    %v5782 = vpack.c.b16 %v5257, %v5250
    %v5783 = vpack.c.b16 %v5258, %v5251
    %v5784 = vpack.c.b16 %v5266, %v5259
    %v5785 = vpack.c.b16 %v5267, %v5260
    %v5786 = vpack.c.b16 %v5268, %v5261
    %v5787 = vpack.c.b16 %v5269, %v5262
    %v5788 = vpack.c.b16 %v5270, %v5263
    %v5789 = vpack.c.b16 %v5271, %v5264
    %v5790 = vpack.c.b16 %v5272, %v5265
    %v5791 = vpack.c.b16 %v5280, %v5273
    %v5792 = vpack.c.b16 %v5281, %v5274
    %v5793 = vpack.c.b16 %v5282, %v5275
    %v5794 = vpack.c.b16 %v5283, %v5276
    %v5795 = vpack.c.b16 %v5284, %v5277
    %v5796 = vpack.c.b16 %v5285, %v5278
    %v5797 = vpack.c.b16 %v5286, %v5279
    %v5798 = vpack.c.b16 %v5294, %v5287
    %v5799 = vpack.c.b16 %v5295, %v5288
    %v5800 = vpack.c.b16 %v5296, %v5289
    %v5801 = vpack.c.b16 %v5297, %v5290
    %v5802 = vpack.c.b16 %v5298, %v5291
    %v5803 = vpack.c.b16 %v5299, %v5292
    %v5804 = vpack.c.b16 %v5300, %v5293
    %v5805 = vpack.c.b16 %v5308, %v5301
    %v5806 = vpack.c.b16 %v5309, %v5302
    %v5807 = vpack.c.b16 %v5310, %v5303
    %v5808 = vpack.c.b16 %v5311, %v5304
    %v5809 = vpack.c.b16 %v5312, %v5305
    %v5810 = vpack.c.b16 %v5313, %v5306
    %v5811 = vpack.c.b16 %v5314, %v5307
    %v5812 = vpack.c.b16 %v5322, %v5315
    %v5813 = vpack.c.b16 %v5323, %v5316
    %v5814 = vpack.c.b16 %v5324, %v5317
    %v5815 = vpack.c.b16 %v5325, %v5318
    %v5816 = vpack.c.b16 %v5326, %v5319
    %v5817 = vpack.c.b16 %v5327, %v5320
    %v5818 = vpack.c.b16 %v5328, %v5321
    %v5819 = vpack.c.b16 %v5336, %v5329
    %v5820 = vpack.c.b16 %v5337, %v5330
    %v5821 = vpack.c.b16 %v5338, %v5331
    %v5822 = vpack.c.b16 %v5339, %v5332
    %v5823 = vpack.c.b16 %v5340, %v5333
    %v5824 = vpack.c.b16 %v5341, %v5334
    %v5825 = vpack.c.b16 %v5342, %v5335
    %v5826 = vpack.c.b16 %v5350, %v5343
    %v5827 = vpack.c.b16 %v5351, %v5344
    %v5828 = vpack.c.b16 %v5352, %v5345
    %v5829 = vpack.c.b16 %v5353, %v5346
    %v5830 = vpack.c.b16 %v5354, %v5347
    %v5831 = vpack.c.b16 %v5355, %v5348
    %v5832 = vpack.c.b16 %v5356, %v5349
    %v5833 = vpack.c.b16 %v5364, %v5357
    %v5834 = vpack.c.b16 %v5365, %v5358
    %v5835 = vpack.c.b16 %v5366, %v5359
    %v5836 = vpack.c.b16 %v5367, %v5360
    %v5837 = vpack.c.b16 %v5368, %v5361
    %v5838 = vpack.c.b16 %v5369, %v5362
    %v5839 = vpack.c.b16 %v5370, %v5363
    %v5840 = vpack.c.b16 %v5378, %v5371
    %v5841 = vpack.c.b16 %v5379, %v5372
    %v5842 = vpack.c.b16 %v5380, %v5373
    %v5843 = vpack.c.b16 %v5381, %v5374
    %v5844 = vpack.c.b16 %v5382, %v5375
    %v5845 = vpack.c.b16 %v5383, %v5376
    %v5846 = vpack.c.b16 %v5384, %v5377
    %v5847 = vpack.c.b16 %v5392, %v5385
    %v5848 = vpack.c.b16 %v5393, %v5386
    %v5849 = vpack.c.b16 %v5394, %v5387
    %v5850 = vpack.c.b16 %v5395, %v5388
    %v5851 = vpack.c.b16 %v5396, %v5389
    %v5852 = vpack.c.b16 %v5397, %v5390
    %v5853 = vpack.c.b16 %v5398, %v5391
    %v5854 = vpack.c.b16 %v5406, %v5399
    %v5855 = vpack.c.b16 %v5407, %v5400
    %v5856 = vpack.c.b16 %v5408, %v5401
    %v5857 = vpack.c.b16 %v5409, %v5402
    %v5858 = vpack.c.b16 %v5410, %v5403
    %v5859 = vpack.c.b16 %v5411, %v5404
    %v5860 = vpack.c.b16 %v5412, %v5405
    %6309 = vmatprep.subr.bf16.mxu0 %v5414
    %6310 = vmatpush1.bf16.msra.mxu0 %v5413
    %6311 = vmatprep.subr.bf16.mxu0 %v5421
    %6312 = vmatpush1.bf16.msra.mxu0 %v5420
    %6313 = vmatprep.subr.bf16.mxu0 %v5428
    %6314 = vmatpush1.bf16.msra.mxu0 %v5427
    %6315 = vmatprep.subr.bf16.mxu0 %v5435
    %6316 = vmatpush1.bf16.msra.mxu0 %v5434
    %6317 = vmatprep.subr.bf16.mxu0 %v5442
    %6318 = vmatpush1.bf16.msra.mxu0 %v5441
    %6319 = vmatprep.subr.bf16.mxu0 %v5449
    %6320 = vmatpush1.bf16.msra.mxu0 %v5448
    %6321 = vmatprep.subr.bf16.mxu0 %v5456
    %6322 = vmatpush1.bf16.msra.mxu0 %v5455
    %6323 = vmatprep.subr.bf16.mxu0 %v5463
    %6324 = vmatpush1.bf16.msra.mxu0 %v5462
    %6325 = vmatprep.subr.bf16.mxu0 %v5470
    %6326 = vmatpush1.bf16.msra.mxu0 %v5469
    %6327 = vmatprep.subr.bf16.mxu0 %v5477
    %6328 = vmatpush1.bf16.msra.mxu0 %v5476
    %6329 = vmatprep.subr.bf16.mxu0 %v5484
    %6330 = vmatpush1.bf16.msra.mxu0 %v5483
    %6331 = vmatprep.subr.bf16.mxu0 %v5491
    %6332 = vmatpush1.bf16.msra.mxu0 %v5490
    %6333 = vmatprep.subr.bf16.mxu0 %v5498
    %6334 = vmatpush1.bf16.msra.mxu0 %v5497
    %6335 = vmatprep.subr.bf16.mxu0 %v5505
    %6336 = vmatpush1.bf16.msra.mxu0 %v5504
    %6337 = vmatprep.subr.bf16.mxu0 %v5512
    %6338 = vmatpush1.bf16.msra.mxu0 %v5511
    %6339 = vmatprep.subr.bf16.mxu0 %v5519
    %6340 = vmatpush1.bf16.msra.mxu0 %v5518
    %6341 = vmatprep.mubr.bf16.mxu0 %v3449
    %6342 = vmatmul.mubr.bf16.gmra.mrb[0].mxu0 %v3448
    %v6343 = vpop.f32.mrb[0].mxu0
    %v6344 = vadd.f32 %v3973, %v6343
    %v6345 = vpop.f32.mrb[0].mxu0
    %v6346 = vadd.f32 %v3977, %v6345
    %v6347 = vpop.f32.mrb[0].mxu0
    %v6348 = vpop.f32.mrb[0].mxu0
    %6349 = vdwg.mxu0
    %6350 = vmatprep.subr.bf16.mxu0 %v5526
    %6351 = vmatpush1.bf16.msra.mxu0 %v5525
    %6352 = vmatprep.subr.bf16.mxu0 %v5533
    %6353 = vmatpush1.bf16.msra.mxu0 %v5532
    %6354 = vmatprep.subr.bf16.mxu0 %v5540
    %6355 = vmatpush1.bf16.msra.mxu0 %v5539
    %6356 = vmatprep.subr.bf16.mxu0 %v5547
    %6357 = vmatpush1.bf16.msra.mxu0 %v5546
    %6358 = vmatprep.subr.bf16.mxu0 %v5554
    %6359 = vmatpush1.bf16.msra.mxu0 %v5553
    %6360 = vmatprep.subr.bf16.mxu0 %v5561
    %6361 = vmatpush1.bf16.msra.mxu0 %v5560
    %6362 = vmatprep.subr.bf16.mxu0 %v5568
    %6363 = vmatpush1.bf16.msra.mxu0 %v5567
    %6364 = vmatprep.subr.bf16.mxu0 %v5575
    %6365 = vmatpush1.bf16.msra.mxu0 %v5574
    %6366 = vmatprep.subr.bf16.mxu0 %v5582
    %6367 = vmatpush1.bf16.msra.mxu0 %v5581
    %6368 = vmatprep.subr.bf16.mxu0 %v5589
    %6369 = vmatpush1.bf16.msra.mxu0 %v5588
    %6370 = vmatprep.subr.bf16.mxu0 %v5596
    %6371 = vmatpush1.bf16.msra.mxu0 %v5595
    %6372 = vmatprep.subr.bf16.mxu0 %v5603
    %6373 = vmatpush1.bf16.msra.mxu0 %v5602
    %6374 = vmatprep.subr.bf16.mxu0 %v5610
    %6375 = vmatpush1.bf16.msra.mxu0 %v5609
    %6376 = vmatprep.subr.bf16.mxu0 %v5617
    %6377 = vmatpush1.bf16.msra.mxu0 %v5616
    %6378 = vmatprep.subr.bf16.mxu0 %v5624
    %6379 = vmatpush1.bf16.msra.mxu0 %v5623
    %6380 = vmatprep.subr.bf16.mxu0 %v5631
    %6381 = vmatpush1.bf16.msra.mxu0 %v5630
    %6382 = vmatprep.mubr.bf16.mxu0 %v3451
    %6383 = vmatmul.mubr.bf16.gmra.mrb[0].mxu0 %v3450
    %v6384 = vpop.f32.mrb[0].mxu0
    %v6385 = vadd.f32 %v6344, %v6384
    %v6386 = vpop.f32.mrb[0].mxu0
    %v6387 = vadd.f32 %v6346, %v6386
    %v6388 = vpop.f32.mrb[0].mxu0
    %v6389 = vpop.f32.mrb[0].mxu0
    %6390 = vdwg.mxu0
    %6391 = vmatprep.subr.bf16.mxu0 %v5638
    %6392 = vmatpush1.bf16.msra.mxu0 %v5637
    %6393 = vmatprep.subr.bf16.mxu0 %v5645
    %6394 = vmatpush1.bf16.msra.mxu0 %v5644
    %6395 = vmatprep.subr.bf16.mxu0 %v5652
    %6396 = vmatpush1.bf16.msra.mxu0 %v5651
    %6397 = vmatprep.subr.bf16.mxu0 %v5659
    %6398 = vmatpush1.bf16.msra.mxu0 %v5658
    %6399 = vmatprep.subr.bf16.mxu0 %v5666
    %6400 = vmatpush1.bf16.msra.mxu0 %v5665
    %6401 = vmatprep.subr.bf16.mxu0 %v5673
    %6402 = vmatpush1.bf16.msra.mxu0 %v5672
    %6403 = vmatprep.subr.bf16.mxu0 %v5680
    %6404 = vmatpush1.bf16.msra.mxu0 %v5679
    %6405 = vmatprep.subr.bf16.mxu0 %v5687
    %6406 = vmatpush1.bf16.msra.mxu0 %v5686
    %6407 = vmatprep.subr.bf16.mxu0 %v5694
    %6408 = vmatpush1.bf16.msra.mxu0 %v5693
    %6409 = vmatprep.subr.bf16.mxu0 %v5701
    %6410 = vmatpush1.bf16.msra.mxu0 %v5700
    %6411 = vmatprep.subr.bf16.mxu0 %v5708
    %6412 = vmatpush1.bf16.msra.mxu0 %v5707
    %6413 = vmatprep.subr.bf16.mxu0 %v5715
    %6414 = vmatpush1.bf16.msra.mxu0 %v5714
    %6415 = vmatprep.subr.bf16.mxu0 %v5722
    %6416 = vmatpush1.bf16.msra.mxu0 %v5721
    %6417 = vmatprep.subr.bf16.mxu0 %v5729
    %6418 = vmatpush1.bf16.msra.mxu0 %v5728
    %6419 = vmatprep.subr.bf16.mxu0 %v5736
    %6420 = vmatpush1.bf16.msra.mxu0 %v5735
    %6421 = vmatprep.subr.bf16.mxu0 %v5743
    %6422 = vmatpush1.bf16.msra.mxu0 %v5742
    %6423 = vmatprep.mubr.bf16.mxu0 %v3453
    %6424 = vmatmul.mubr.bf16.gmra.mrb[0].mxu0 %v3452
    %v6425 = vpop.f32.mrb[0].mxu0
    %v6426 = vadd.f32 %v6385, %v6425
    %v6427 = vpop.f32.mrb[0].mxu0
    %v6428 = vadd.f32 %v6387, %v6427
    %v6429 = vpop.f32.mrb[0].mxu0
    %v6430 = vpop.f32.mrb[0].mxu0
    %6431 = vdwg.mxu0
    %6432 = vmatprep.subr.bf16.mxu0 %v5750
    %6433 = vmatpush1.bf16.msra.mxu0 %v5749
    %6434 = vmatprep.subr.bf16.mxu0 %v5757
    %6435 = vmatpush1.bf16.msra.mxu0 %v5756
    %6436 = vmatprep.subr.bf16.mxu0 %v5764
    %6437 = vmatpush1.bf16.msra.mxu0 %v5763
    %6438 = vmatprep.subr.bf16.mxu0 %v5771
    %6439 = vmatpush1.bf16.msra.mxu0 %v5770
    %6440 = vmatprep.subr.bf16.mxu0 %v5778
    %6441 = vmatpush1.bf16.msra.mxu0 %v5777
    %6442 = vmatprep.subr.bf16.mxu0 %v5785
    %6443 = vmatpush1.bf16.msra.mxu0 %v5784
    %6444 = vmatprep.subr.bf16.mxu0 %v5792
    %6445 = vmatpush1.bf16.msra.mxu0 %v5791
    %6446 = vmatprep.subr.bf16.mxu0 %v5799
    %6447 = vmatpush1.bf16.msra.mxu0 %v5798
    %6448 = vmatprep.subr.bf16.mxu0 %v5806
    %6449 = vmatpush1.bf16.msra.mxu0 %v5805
    %6450 = vmatprep.subr.bf16.mxu0 %v5813
    %6451 = vmatpush1.bf16.msra.mxu0 %v5812
    %6452 = vmatprep.subr.bf16.mxu0 %v5820
    %6453 = vmatpush1.bf16.msra.mxu0 %v5819
    %6454 = vmatprep.subr.bf16.mxu0 %v5827
    %6455 = vmatpush1.bf16.msra.mxu0 %v5826
    %6456 = vmatprep.subr.bf16.mxu0 %v5834
    %6457 = vmatpush1.bf16.msra.mxu0 %v5833
    %6458 = vmatprep.subr.bf16.mxu0 %v5841
    %6459 = vmatpush1.bf16.msra.mxu0 %v5840
    %6460 = vmatprep.subr.bf16.mxu0 %v5848
    %6461 = vmatpush1.bf16.msra.mxu0 %v5847
    %6462 = vmatprep.subr.bf16.mxu0 %v5855
    %6463 = vmatpush1.bf16.msra.mxu0 %v5854
    %6464 = vmatprep.mubr.bf16.mxu0 %v3455
    %6465 = vmatmul.mubr.bf16.gmra.mrb[0].mxu0 %v3454
    %v6466 = vpop.f32.mrb[0].mxu0
    %v6467 = vadd.f32 %v6426, %v6466
    %v6468 = vpop.f32.mrb[0].mxu0
    %v6469 = vadd.f32 %v6428, %v6468
    %v6470 = vpop.f32.mrb[0].mxu0
    %v6471 = vpop.f32.mrb[0].mxu0
    %6472 = vdwg.mxu0
    %6473 = vmatprep.subr.bf16.mxu0 %v5416
    %6474 = vmatpush1.bf16.msra.mxu0 %v5415
    %6475 = vmatprep.subr.bf16.mxu0 %v5423
    %6476 = vmatpush1.bf16.msra.mxu0 %v5422
    %6477 = vmatprep.subr.bf16.mxu0 %v5430
    %6478 = vmatpush1.bf16.msra.mxu0 %v5429
    %6479 = vmatprep.subr.bf16.mxu0 %v5437
    %6480 = vmatpush1.bf16.msra.mxu0 %v5436
    %6481 = vmatprep.subr.bf16.mxu0 %v5444
    %6482 = vmatpush1.bf16.msra.mxu0 %v5443
    %6483 = vmatprep.subr.bf16.mxu0 %v5451
    %6484 = vmatpush1.bf16.msra.mxu0 %v5450
    %6485 = vmatprep.subr.bf16.mxu0 %v5458
    %6486 = vmatpush1.bf16.msra.mxu0 %v5457
    %6487 = vmatprep.subr.bf16.mxu0 %v5465
    %6488 = vmatpush1.bf16.msra.mxu0 %v5464
    %6489 = vmatprep.subr.bf16.mxu0 %v5472
    %6490 = vmatpush1.bf16.msra.mxu0 %v5471
    %6491 = vmatprep.subr.bf16.mxu0 %v5479
    %6492 = vmatpush1.bf16.msra.mxu0 %v5478
    %6493 = vmatprep.subr.bf16.mxu0 %v5486
    %6494 = vmatpush1.bf16.msra.mxu0 %v5485
    %6495 = vmatprep.subr.bf16.mxu0 %v5493
    %6496 = vmatpush1.bf16.msra.mxu0 %v5492
    %6497 = vmatprep.subr.bf16.mxu0 %v5500
    %6498 = vmatpush1.bf16.msra.mxu0 %v5499
    %6499 = vmatprep.subr.bf16.mxu0 %v5507
    %6500 = vmatpush1.bf16.msra.mxu0 %v5506
    %6501 = vmatprep.subr.bf16.mxu0 %v5514
    %6502 = vmatpush1.bf16.msra.mxu0 %v5513
    %6503 = vmatprep.subr.bf16.mxu0 %v5521
    %6504 = vmatpush1.bf16.msra.mxu0 %v5520
    %6505 = vmatprep.mubr.bf16.mxu0 %v3449
    %6506 = vmatmul.mubr.bf16.gmra.mrb[0].mxu0 %v3448
    %v6507 = vpop.f32.mrb[0].mxu0
    %v6508 = vadd.f32 %v3981, %v6507
    %v6509 = vpop.f32.mrb[0].mxu0
    %v6510 = vadd.f32 %v3985, %v6509
    %v6511 = vpop.f32.mrb[0].mxu0
    %v6512 = vpop.f32.mrb[0].mxu0
    %6513 = vdwg.mxu0
    %6514 = vmatprep.subr.bf16.mxu0 %v5528
    %6515 = vmatpush1.bf16.msra.mxu0 %v5527
    %6516 = vmatprep.subr.bf16.mxu0 %v5535
    %6517 = vmatpush1.bf16.msra.mxu0 %v5534
    %6518 = vmatprep.subr.bf16.mxu0 %v5542
    %6519 = vmatpush1.bf16.msra.mxu0 %v5541
    %6520 = vmatprep.subr.bf16.mxu0 %v5549
    %6521 = vmatpush1.bf16.msra.mxu0 %v5548
    %6522 = vmatprep.subr.bf16.mxu0 %v5556
    %6523 = vmatpush1.bf16.msra.mxu0 %v5555
    %6524 = vmatprep.subr.bf16.mxu0 %v5563
    %6525 = vmatpush1.bf16.msra.mxu0 %v5562
    %6526 = vmatprep.subr.bf16.mxu0 %v5570
    %6527 = vmatpush1.bf16.msra.mxu0 %v5569
    %6528 = vmatprep.subr.bf16.mxu0 %v5577
    %6529 = vmatpush1.bf16.msra.mxu0 %v5576
    %6530 = vmatprep.subr.bf16.mxu0 %v5584
    %6531 = vmatpush1.bf16.msra.mxu0 %v5583
    %6532 = vmatprep.subr.bf16.mxu0 %v5591
    %6533 = vmatpush1.bf16.msra.mxu0 %v5590
    %6534 = vmatprep.subr.bf16.mxu0 %v5598
    %6535 = vmatpush1.bf16.msra.mxu0 %v5597
    %6536 = vmatprep.subr.bf16.mxu0 %v5605
    %6537 = vmatpush1.bf16.msra.mxu0 %v5604
    %6538 = vmatprep.subr.bf16.mxu0 %v5612
    %6539 = vmatpush1.bf16.msra.mxu0 %v5611
    %6540 = vmatprep.subr.bf16.mxu0 %v5619
    %6541 = vmatpush1.bf16.msra.mxu0 %v5618
    %6542 = vmatprep.subr.bf16.mxu0 %v5626
    %6543 = vmatpush1.bf16.msra.mxu0 %v5625
    %6544 = vmatprep.subr.bf16.mxu0 %v5633
    %6545 = vmatpush1.bf16.msra.mxu0 %v5632
    %6546 = vmatprep.mubr.bf16.mxu0 %v3451
    %6547 = vmatmul.mubr.bf16.gmra.mrb[0].mxu0 %v3450
    %v6548 = vpop.f32.mrb[0].mxu0
    %v6549 = vadd.f32 %v6508, %v6548
    %v6550 = vpop.f32.mrb[0].mxu0
    %v6551 = vadd.f32 %v6510, %v6550
    %v6552 = vpop.f32.mrb[0].mxu0
    %v6553 = vpop.f32.mrb[0].mxu0
    %6554 = vdwg.mxu0
    %6555 = vmatprep.subr.bf16.mxu0 %v5640
    %6556 = vmatpush1.bf16.msra.mxu0 %v5639
    %6557 = vmatprep.subr.bf16.mxu0 %v5647
    %6558 = vmatpush1.bf16.msra.mxu0 %v5646
    %6559 = vmatprep.subr.bf16.mxu0 %v5654
    %6560 = vmatpush1.bf16.msra.mxu0 %v5653
    %6561 = vmatprep.subr.bf16.mxu0 %v5661
    %6562 = vmatpush1.bf16.msra.mxu0 %v5660
    %6563 = vmatprep.subr.bf16.mxu0 %v5668
    %6564 = vmatpush1.bf16.msra.mxu0 %v5667
    %6565 = vmatprep.subr.bf16.mxu0 %v5675
    %6566 = vmatpush1.bf16.msra.mxu0 %v5674
    %6567 = vmatprep.subr.bf16.mxu0 %v5682
    %6568 = vmatpush1.bf16.msra.mxu0 %v5681
    %6569 = vmatprep.subr.bf16.mxu0 %v5689
    %6570 = vmatpush1.bf16.msra.mxu0 %v5688
    %6571 = vmatprep.subr.bf16.mxu0 %v5696
    %6572 = vmatpush1.bf16.msra.mxu0 %v5695
    %6573 = vmatprep.subr.bf16.mxu0 %v5703
    %6574 = vmatpush1.bf16.msra.mxu0 %v5702
    %6575 = vmatprep.subr.bf16.mxu0 %v5710
    %6576 = vmatpush1.bf16.msra.mxu0 %v5709
    %6577 = vmatprep.subr.bf16.mxu0 %v5717
    %6578 = vmatpush1.bf16.msra.mxu0 %v5716
    %6579 = vmatprep.subr.bf16.mxu0 %v5724
    %6580 = vmatpush1.bf16.msra.mxu0 %v5723
    %6581 = vmatprep.subr.bf16.mxu0 %v5731
    %6582 = vmatpush1.bf16.msra.mxu0 %v5730
    %6583 = vmatprep.subr.bf16.mxu0 %v5738
    %6584 = vmatpush1.bf16.msra.mxu0 %v5737
    %6585 = vmatprep.subr.bf16.mxu0 %v5745
    %6586 = vmatpush1.bf16.msra.mxu0 %v5744
    %6587 = vmatprep.mubr.bf16.mxu0 %v3453
    %6588 = vmatmul.mubr.bf16.gmra.mrb[0].mxu0 %v3452
    %v6589 = vpop.f32.mrb[0].mxu0
    %v6590 = vadd.f32 %v6549, %v6589
    %v6591 = vpop.f32.mrb[0].mxu0
    %v6592 = vadd.f32 %v6551, %v6591
    %v6593 = vpop.f32.mrb[0].mxu0
    %v6594 = vpop.f32.mrb[0].mxu0
    %6595 = vdwg.mxu0
    %6596 = vmatprep.subr.bf16.mxu0 %v5752
    %6597 = vmatpush1.bf16.msra.mxu0 %v5751
    %6598 = vmatprep.subr.bf16.mxu0 %v5759
    %6599 = vmatpush1.bf16.msra.mxu0 %v5758
    %6600 = vmatprep.subr.bf16.mxu0 %v5766
    %6601 = vmatpush1.bf16.msra.mxu0 %v5765
    %6602 = vmatprep.subr.bf16.mxu0 %v5773
    %6603 = vmatpush1.bf16.msra.mxu0 %v5772
    %6604 = vmatprep.subr.bf16.mxu0 %v5780
    %6605 = vmatpush1.bf16.msra.mxu0 %v5779
    %6606 = vmatprep.subr.bf16.mxu0 %v5787
    %6607 = vmatpush1.bf16.msra.mxu0 %v5786
    %6608 = vmatprep.subr.bf16.mxu0 %v5794
    %6609 = vmatpush1.bf16.msra.mxu0 %v5793
    %6610 = vmatprep.subr.bf16.mxu0 %v5801
    %6611 = vmatpush1.bf16.msra.mxu0 %v5800
    %6612 = vmatprep.subr.bf16.mxu0 %v5808
    %6613 = vmatpush1.bf16.msra.mxu0 %v5807
    %6614 = vmatprep.subr.bf16.mxu0 %v5815
    %6615 = vmatpush1.bf16.msra.mxu0 %v5814
    %6616 = vmatprep.subr.bf16.mxu0 %v5822
    %6617 = vmatpush1.bf16.msra.mxu0 %v5821
    %6618 = vmatprep.subr.bf16.mxu0 %v5829
    %6619 = vmatpush1.bf16.msra.mxu0 %v5828
    %6620 = vmatprep.subr.bf16.mxu0 %v5836
    %6621 = vmatpush1.bf16.msra.mxu0 %v5835
    %6622 = vmatprep.subr.bf16.mxu0 %v5843
    %6623 = vmatpush1.bf16.msra.mxu0 %v5842
    %6624 = vmatprep.subr.bf16.mxu0 %v5850
    %6625 = vmatpush1.bf16.msra.mxu0 %v5849
    %6626 = vmatprep.subr.bf16.mxu0 %v5857
    %6627 = vmatpush1.bf16.msra.mxu0 %v5856
    %6628 = vmatprep.mubr.bf16.mxu0 %v3455
    %6629 = vmatmul.mubr.bf16.gmra.mrb[0].mxu0 %v3454
    %v6630 = vpop.f32.mrb[0].mxu0
    %v6631 = vadd.f32 %v6590, %v6630
    %v6632 = vpop.f32.mrb[0].mxu0
    %v6633 = vadd.f32 %v6592, %v6632
    %v6634 = vpop.f32.mrb[0].mxu0
    %v6635 = vpop.f32.mrb[0].mxu0
    %6636 = vdwg.mxu0
    %6637 = vmatprep.subr.bf16.mxu0 %v5418
    %6638 = vmatpush1.bf16.msra.mxu0 %v5417
    %6639 = vmatprep.subr.bf16.mxu0 %v5425
    %6640 = vmatpush1.bf16.msra.mxu0 %v5424
    %6641 = vmatprep.subr.bf16.mxu0 %v5432
    %6642 = vmatpush1.bf16.msra.mxu0 %v5431
    %6643 = vmatprep.subr.bf16.mxu0 %v5439
    %6644 = vmatpush1.bf16.msra.mxu0 %v5438
    %6645 = vmatprep.subr.bf16.mxu0 %v5446
    %6646 = vmatpush1.bf16.msra.mxu0 %v5445
    %6647 = vmatprep.subr.bf16.mxu0 %v5453
    %6648 = vmatpush1.bf16.msra.mxu0 %v5452
    %6649 = vmatprep.subr.bf16.mxu0 %v5460
    %6650 = vmatpush1.bf16.msra.mxu0 %v5459
    %6651 = vmatprep.subr.bf16.mxu0 %v5467
    %6652 = vmatpush1.bf16.msra.mxu0 %v5466
    %6653 = vmatprep.subr.bf16.mxu0 %v5474
    %6654 = vmatpush1.bf16.msra.mxu0 %v5473
    %6655 = vmatprep.subr.bf16.mxu0 %v5481
    %6656 = vmatpush1.bf16.msra.mxu0 %v5480
    %6657 = vmatprep.subr.bf16.mxu0 %v5488
    %6658 = vmatpush1.bf16.msra.mxu0 %v5487
    %6659 = vmatprep.subr.bf16.mxu0 %v5495
    %6660 = vmatpush1.bf16.msra.mxu0 %v5494
    %6661 = vmatprep.subr.bf16.mxu0 %v5502
    %6662 = vmatpush1.bf16.msra.mxu0 %v5501
    %6663 = vmatprep.subr.bf16.mxu0 %v5509
    %6664 = vmatpush1.bf16.msra.mxu0 %v5508
    %6665 = vmatprep.subr.bf16.mxu0 %v5516
    %6666 = vmatpush1.bf16.msra.mxu0 %v5515
    %6667 = vmatprep.subr.bf16.mxu0 %v5523
    %6668 = vmatpush1.bf16.msra.mxu0 %v5522
    %6669 = vmatprep.mubr.bf16.mxu0 %v3449
    %6670 = vmatmul.mubr.bf16.gmra.mrb[0].mxu0 %v3448
    %v6671 = vpop.f32.mrb[0].mxu0
    %v6672 = vadd.f32 %v3989, %v6671
    %v6673 = vpop.f32.mrb[0].mxu0
    %v6674 = vadd.f32 %v3993, %v6673
    %v6675 = vpop.f32.mrb[0].mxu0
    %v6676 = vpop.f32.mrb[0].mxu0
    %6677 = vdwg.mxu0
    %6678 = vmatprep.subr.bf16.mxu0 %v5530
    %6679 = vmatpush1.bf16.msra.mxu0 %v5529
    %6680 = vmatprep.subr.bf16.mxu0 %v5537
    %6681 = vmatpush1.bf16.msra.mxu0 %v5536
    %6682 = vmatprep.subr.bf16.mxu0 %v5544
    %6683 = vmatpush1.bf16.msra.mxu0 %v5543
    %6684 = vmatprep.subr.bf16.mxu0 %v5551
    %6685 = vmatpush1.bf16.msra.mxu0 %v5550
    %6686 = vmatprep.subr.bf16.mxu0 %v5558
    %6687 = vmatpush1.bf16.msra.mxu0 %v5557
    %6688 = vmatprep.subr.bf16.mxu0 %v5565
    %6689 = vmatpush1.bf16.msra.mxu0 %v5564
    %6690 = vmatprep.subr.bf16.mxu0 %v5572
    %6691 = vmatpush1.bf16.msra.mxu0 %v5571
    %6692 = vmatprep.subr.bf16.mxu0 %v5579
    %6693 = vmatpush1.bf16.msra.mxu0 %v5578
    %6694 = vmatprep.subr.bf16.mxu0 %v5586
    %6695 = vmatpush1.bf16.msra.mxu0 %v5585
    %6696 = vmatprep.subr.bf16.mxu0 %v5593
    %6697 = vmatpush1.bf16.msra.mxu0 %v5592
    %6698 = vmatprep.subr.bf16.mxu0 %v5600
    %6699 = vmatpush1.bf16.msra.mxu0 %v5599
    %6700 = vmatprep.subr.bf16.mxu0 %v5607
    %6701 = vmatpush1.bf16.msra.mxu0 %v5606
    %6702 = vmatprep.subr.bf16.mxu0 %v5614
    %6703 = vmatpush1.bf16.msra.mxu0 %v5613
    %6704 = vmatprep.subr.bf16.mxu0 %v5621
    %6705 = vmatpush1.bf16.msra.mxu0 %v5620
    %6706 = vmatprep.subr.bf16.mxu0 %v5628
    %6707 = vmatpush1.bf16.msra.mxu0 %v5627
    %6708 = vmatprep.subr.bf16.mxu0 %v5635
    %6709 = vmatpush1.bf16.msra.mxu0 %v5634
    %6710 = vmatprep.mubr.bf16.mxu0 %v3451
    %6711 = vmatmul.mubr.bf16.gmra.mrb[0].mxu0 %v3450
    %v6712 = vpop.f32.mrb[0].mxu0
    %v6713 = vadd.f32 %v6672, %v6712
    %v6714 = vpop.f32.mrb[0].mxu0
    %v6715 = vadd.f32 %v6674, %v6714
    %v6716 = vpop.f32.mrb[0].mxu0
    %v6717 = vpop.f32.mrb[0].mxu0
    %6718 = vdwg.mxu0
    %6719 = vmatprep.subr.bf16.mxu0 %v5642
    %6720 = vmatpush1.bf16.msra.mxu0 %v5641
    %6721 = vmatprep.subr.bf16.mxu0 %v5649
    %6722 = vmatpush1.bf16.msra.mxu0 %v5648
    %6723 = vmatprep.subr.bf16.mxu0 %v5656
    %6724 = vmatpush1.bf16.msra.mxu0 %v5655
    %6725 = vmatprep.subr.bf16.mxu0 %v5663
    %6726 = vmatpush1.bf16.msra.mxu0 %v5662
    %6727 = vmatprep.subr.bf16.mxu0 %v5670
    %6728 = vmatpush1.bf16.msra.mxu0 %v5669
    %6729 = vmatprep.subr.bf16.mxu0 %v5677
    %6730 = vmatpush1.bf16.msra.mxu0 %v5676
    %6731 = vmatprep.subr.bf16.mxu0 %v5684
    %6732 = vmatpush1.bf16.msra.mxu0 %v5683
    %6733 = vmatprep.subr.bf16.mxu0 %v5691
    %6734 = vmatpush1.bf16.msra.mxu0 %v5690
    %6735 = vmatprep.subr.bf16.mxu0 %v5698
    %6736 = vmatpush1.bf16.msra.mxu0 %v5697
    %6737 = vmatprep.subr.bf16.mxu0 %v5705
    %6738 = vmatpush1.bf16.msra.mxu0 %v5704
    %6739 = vmatprep.subr.bf16.mxu0 %v5712
    %6740 = vmatpush1.bf16.msra.mxu0 %v5711
    %6741 = vmatprep.subr.bf16.mxu0 %v5719
    %6742 = vmatpush1.bf16.msra.mxu0 %v5718
    %6743 = vmatprep.subr.bf16.mxu0 %v5726
    %6744 = vmatpush1.bf16.msra.mxu0 %v5725
    %6745 = vmatprep.subr.bf16.mxu0 %v5733
    %6746 = vmatpush1.bf16.msra.mxu0 %v5732
    %6747 = vmatprep.subr.bf16.mxu0 %v5740
    %6748 = vmatpush1.bf16.msra.mxu0 %v5739
    %6749 = vmatprep.subr.bf16.mxu0 %v5747
    %6750 = vmatpush1.bf16.msra.mxu0 %v5746
    %6751 = vmatprep.mubr.bf16.mxu0 %v3453
    %6752 = vmatmul.mubr.bf16.gmra.mrb[0].mxu0 %v3452
    %v6753 = vpop.f32.mrb[0].mxu0
    %v6754 = vadd.f32 %v6713, %v6753
    %v6755 = vpop.f32.mrb[0].mxu0
    %v6756 = vadd.f32 %v6715, %v6755
    %v6757 = vpop.f32.mrb[0].mxu0
    %v6758 = vpop.f32.mrb[0].mxu0
    %6759 = vdwg.mxu0
    %6760 = vmatprep.subr.bf16.mxu0 %v5754
    %6761 = vmatpush1.bf16.msra.mxu0 %v5753
    %6762 = vmatprep.subr.bf16.mxu0 %v5761
    %6763 = vmatpush1.bf16.msra.mxu0 %v5760
    %6764 = vmatprep.subr.bf16.mxu0 %v5768
    %6765 = vmatpush1.bf16.msra.mxu0 %v5767
    %6766 = vmatprep.subr.bf16.mxu0 %v5775
    %6767 = vmatpush1.bf16.msra.mxu0 %v5774
    %6768 = vmatprep.subr.bf16.mxu0 %v5782
    %6769 = vmatpush1.bf16.msra.mxu0 %v5781
    %6770 = vmatprep.subr.bf16.mxu0 %v5789
    %6771 = vmatpush1.bf16.msra.mxu0 %v5788
    %6772 = vmatprep.subr.bf16.mxu0 %v5796
    %6773 = vmatpush1.bf16.msra.mxu0 %v5795
    %6774 = vmatprep.subr.bf16.mxu0 %v5803
    %6775 = vmatpush1.bf16.msra.mxu0 %v5802
    %6776 = vmatprep.subr.bf16.mxu0 %v5810
    %6777 = vmatpush1.bf16.msra.mxu0 %v5809
    %6778 = vmatprep.subr.bf16.mxu0 %v5817
    %6779 = vmatpush1.bf16.msra.mxu0 %v5816
    %6780 = vmatprep.subr.bf16.mxu0 %v5824
    %6781 = vmatpush1.bf16.msra.mxu0 %v5823
    %6782 = vmatprep.subr.bf16.mxu0 %v5831
    %6783 = vmatpush1.bf16.msra.mxu0 %v5830
    %6784 = vmatprep.subr.bf16.mxu0 %v5838
    %6785 = vmatpush1.bf16.msra.mxu0 %v5837
    %6786 = vmatprep.subr.bf16.mxu0 %v5845
    %6787 = vmatpush1.bf16.msra.mxu0 %v5844
    %6788 = vmatprep.subr.bf16.mxu0 %v5852
    %6789 = vmatpush1.bf16.msra.mxu0 %v5851
    %6790 = vmatprep.subr.bf16.mxu0 %v5859
    %6791 = vmatpush1.bf16.msra.mxu0 %v5858
    %6792 = vmatprep.mubr.bf16.mxu0 %v3455
    %6793 = vmatmul.mubr.bf16.gmra.mrb[0].mxu0 %v3454
    %v6794 = vpop.f32.mrb[0].mxu0
    %v6795 = vadd.f32 %v6754, %v6794
    %v6796 = vpop.f32.mrb[0].mxu0
    %v6797 = vadd.f32 %v6756, %v6796
    %v6798 = vpop.f32.mrb[0].mxu0
    %v6799 = vpop.f32.mrb[0].mxu0
    %6800 = vdwg.mxu0
    %6801 = vmatprep.subr.bf16.mxu0 0
    %6802 = vmatpush1.bf16.msra.mxu0 %v5419
    %6803 = vmatprep.subr.bf16.mxu0 0
    %6804 = vmatpush1.bf16.msra.mxu0 %v5426
    %6805 = vmatprep.subr.bf16.mxu0 0
    %6806 = vmatpush1.bf16.msra.mxu0 %v5433
    %6807 = vmatprep.subr.bf16.mxu0 0
    %6808 = vmatpush1.bf16.msra.mxu0 %v5440
    %6809 = vmatprep.subr.bf16.mxu0 0
    %6810 = vmatpush1.bf16.msra.mxu0 %v5447
    %6811 = vmatprep.subr.bf16.mxu0 0
    %6812 = vmatpush1.bf16.msra.mxu0 %v5454
    %6813 = vmatprep.subr.bf16.mxu0 0
    %6814 = vmatpush1.bf16.msra.mxu0 %v5461
    %6815 = vmatprep.subr.bf16.mxu0 0
    %6816 = vmatpush1.bf16.msra.mxu0 %v5468
    %6817 = vmatprep.subr.bf16.mxu0 0
    %6818 = vmatpush1.bf16.msra.mxu0 %v5475
    %6819 = vmatprep.subr.bf16.mxu0 0
    %6820 = vmatpush1.bf16.msra.mxu0 %v5482
    %6821 = vmatprep.subr.bf16.mxu0 0
    %6822 = vmatpush1.bf16.msra.mxu0 %v5489
    %6823 = vmatprep.subr.bf16.mxu0 0
    %6824 = vmatpush1.bf16.msra.mxu0 %v5496
    %6825 = vmatprep.subr.bf16.mxu0 0
    %6826 = vmatpush1.bf16.msra.mxu0 %v5503
    %6827 = vmatprep.subr.bf16.mxu0 0
    %6828 = vmatpush1.bf16.msra.mxu0 %v5510
    %6829 = vmatprep.subr.bf16.mxu0 0
    %6830 = vmatpush1.bf16.msra.mxu0 %v5517
    %6831 = vmatprep.subr.bf16.mxu0 0
    %6832 = vmatpush1.bf16.msra.mxu0 %v5524
    %6833 = vmatprep.mubr.bf16.mxu0 %v3449
    %6834 = vmatmul.mubr.bf16.gmra.mrb[0].mxu0 %v3448
    %v6835 = vpop.f32.mrb[0].mxu0
    %v6836 = vadd.f32 %v3997, %v6835
    %v6837 = vpop.f32.mrb[0].mxu0
    %v6838 = vpop.f32.mrb[0].mxu0
    %v6839 = vpop.f32.mrb[0].mxu0
    %6840 = vdwg.mxu0
    %6841 = vmatprep.subr.bf16.mxu0 0
    %6842 = vmatpush1.bf16.msra.mxu0 %v5531
    %6843 = vmatprep.subr.bf16.mxu0 0
    %6844 = vmatpush1.bf16.msra.mxu0 %v5538
    %6845 = vmatprep.subr.bf16.mxu0 0
    %6846 = vmatpush1.bf16.msra.mxu0 %v5545
    %6847 = vmatprep.subr.bf16.mxu0 0
    %6848 = vmatpush1.bf16.msra.mxu0 %v5552
    %6849 = vmatprep.subr.bf16.mxu0 0
    %6850 = vmatpush1.bf16.msra.mxu0 %v5559
    %6851 = vmatprep.subr.bf16.mxu0 0
    %6852 = vmatpush1.bf16.msra.mxu0 %v5566
    %6853 = vmatprep.subr.bf16.mxu0 0
    %6854 = vmatpush1.bf16.msra.mxu0 %v5573
    %6855 = vmatprep.subr.bf16.mxu0 0
    %6856 = vmatpush1.bf16.msra.mxu0 %v5580
    %6857 = vmatprep.subr.bf16.mxu0 0
    %6858 = vmatpush1.bf16.msra.mxu0 %v5587
    %6859 = vmatprep.subr.bf16.mxu0 0
    %6860 = vmatpush1.bf16.msra.mxu0 %v5594
    %6861 = vmatprep.subr.bf16.mxu0 0
    %6862 = vmatpush1.bf16.msra.mxu0 %v5601
    %6863 = vmatprep.subr.bf16.mxu0 0
    %6864 = vmatpush1.bf16.msra.mxu0 %v5608
    %6865 = vmatprep.subr.bf16.mxu0 0
    %6866 = vmatpush1.bf16.msra.mxu0 %v5615
    %6867 = vmatprep.subr.bf16.mxu0 0
    %6868 = vmatpush1.bf16.msra.mxu0 %v5622
    %6869 = vmatprep.subr.bf16.mxu0 0
    %6870 = vmatpush1.bf16.msra.mxu0 %v5629
    %6871 = vmatprep.subr.bf16.mxu0 0
    %6872 = vmatpush1.bf16.msra.mxu0 %v5636
    %6873 = vmatprep.mubr.bf16.mxu0 %v3451
    %6874 = vmatmul.mubr.bf16.gmra.mrb[0].mxu0 %v3450
    %v6875 = vpop.f32.mrb[0].mxu0
    %v6876 = vadd.f32 %v6836, %v6875
    %v6877 = vpop.f32.mrb[0].mxu0
    %v6878 = vpop.f32.mrb[0].mxu0
    %v6879 = vpop.f32.mrb[0].mxu0
    %6880 = vdwg.mxu0
    %6881 = vmatprep.subr.bf16.mxu0 0
    %6882 = vmatpush1.bf16.msra.mxu0 %v5643
    %6883 = vmatprep.subr.bf16.mxu0 0
    %6884 = vmatpush1.bf16.msra.mxu0 %v5650
    %6885 = vmatprep.subr.bf16.mxu0 0
    %6886 = vmatpush1.bf16.msra.mxu0 %v5657
    %6887 = vmatprep.subr.bf16.mxu0 0
    %6888 = vmatpush1.bf16.msra.mxu0 %v5664
    %6889 = vmatprep.subr.bf16.mxu0 0
    %6890 = vmatpush1.bf16.msra.mxu0 %v5671
    %6891 = vmatprep.subr.bf16.mxu0 0
    %6892 = vmatpush1.bf16.msra.mxu0 %v5678
    %6893 = vmatprep.subr.bf16.mxu0 0
    %6894 = vmatpush1.bf16.msra.mxu0 %v5685
    %6895 = vmatprep.subr.bf16.mxu0 0
    %6896 = vmatpush1.bf16.msra.mxu0 %v5692
    %6897 = vmatprep.subr.bf16.mxu0 0
    %6898 = vmatpush1.bf16.msra.mxu0 %v5699
    %6899 = vmatprep.subr.bf16.mxu0 0
    %6900 = vmatpush1.bf16.msra.mxu0 %v5706
    %6901 = vmatprep.subr.bf16.mxu0 0
    %6902 = vmatpush1.bf16.msra.mxu0 %v5713
    %6903 = vmatprep.subr.bf16.mxu0 0
    %6904 = vmatpush1.bf16.msra.mxu0 %v5720
    %6905 = vmatprep.subr.bf16.mxu0 0
    %6906 = vmatpush1.bf16.msra.mxu0 %v5727
    %6907 = vmatprep.subr.bf16.mxu0 0
    %6908 = vmatpush1.bf16.msra.mxu0 %v5734
    %6909 = vmatprep.subr.bf16.mxu0 0
    %6910 = vmatpush1.bf16.msra.mxu0 %v5741
    %6911 = vmatprep.subr.bf16.mxu0 0
    %6912 = vmatpush1.bf16.msra.mxu0 %v5748
    %6913 = vmatprep.mubr.bf16.mxu0 %v3453
    %6914 = vmatmul.mubr.bf16.gmra.mrb[0].mxu0 %v3452
    %v6915 = vpop.f32.mrb[0].mxu0
    %v6916 = vadd.f32 %v6876, %v6915
    %v6917 = vpop.f32.mrb[0].mxu0
    %v6918 = vpop.f32.mrb[0].mxu0
    %v6919 = vpop.f32.mrb[0].mxu0
    %6920 = vdwg.mxu0
    %6921 = vmatprep.subr.bf16.mxu0 0
    %6922 = vmatpush1.bf16.msra.mxu0 %v5755
    %6923 = vmatprep.subr.bf16.mxu0 0
    %6924 = vmatpush1.bf16.msra.mxu0 %v5762
    %6925 = vmatprep.subr.bf16.mxu0 0
    %6926 = vmatpush1.bf16.msra.mxu0 %v5769
    %6927 = vmatprep.subr.bf16.mxu0 0
    %6928 = vmatpush1.bf16.msra.mxu0 %v5776
    %6929 = vmatprep.subr.bf16.mxu0 0
    %6930 = vmatpush1.bf16.msra.mxu0 %v5783
    %6931 = vmatprep.subr.bf16.mxu0 0
    %6932 = vmatpush1.bf16.msra.mxu0 %v5790
    %6933 = vmatprep.subr.bf16.mxu0 0
    %6934 = vmatpush1.bf16.msra.mxu0 %v5797
    %6935 = vmatprep.subr.bf16.mxu0 0
    %6936 = vmatpush1.bf16.msra.mxu0 %v5804
    %6937 = vmatprep.subr.bf16.mxu0 0
    %6938 = vmatpush1.bf16.msra.mxu0 %v5811
    %6939 = vmatprep.subr.bf16.mxu0 0
    %6940 = vmatpush1.bf16.msra.mxu0 %v5818
    %6941 = vmatprep.subr.bf16.mxu0 0
    %6942 = vmatpush1.bf16.msra.mxu0 %v5825
    %6943 = vmatprep.subr.bf16.mxu0 0
    %6944 = vmatpush1.bf16.msra.mxu0 %v5832
    %6945 = vmatprep.subr.bf16.mxu0 0
    %6946 = vmatpush1.bf16.msra.mxu0 %v5839
    %6947 = vmatprep.subr.bf16.mxu0 0
    %6948 = vmatpush1.bf16.msra.mxu0 %v5846
    %6949 = vmatprep.subr.bf16.mxu0 0
    %6950 = vmatpush1.bf16.msra.mxu0 %v5853
    %6951 = vmatprep.subr.bf16.mxu0 0
    %6952 = vmatpush1.bf16.msra.mxu0 %v5860
    %6953 = vmatprep.mubr.bf16.mxu0 %v3455
    %6954 = vmatmul.mubr.bf16.gmra.mrb[0].mxu0 %v3454
    %v6955 = vpop.f32.mrb[0].mxu0
    %v6956 = vadd.f32 %v6916, %v6955
    %v6957 = vpop.f32.mrb[0].mxu0
    %v6958 = vpop.f32.mrb[0].mxu0
    %v6959 = vpop.f32.mrb[0].mxu0
    %6960 = vdwg.mxu0
    %v6961 = vtanh.pop %v6467
    %v6962 = vtanh.pop %v6469
    %v6963 = vtanh.pop %v6631
    %v6964 = vtanh.pop %v6633
    %v6965 = vtanh.pop %v6795
    %v6966 = vtanh.pop %v6797
    %v6967 = vtanh.pop %v6956
    %6968 = vst [vmem:[%s17] sm:$0xff] %v6961
    %6969 = vst [vmem:[%s17 + $0x8] sm:$0xff] %v6962
    %6970 = vst [vmem:[%s17 + $0x10] sm:$0xff] %v6963
    %6971 = vst [vmem:[%s17 + $0x18] sm:$0xff] %v6964
    %6972 = vst [vmem:[%s17 + $0x20] sm:$0xff] %v6965
    %6973 = vst [vmem:[%s17 + $0x28] sm:$0xff] %v6966
    %6974 = vst [vmem:[%s17 + $0x30] sm:$0xff] %v6967
    // Predicated region
    $region134: #{generator_forward.1} parent=1 // pred_check
      _
    $region135: #{generator_forward.1} parent=1 // pred_check_branch
      %6976 = sbr.rel (0) target = $region137
    $region136: #{generator_forward.1} parent=1 // pred_region
      _
    $region137: #{generator_forward.1} parent=1 // pred_fallthru
      _
    // Predicated region
    $region138: #{generator_forward.1} parent=1 // pred_check
      _
    $region139: #{generator_forward.1} parent=1 // pred_check_branch
      %6978 = sbr.rel (0) target = $region141
    $region140: #{generator_forward.1} parent=1 // pred_region
      _
    $region141: #{generator_forward.1} parent=1 // pred_fallthru
      _
    %6979 = vsyncpa [#allocation3], 1
    %6980 = vsyncpa [#allocation5], 1
    %6981 = vsyncpa [#allocation8], 1
    %6982 = vsyncpa [#allocation11], 1
    %6983 = vsyncpa [#allocation14], 1
    %6984 = vsyncpa [#allocation17], 1
    %6985 = vsyncpa [#allocation20], 1
    %6986 = vsyncpa [#allocation23], 1
    %6987 = vsyncpa [#allocation26], 1

</llo_original>
